<compile_context>
chip_gen: v7x
topology: tpu7x:2x2x1
jax: 0.10.0
libtpu: 0.0.40
codegen_flags: <defaults>
</compile_context>

<pallas_src>
import jax
import jax.numpy as jnp
from jax.experimental import pallas as pl
from jax.experimental.pallas import tpu as pltpu

# Model hyperparameters (GNNEncoder defaults, but n_message_passes=2 so the
# GatedGraphConv path is actually exercised; concat_intermediate=True).
NODE_HIDDEN = 32                      # node_hidden_size
N_ETYPES = 3                          # n_etypes
N_STEPS = 1                           # n_steps inside each GatedGraphConv
N_MP = 2                              # n_message_passes
REWARD_DIM = 1                        # reward_dim
EMBED_DIM = (N_MP + 1) * NODE_HIDDEN  # concat_intermediate=True


def _full_spec(shape):
    nd = len(shape)
    return pl.BlockSpec(shape, lambda i: (0,) * nd)


def gnn_kernel(feat_ref, adjstack_ref, mmat_ref,
               wmsg_ref, bslab_ref,
               wih_ref, whh_ref, brz_ref, bin_ref, bhn_ref,
               w1_ref, b1_ref, w2_ref, b2_ref,
               reward_ref, agg_ref):
    f32 = jnp.float32
    bf16 = jnp.bfloat16
    H = NODE_HIDDEN
    N = feat_ref.shape[0]

    feat = feat_ref[...]            # [N, H]    f32 (recurrent state stays f32)
    adj_stack = adjstack_ref[...]   # [T*N, N]  bf16, rows ordered (type, dst)
    mmat = mmat_ref[...]            # [B, N]    bf16 (entries 1/|V_b| are exact)

    # dgl.mean_nodes readouts kept as SSA values (no mid-kernel output round-trip).
    aggs = [jnp.dot(mmat, feat.astype(bf16), preferred_element_type=f32)]   # [B, H]

    for l in range(N_MP):                       # GatedGraphConv layers (unrolled)
        wih = wih_ref[l]                        # [H, 3H]  bf16 (r|z|n lane-concat)
        whh = whh_ref[l]                        # [H, 3H]  bf16
        brz = brz_ref[l]                        # [1, 2H]  f32  (bih+bhh for r,z)
        b_in = bin_ref[l]                       # [1, H]   f32  (bih for n)
        b_hn = bhn_ref[l]                       # [1, H]   f32  (bhh for n)
        bslab = bslab_ref[l]                    # [N, H]   f32  degree-weighted msg bias
        for _ in range(N_STEPS):
            fb = feat.astype(bf16)

            # ONE [T*N,N]@[N,H] matmul gives every per-type neighborhood sum,
            # each landing in a sublane-aligned slab (no lane->sublane restack).
            m_all = jnp.dot(adj_stack, fb, preferred_element_type=f32)      # [T*N, H]

            # a = sum_t (adj[t]@feat) @ W_t + sum_t deg_t * b_t  (reassociated)
            a = bslab
            for t in range(N_ETYPES):
                m_t = m_all[t * N:(t + 1) * N, :].astype(bf16)              # sublane slice
                a = a + jnp.dot(m_t, wmsg_ref[l * N_ETYPES + t],
                                preferred_element_type=f32)                 # [N, H]

            # GRUCell(a, feat): fused gates, 2 matmuls (r, z, n order), pre-summed biases
            gi = jnp.dot(a.astype(bf16), wih, preferred_element_type=f32)   # [N, 3H]
            gh = jnp.dot(fb, whh, preferred_element_type=f32)               # [N, 3H]
            rz = jax.nn.sigmoid(gi[:, :2 * H] + gh[:, :2 * H] + brz)
            r = rz[:, :H]
            z = rz[:, H:]
            n = jnp.tanh(gi[:, 2 * H:] + b_in + r * (gh[:, 2 * H:] + b_hn))
            feat = (1.0 - z) * n + z * feat
        # intermediate dgl.mean_nodes readout (SSA value, lane slab written at the end)
        aggs.append(jnp.dot(mmat, feat.astype(bf16), preferred_element_type=f32))

    # reward_predictor: Linear -> ReLU -> Linear, consuming the readouts directly
    # (w1 split wrapper-side into per-slab [H, H] blocks).
    h1 = b1_ref[...]                                                        # [1, H]
    for l in range(N_MP + 1):
        h1 = h1 + jnp.dot(aggs[l].astype(bf16), w1_ref[l],
                          preferred_element_type=f32)
    h1 = jnp.maximum(h1, 0.0)
    reward_ref[...] = (jnp.dot(h1.astype(bf16), w2_ref[...],
                               preferred_element_type=f32) + b2_ref[...])

    # Write each agg lane slab exactly once, at the end (no re-read anywhere).
    for l in range(N_MP + 1):
        agg_ref[:, l * H:(l + 1) * H] = aggs[l]


def prepare_inputs(feat, adj, mmat, params):
    """One-time, wrapper-side layout plumbing (hoisted out of the per-call path):
    adjacency sublane-stacking, degree-weighted bias folding, GRU weight/bias
    lane-concat, w1 slab split, and bf16 casts (0/1 adjacency & 1/32 mmat exact)."""
    wmsg, bmsg, wih, whh, bih, bhh, w1, b1, w2, b2 = params
    bf16 = jnp.bfloat16
    T, N, _ = adj.shape
    H = NODE_HIDDEN

    adj_stack = adj.reshape(T * N, N).astype(bf16)                    # [T*N, N]
    # fold the per-edge bias counting into a per-layer per-node bias slab:
    #   sum_t in_deg_t[n] * bmsg[l, t]  ==  sum_t (adj[t] @ (1 * b_t))[n]
    deg = adj.sum(axis=2)                                             # [T, N]
    bslab = jnp.einsum('tn,lth->lnh', deg, bmsg[:, :, 0, :])          # [N_MP, N, H]

    wmsg_flat = wmsg.reshape(N_MP * T, H, H).astype(bf16)             # [(l,t), H, H]
    wih_cat = jnp.concatenate([wih[:, k] for k in range(3)], axis=-1).astype(bf16)
    whh_cat = jnp.concatenate([whh[:, k] for k in range(3)], axis=-1).astype(bf16)
    brz = jnp.concatenate([bih[:, 0] + bhh[:, 0],
                           bih[:, 1] + bhh[:, 1]], axis=-1)           # [N_MP, 1, 2H]
    b_in = bih[:, 2]                                                  # [N_MP, 1, H]
    b_hn = bhh[:, 2]                                                  # [N_MP, 1, H]
    w1_blk = w1.reshape(N_MP + 1, H, H).astype(bf16)                  # per-slab blocks

    return (feat, adj_stack, mmat.astype(bf16),
            wmsg_flat, bslab,
            wih_cat, whh_cat, brz, b_in, b_hn,
            w1_blk, b1, w2.astype(bf16), b2)


def gnn_forward(packed_inputs, batch_size):
    out_shape = (jax.ShapeDtypeStruct((batch_size, REWARD_DIM), jnp.float32),
                 jax.ShapeDtypeStruct((batch_size, EMBED_DIM), jnp.float32))
    # TODO(synk): for many graph batches / large N, add a leading grid axis over
    # batches (or dst-row tiles of adj_stack) marked "parallel" with constant-index
    # weight BlockSpecs, so v7x's second TensorCore is used and launch overhead is
    # amortized; size the adjacency tile for 32 MiB scoped VMEM on v7x.
    return pl.pallas_call(
        gnn_kernel,
        out_shape=out_shape,
        grid=(1,),
        in_specs=[_full_spec(x.shape) for x in packed_inputs],
        out_specs=(_full_spec((batch_size, REWARD_DIM)),
                   _full_spec((batch_size, EMBED_DIM))),
        compiler_params=pltpu.CompilerParams(dimension_semantics=("arbitrary",)),
    )(*packed_inputs)


def reference_forward(feat, adj, mmat, params):
    """Pure-JAX f32 reference mirroring the PyTorch/DGL semantics (unfused)."""
    wmsg, bmsg, wih, whh, bih, bhh, w1, b1, w2, b2 = params
    aggs = [mmat @ feat]
    for l in range(N_MP):
        for _ in range(N_STEPS):
            a = jnp.zeros_like(feat)
            for t in range(N_ETYPES):
                a = a + adj[t] @ (feat @ wmsg[l, t] + bmsg[l, t])
            r = jax.nn.sigmoid(a @ wih[l, 0] + bih[l, 0] + feat @ whh[l, 0] + bhh[l, 0])
            z = jax.nn.sigmoid(a @ wih[l, 1] + bih[l, 1] + feat @ whh[l, 1] + bhh[l, 1])
            n = jnp.tanh(a @ wih[l, 2] + bih[l, 2] + r * (feat @ whh[l, 2] + bhh[l, 2]))
            feat = (1.0 - z) * n + z * feat
        aggs.append(mmat @ feat)
    graph_agg = jnp.concatenate(aggs, axis=1)
    h1 = jnp.maximum(graph_agg @ w1 + b1, 0.0)
    return h1 @ w2 + b2, graph_agg


if __name__ == "__main__":
    key = jax.random.PRNGKey(0)
    V = 50                 # node_vocab_size
    B = 4                  # graphs in the batch
    nodes_per_graph = 32
    N = B * nodes_per_graph            # 128 node rows -> full 128-lane tile
    H = NODE_HIDDEN

    keys = jax.random.split(key, 12)
    # nn.Embedding(node_vocab_size, node_hidden_size)
    embed = 0.1 * jax.random.normal(keys[0], (V, H), jnp.float32)
    text_idx = jax.random.randint(keys[1], (N,), 0, V)

    s = 1.0 / jnp.sqrt(H)
    # GatedGraphConv: per-etype Linear(H,H) (stored transposed), GRUCell(H,H)
    wmsg = s * jax.random.normal(keys[2], (N_MP, N_ETYPES, H, H), jnp.float32)
    bmsg = 0.1 * jax.random.normal(keys[3], (N_MP, N_ETYPES, 1, H), jnp.float32)
    wih = s * jax.random.normal(keys[4], (N_MP, 3, H, H), jnp.float32)   # r,z,n
    whh = s * jax.random.normal(keys[5], (N_MP, 3, H, H), jnp.float32)
    bih = 0.1 * jax.random.normal(keys[6], (N_MP, 3, 1, H), jnp.float32)
    bhh = 0.1 * jax.random.normal(keys[7], (N_MP, 3, 1, H), jnp.float32)
    # reward_predictor: Linear(EMBED_DIM,H) -> ReLU -> Linear(H,REWARD_DIM)
    w1 = (1.0 / jnp.sqrt(EMBED_DIM)) * jax.random.normal(keys[8], (EMBED_DIM, H), jnp.float32)
    b1 = 0.1 * jax.random.normal(keys[9], (1, H), jnp.float32)
    w2 = s * jax.random.normal(keys[10], (H, REWARD_DIM), jnp.float32)
    b2 = 0.1 * jax.random.normal(keys[11], (1, REWARD_DIM), jnp.float32)
    params = (wmsg, bmsg, wih, whh, bih, bhh, w1, b1, w2, b2)

    # Deterministic synthetic batched graph (dense adjacency per edge type).
    src_l, dst_l, et_l = [], [], []
    for b in range(B):
        base = b * nodes_per_graph
        for i in range(nodes_per_graph):
            src_l.append(base + i); dst_l.append(base + (i + 1) % nodes_per_graph); et_l.append(i % N_ETYPES)
            src_l.append(base + i); dst_l.append(base + (i + 2) % nodes_per_graph); et_l.append((i + 1) % N_ETYPES)
    adj = jnp.zeros((N_ETYPES, N, N), jnp.float32)
    adj = adj.at[jnp.array(et_l), jnp.array(dst_l), jnp.array(src_l)].set(1.0)

    # dgl.mean_nodes readout matrix
    mmat = jnp.zeros((B, N), jnp.float32)
    for b in range(B):
        mmat = mmat.at[b, b * nodes_per_graph:(b + 1) * nodes_per_graph].set(1.0 / nodes_per_graph)

    # featurize_nodes: embedding lookup.
    # TODO(synk): embedding gather kept as plain-JAX glue (data-dependent gather);
    # fusing it would need PrefetchScalarGridSpec + pl.Element row-gather BlockSpec.
    feat = jnp.take(embed, text_idx, axis=0)

    # One-time packing (hoisted out of the per-call path); packed tensors are what
    # every subsequent forward call would consume.
    packed = prepare_inputs(feat, adj, mmat, params)
    packed = tuple(jax.block_until_ready(x) for x in packed)

    reward, graph_agg = jax.block_until_ready(gnn_forward(packed, B))

    ref_reward, ref_agg = reference_forward(feat, adj, mmat, params)
    assert reward.shape == (B, REWARD_DIM) and graph_agg.shape == (B, EMBED_DIM)
    assert jnp.allclose(graph_agg, ref_agg, rtol=2e-2, atol=2e-2)
    assert jnp.allclose(reward, ref_reward, rtol=2e-2, atol=2e-2)
    print("KERNEL_OK")
</pallas_src>

<mosaic_0001>
module attributes {stable_mosaic.version = 11 : i64} {
  func.func @gnn_kernel(%arg0: i32, %arg1: memref<128x32xf32, #tpu.memory_space<vmem>>, %arg2: memref<384x128xbf16, #tpu.memory_space<vmem>>, %arg3: memref<4x128xbf16, #tpu.memory_space<vmem>>, %arg4: memref<6x32x32xbf16, #tpu.memory_space<vmem>>, %arg5: memref<2x128x32xf32, #tpu.memory_space<vmem>>, %arg6: memref<2x32x96xbf16, #tpu.memory_space<vmem>>, %arg7: memref<2x32x96xbf16, #tpu.memory_space<vmem>>, %arg8: memref<2x1x64xf32, #tpu.memory_space<vmem>>, %arg9: memref<2x1x32xf32, #tpu.memory_space<vmem>>, %arg10: memref<2x1x32xf32, #tpu.memory_space<vmem>>, %arg11: memref<3x32x32xbf16, #tpu.memory_space<vmem>>, %arg12: memref<1x32xf32, #tpu.memory_space<vmem>>, %arg13: memref<32x1xbf16, #tpu.memory_space<vmem>>, %arg14: memref<1x1xf32, #tpu.memory_space<vmem>>, %arg15: memref<4x1xf32, #tpu.memory_space<vmem>>, %arg16: memref<4x96xf32, #tpu.memory_space<vmem>>) attributes {dimension_semantics = [#tpu.dimension_semantics<arbitrary>], iteration_bounds = array<i64: 1>, scalar_prefetch = 0 : i64, scratch_operands = 0 : i64, tpu.core_type = #tpu.core_type<tc>, window_params = [{pipeline_mode = #tpu.pipeline_mode<synchronous>, transform_indices = @transform_0, window_bounds = array<i64: 128, 32>}, {pipeline_mode = #tpu.pipeline_mode<synchronous>, transform_indices = @transform_1, window_bounds = array<i64: 384, 128>}, {pipeline_mode = #tpu.pipeline_mode<synchronous>, transform_indices = @transform_2, window_bounds = array<i64: 4, 128>}, {pipeline_mode = #tpu.pipeline_mode<synchronous>, transform_indices = @transform_3, window_bounds = array<i64: 6, 32, 32>}, {pipeline_mode = #tpu.pipeline_mode<synchronous>, transform_indices = @transform_4, window_bounds = array<i64: 2, 128, 32>}, {pipeline_mode = #tpu.pipeline_mode<synchronous>, transform_indices = @transform_5, window_bounds = array<i64: 2, 32, 96>}, {pipeline_mode = #tpu.pipeline_mode<synchronous>, transform_indices = @transform_6, window_bounds = array<i64: 2, 32, 96>}, {pipeline_mode = #tpu.pipeline_mode<synchronous>, transform_indices = @transform_7, window_bounds = array<i64: 2, 1, 64>}, {pipeline_mode = #tpu.pipeline_mode<synchronous>, transform_indices = @transform_8, window_bounds = array<i64: 2, 1, 32>}, {pipeline_mode = #tpu.pipeline_mode<synchronous>, transform_indices = @transform_9, window_bounds = array<i64: 2, 1, 32>}, {pipeline_mode = #tpu.pipeline_mode<synchronous>, transform_indices = @transform_10, window_bounds = array<i64: 3, 32, 32>}, {pipeline_mode = #tpu.pipeline_mode<synchronous>, transform_indices = @transform_11, window_bounds = array<i64: 1, 32>}, {pipeline_mode = #tpu.pipeline_mode<synchronous>, transform_indices = @transform_12, window_bounds = array<i64: 32, 1>}, {pipeline_mode = #tpu.pipeline_mode<synchronous>, transform_indices = @transform_13, window_bounds = array<i64: 1, 1>}, {pipeline_mode = #tpu.pipeline_mode<synchronous>, transform_indices = @transform_14, window_bounds = array<i64: 4, 1>}, {pipeline_mode = #tpu.pipeline_mode<synchronous>, transform_indices = @transform_15, window_bounds = array<i64: 4, 96>}]} {
    %c0 = arith.constant 0 : index
    %c0_0 = arith.constant 0 : index
    %0 = vector.load %arg1[%c0, %c0_0] : memref<128x32xf32, #tpu.memory_space<vmem>>, vector<128x32xf32>
    %c0_1 = arith.constant 0 : index
    %c0_2 = arith.constant 0 : index
    %1 = vector.load %arg2[%c0_1, %c0_2] : memref<384x128xbf16, #tpu.memory_space<vmem>>, vector<384x128xbf16>
    %c0_3 = arith.constant 0 : index
    %c0_4 = arith.constant 0 : index
    %2 = vector.load %arg3[%c0_3, %c0_4] : memref<4x128xbf16, #tpu.memory_space<vmem>>, vector<4x128xbf16>
    %3 = arith.truncf %0 : vector<128x32xf32> to vector<128x32xbf16>
    %cst = arith.constant dense<0.000000e+00> : vector<4x32xf32>
    %4 = tpu.matmul %2, %3, %cst {dimension_numbers = #tpu.dot_dimension_numbers<[1], [0], [0], [1], [0, 0, 1, 1], [], []>} : vector<4x128xbf16>, vector<128x32xbf16>, vector<4x32xf32> -> vector<4x32xf32>
    %c0_5 = arith.constant 0 : index
    %c0_6 = arith.constant 0 : index
    %c0_7 = arith.constant 0 : index
    %5 = vector.load %arg6[%c0_5, %c0_6, %c0_7] : memref<2x32x96xbf16, #tpu.memory_space<vmem>>, vector<1x32x96xbf16>
    %6 = vector.shape_cast %5 : vector<1x32x96xbf16> to vector<32x96xbf16>
    %c0_8 = arith.constant 0 : index
    %c0_9 = arith.constant 0 : index
    %c0_10 = arith.constant 0 : index
    %7 = vector.load %arg7[%c0_8, %c0_9, %c0_10] : memref<2x32x96xbf16, #tpu.memory_space<vmem>>, vector<1x32x96xbf16>
    %8 = vector.shape_cast %7 : vector<1x32x96xbf16> to vector<32x96xbf16>
    %c0_11 = arith.constant 0 : index
    %c0_12 = arith.constant 0 : index
    %c0_13 = arith.constant 0 : index
    %9 = vector.load %arg8[%c0_11, %c0_12, %c0_13] : memref<2x1x64xf32, #tpu.memory_space<vmem>>, vector<1x1x64xf32>
    %10 = vector.shape_cast %9 : vector<1x1x64xf32> to vector<1x64xf32>
    %c0_14 = arith.constant 0 : index
    %c0_15 = arith.constant 0 : index
    %c0_16 = arith.constant 0 : index
    %11 = vector.load %arg9[%c0_14, %c0_15, %c0_16] : memref<2x1x32xf32, #tpu.memory_space<vmem>>, vector<1x1x32xf32>
    %12 = vector.shape_cast %11 : vector<1x1x32xf32> to vector<1x32xf32>
    %c0_17 = arith.constant 0 : index
    %c0_18 = arith.constant 0 : index
    %c0_19 = arith.constant 0 : index
    %13 = vector.load %arg10[%c0_17, %c0_18, %c0_19] : memref<2x1x32xf32, #tpu.memory_space<vmem>>, vector<1x1x32xf32>
    %14 = vector.shape_cast %13 : vector<1x1x32xf32> to vector<1x32xf32>
    %c0_20 = arith.constant 0 : index
    %c0_21 = arith.constant 0 : index
    %c0_22 = arith.constant 0 : index
    %15 = vector.load %arg5[%c0_20, %c0_21, %c0_22] : memref<2x128x32xf32, #tpu.memory_space<vmem>>, vector<1x128x32xf32>
    %16 = vector.shape_cast %15 : vector<1x128x32xf32> to vector<128x32xf32>
    %17 = arith.truncf %0 : vector<128x32xf32> to vector<128x32xbf16>
    %cst_23 = arith.constant dense<0.000000e+00> : vector<384x32xf32>
    %18 = tpu.matmul %1, %17, %cst_23 {dimension_numbers = #tpu.dot_dimension_numbers<[1], [0], [0], [1], [0, 0, 1, 1], [], []>} : vector<384x128xbf16>, vector<128x32xbf16>, vector<384x32xf32> -> vector<384x32xf32>
    %19 = vector.extract_strided_slice %18 {offsets = [0, 0], sizes = [128, 32], strides = [1, 1]} : vector<384x32xf32> to vector<128x32xf32>
    %20 = arith.truncf %19 : vector<128x32xf32> to vector<128x32xbf16>
    %c0_24 = arith.constant 0 : index
    %c0_25 = arith.constant 0 : index
    %c0_26 = arith.constant 0 : index
    %21 = vector.load %arg4[%c0_24, %c0_25, %c0_26] : memref<6x32x32xbf16, #tpu.memory_space<vmem>>, vector<1x32x32xbf16>
    %22 = vector.shape_cast %21 : vector<1x32x32xbf16> to vector<32x32xbf16>
    %cst_27 = arith.constant dense<0.000000e+00> : vector<128x32xf32>
    %23 = tpu.matmul %20, %22, %cst_27 {dimension_numbers = #tpu.dot_dimension_numbers<[1], [0], [0], [1], [0, 0, 1, 1], [], []>} : vector<128x32xbf16>, vector<32x32xbf16>, vector<128x32xf32> -> vector<128x32xf32>
    %24 = arith.addf %16, %23 : vector<128x32xf32>
    %25 = vector.extract_strided_slice %18 {offsets = [128, 0], sizes = [128, 32], strides = [1, 1]} : vector<384x32xf32> to vector<128x32xf32>
    %26 = arith.truncf %25 : vector<128x32xf32> to vector<128x32xbf16>
    %c1 = arith.constant 1 : index
    %c0_28 = arith.constant 0 : index
    %c0_29 = arith.constant 0 : index
    %27 = vector.load %arg4[%c1, %c0_28, %c0_29] : memref<6x32x32xbf16, #tpu.memory_space<vmem>>, vector<1x32x32xbf16>
    %28 = vector.shape_cast %27 : vector<1x32x32xbf16> to vector<32x32xbf16>
    %cst_30 = arith.constant dense<0.000000e+00> : vector<128x32xf32>
    %29 = tpu.matmul %26, %28, %cst_30 {dimension_numbers = #tpu.dot_dimension_numbers<[1], [0], [0], [1], [0, 0, 1, 1], [], []>} : vector<128x32xbf16>, vector<32x32xbf16>, vector<128x32xf32> -> vector<128x32xf32>
    %30 = arith.addf %24, %29 : vector<128x32xf32>
    %31 = vector.extract_strided_slice %18 {offsets = [256, 0], sizes = [128, 32], strides = [1, 1]} : vector<384x32xf32> to vector<128x32xf32>
    %32 = arith.truncf %31 : vector<128x32xf32> to vector<128x32xbf16>
    %c2 = arith.constant 2 : index
    %c0_31 = arith.constant 0 : index
    %c0_32 = arith.constant 0 : index
    %33 = vector.load %arg4[%c2, %c0_31, %c0_32] : memref<6x32x32xbf16, #tpu.memory_space<vmem>>, vector<1x32x32xbf16>
    %34 = vector.shape_cast %33 : vector<1x32x32xbf16> to vector<32x32xbf16>
    %cst_33 = arith.constant dense<0.000000e+00> : vector<128x32xf32>
    %35 = tpu.matmul %32, %34, %cst_33 {dimension_numbers = #tpu.dot_dimension_numbers<[1], [0], [0], [1], [0, 0, 1, 1], [], []>} : vector<128x32xbf16>, vector<32x32xbf16>, vector<128x32xf32> -> vector<128x32xf32>
    %36 = arith.addf %30, %35 : vector<128x32xf32>
    %37 = arith.truncf %36 : vector<128x32xf32> to vector<128x32xbf16>
    %cst_34 = arith.constant dense<0.000000e+00> : vector<128x96xf32>
    %38 = tpu.matmul %37, %6, %cst_34 {dimension_numbers = #tpu.dot_dimension_numbers<[1], [0], [0], [1], [0, 0, 1, 1], [], []>} : vector<128x32xbf16>, vector<32x96xbf16>, vector<128x96xf32> -> vector<128x96xf32>
    %cst_35 = arith.constant dense<0.000000e+00> : vector<128x96xf32>
    %39 = tpu.matmul %17, %8, %cst_35 {dimension_numbers = #tpu.dot_dimension_numbers<[1], [0], [0], [1], [0, 0, 1, 1], [], []>} : vector<128x32xbf16>, vector<32x96xbf16>, vector<128x96xf32> -> vector<128x96xf32>
    %40 = vector.extract_strided_slice %38 {offsets = [0, 0], sizes = [128, 64], strides = [1, 1]} : vector<128x96xf32> to vector<128x64xf32>
    %41 = vector.extract_strided_slice %39 {offsets = [0, 0], sizes = [128, 64], strides = [1, 1]} : vector<128x96xf32> to vector<128x64xf32>
    %42 = arith.addf %40, %41 : vector<128x64xf32>
    %43 = vector.broadcast %10 : vector<1x64xf32> to vector<128x64xf32>
    %44 = arith.addf %42, %43 : vector<128x64xf32>
    %45 = arith.negf %44 : vector<128x64xf32>
    %46 = math.exp %45 : vector<128x64xf32>
    %cst_36 = arith.constant 1.000000e+00 : f32
    %47 = vector.broadcast %cst_36 : f32 to vector<128x64xf32>
    %48 = arith.addf %47, %46 : vector<128x64xf32>
    %49 = arith.divf %47, %48 : vector<128x64xf32>
    %50 = vector.extract_strided_slice %49 {offsets = [0, 0], sizes = [128, 32], strides = [1, 1]} : vector<128x64xf32> to vector<128x32xf32>
    %51 = vector.extract_strided_slice %49 {offsets = [0, 32], sizes = [128, 32], strides = [1, 1]} : vector<128x64xf32> to vector<128x32xf32>
    %52 = vector.extract_strided_slice %38 {offsets = [0, 64], sizes = [128, 32], strides = [1, 1]} : vector<128x96xf32> to vector<128x32xf32>
    %53 = vector.broadcast %12 : vector<1x32xf32> to vector<128x32xf32>
    %54 = arith.addf %52, %53 : vector<128x32xf32>
    %55 = vector.extract_strided_slice %39 {offsets = [0, 64], sizes = [128, 32], strides = [1, 1]} : vector<128x96xf32> to vector<128x32xf32>
    %56 = vector.broadcast %14 : vector<1x32xf32> to vector<128x32xf32>
    %57 = arith.addf %55, %56 : vector<128x32xf32>
    %58 = arith.mulf %50, %57 : vector<128x32xf32>
    %59 = arith.addf %54, %58 : vector<128x32xf32>
    %60 = math.tanh %59 : vector<128x32xf32>
    %cst_37 = arith.constant 1.000000e+00 : f32
    %61 = vector.broadcast %cst_37 : f32 to vector<128x32xf32>
    %62 = arith.subf %61, %51 : vector<128x32xf32>
    %63 = arith.mulf %62, %60 : vector<128x32xf32>
    %64 = arith.mulf %51, %0 : vector<128x32xf32>
    %65 = arith.addf %63, %64 : vector<128x32xf32>
    %66 = arith.truncf %65 : vector<128x32xf32> to vector<128x32xbf16>
    %cst_38 = arith.constant dense<0.000000e+00> : vector<4x32xf32>
    %67 = tpu.matmul %2, %66, %cst_38 {dimension_numbers = #tpu.dot_dimension_numbers<[1], [0], [0], [1], [0, 0, 1, 1], [], []>} : vector<4x128xbf16>, vector<128x32xbf16>, vector<4x32xf32> -> vector<4x32xf32>
    %c1_39 = arith.constant 1 : index
    %c0_40 = arith.constant 0 : index
    %c0_41 = arith.constant 0 : index
    %68 = vector.load %arg6[%c1_39, %c0_40, %c0_41] : memref<2x32x96xbf16, #tpu.memory_space<vmem>>, vector<1x32x96xbf16>
    %69 = vector.shape_cast %68 : vector<1x32x96xbf16> to vector<32x96xbf16>
    %c1_42 = arith.constant 1 : index
    %c0_43 = arith.constant 0 : index
    %c0_44 = arith.constant 0 : index
    %70 = vector.load %arg7[%c1_42, %c0_43, %c0_44] : memref<2x32x96xbf16, #tpu.memory_space<vmem>>, vector<1x32x96xbf16>
    %71 = vector.shape_cast %70 : vector<1x32x96xbf16> to vector<32x96xbf16>
    %c1_45 = arith.constant 1 : index
    %c0_46 = arith.constant 0 : index
    %c0_47 = arith.constant 0 : index
    %72 = vector.load %arg8[%c1_45, %c0_46, %c0_47] : memref<2x1x64xf32, #tpu.memory_space<vmem>>, vector<1x1x64xf32>
    %73 = vector.shape_cast %72 : vector<1x1x64xf32> to vector<1x64xf32>
    %c1_48 = arith.constant 1 : index
    %c0_49 = arith.constant 0 : index
    %c0_50 = arith.constant 0 : index
    %74 = vector.load %arg9[%c1_48, %c0_49, %c0_50] : memref<2x1x32xf32, #tpu.memory_space<vmem>>, vector<1x1x32xf32>
    %75 = vector.shape_cast %74 : vector<1x1x32xf32> to vector<1x32xf32>
    %c1_51 = arith.constant 1 : index
    %c0_52 = arith.constant 0 : index
    %c0_53 = arith.constant 0 : index
    %76 = vector.load %arg10[%c1_51, %c0_52, %c0_53] : memref<2x1x32xf32, #tpu.memory_space<vmem>>, vector<1x1x32xf32>
    %77 = vector.shape_cast %76 : vector<1x1x32xf32> to vector<1x32xf32>
    %c1_54 = arith.constant 1 : index
    %c0_55 = arith.constant 0 : index
    %c0_56 = arith.constant 0 : index
    %78 = vector.load %arg5[%c1_54, %c0_55, %c0_56] : memref<2x128x32xf32, #tpu.memory_space<vmem>>, vector<1x128x32xf32>
    %79 = vector.shape_cast %78 : vector<1x128x32xf32> to vector<128x32xf32>
    %80 = arith.truncf %65 : vector<128x32xf32> to vector<128x32xbf16>
    %cst_57 = arith.constant dense<0.000000e+00> : vector<384x32xf32>
    %81 = tpu.matmul %1, %80, %cst_57 {dimension_numbers = #tpu.dot_dimension_numbers<[1], [0], [0], [1], [0, 0, 1, 1], [], []>} : vector<384x128xbf16>, vector<128x32xbf16>, vector<384x32xf32> -> vector<384x32xf32>
    %82 = vector.extract_strided_slice %81 {offsets = [0, 0], sizes = [128, 32], strides = [1, 1]} : vector<384x32xf32> to vector<128x32xf32>
    %83 = arith.truncf %82 : vector<128x32xf32> to vector<128x32xbf16>
    %c3 = arith.constant 3 : index
    %c0_58 = arith.constant 0 : index
    %c0_59 = arith.constant 0 : index
    %84 = vector.load %arg4[%c3, %c0_58, %c0_59] : memref<6x32x32xbf16, #tpu.memory_space<vmem>>, vector<1x32x32xbf16>
    %85 = vector.shape_cast %84 : vector<1x32x32xbf16> to vector<32x32xbf16>
    %cst_60 = arith.constant dense<0.000000e+00> : vector<128x32xf32>
    %86 = tpu.matmul %83, %85, %cst_60 {dimension_numbers = #tpu.dot_dimension_numbers<[1], [0], [0], [1], [0, 0, 1, 1], [], []>} : vector<128x32xbf16>, vector<32x32xbf16>, vector<128x32xf32> -> vector<128x32xf32>
    %87 = arith.addf %79, %86 : vector<128x32xf32>
    %88 = vector.extract_strided_slice %81 {offsets = [128, 0], sizes = [128, 32], strides = [1, 1]} : vector<384x32xf32> to vector<128x32xf32>
    %89 = arith.truncf %88 : vector<128x32xf32> to vector<128x32xbf16>
    %c4 = arith.constant 4 : index
    %c0_61 = arith.constant 0 : index
    %c0_62 = arith.constant 0 : index
    %90 = vector.load %arg4[%c4, %c0_61, %c0_62] : memref<6x32x32xbf16, #tpu.memory_space<vmem>>, vector<1x32x32xbf16>
    %91 = vector.shape_cast %90 : vector<1x32x32xbf16> to vector<32x32xbf16>
    %cst_63 = arith.constant dense<0.000000e+00> : vector<128x32xf32>
    %92 = tpu.matmul %89, %91, %cst_63 {dimension_numbers = #tpu.dot_dimension_numbers<[1], [0], [0], [1], [0, 0, 1, 1], [], []>} : vector<128x32xbf16>, vector<32x32xbf16>, vector<128x32xf32> -> vector<128x32xf32>
    %93 = arith.addf %87, %92 : vector<128x32xf32>
    %94 = vector.extract_strided_slice %81 {offsets = [256, 0], sizes = [128, 32], strides = [1, 1]} : vector<384x32xf32> to vector<128x32xf32>
    %95 = arith.truncf %94 : vector<128x32xf32> to vector<128x32xbf16>
    %c5 = arith.constant 5 : index
    %c0_64 = arith.constant 0 : index
    %c0_65 = arith.constant 0 : index
    %96 = vector.load %arg4[%c5, %c0_64, %c0_65] : memref<6x32x32xbf16, #tpu.memory_space<vmem>>, vector<1x32x32xbf16>
    %97 = vector.shape_cast %96 : vector<1x32x32xbf16> to vector<32x32xbf16>
    %cst_66 = arith.constant dense<0.000000e+00> : vector<128x32xf32>
    %98 = tpu.matmul %95, %97, %cst_66 {dimension_numbers = #tpu.dot_dimension_numbers<[1], [0], [0], [1], [0, 0, 1, 1], [], []>} : vector<128x32xbf16>, vector<32x32xbf16>, vector<128x32xf32> -> vector<128x32xf32>
    %99 = arith.addf %93, %98 : vector<128x32xf32>
    %100 = arith.truncf %99 : vector<128x32xf32> to vector<128x32xbf16>
    %cst_67 = arith.constant dense<0.000000e+00> : vector<128x96xf32>
    %101 = tpu.matmul %100, %69, %cst_67 {dimension_numbers = #tpu.dot_dimension_numbers<[1], [0], [0], [1], [0, 0, 1, 1], [], []>} : vector<128x32xbf16>, vector<32x96xbf16>, vector<128x96xf32> -> vector<128x96xf32>
    %cst_68 = arith.constant dense<0.000000e+00> : vector<128x96xf32>
    %102 = tpu.matmul %80, %71, %cst_68 {dimension_numbers = #tpu.dot_dimension_numbers<[1], [0], [0], [1], [0, 0, 1, 1], [], []>} : vector<128x32xbf16>, vector<32x96xbf16>, vector<128x96xf32> -> vector<128x96xf32>
    %103 = vector.extract_strided_slice %101 {offsets = [0, 0], sizes = [128, 64], strides = [1, 1]} : vector<128x96xf32> to vector<128x64xf32>
    %104 = vector.extract_strided_slice %102 {offsets = [0, 0], sizes = [128, 64], strides = [1, 1]} : vector<128x96xf32> to vector<128x64xf32>
    %105 = arith.addf %103, %104 : vector<128x64xf32>
    %106 = vector.broadcast %73 : vector<1x64xf32> to vector<128x64xf32>
    %107 = arith.addf %105, %106 : vector<128x64xf32>
    %108 = arith.negf %107 : vector<128x64xf32>
    %109 = math.exp %108 : vector<128x64xf32>
    %cst_69 = arith.constant 1.000000e+00 : f32
    %110 = vector.broadcast %cst_69 : f32 to vector<128x64xf32>
    %111 = arith.addf %110, %109 : vector<128x64xf32>
    %112 = arith.divf %110, %111 : vector<128x64xf32>
    %113 = vector.extract_strided_slice %112 {offsets = [0, 0], sizes = [128, 32], strides = [1, 1]} : vector<128x64xf32> to vector<128x32xf32>
    %114 = vector.extract_strided_slice %112 {offsets = [0, 32], sizes = [128, 32], strides = [1, 1]} : vector<128x64xf32> to vector<128x32xf32>
    %115 = vector.extract_strided_slice %101 {offsets = [0, 64], sizes = [128, 32], strides = [1, 1]} : vector<128x96xf32> to vector<128x32xf32>
    %116 = vector.broadcast %75 : vector<1x32xf32> to vector<128x32xf32>
    %117 = arith.addf %115, %116 : vector<128x32xf32>
    %118 = vector.extract_strided_slice %102 {offsets = [0, 64], sizes = [128, 32], strides = [1, 1]} : vector<128x96xf32> to vector<128x32xf32>
    %119 = vector.broadcast %77 : vector<1x32xf32> to vector<128x32xf32>
    %120 = arith.addf %118, %119 : vector<128x32xf32>
    %121 = arith.mulf %113, %120 : vector<128x32xf32>
    %122 = arith.addf %117, %121 : vector<128x32xf32>
    %123 = math.tanh %122 : vector<128x32xf32>
    %cst_70 = arith.constant 1.000000e+00 : f32
    %124 = vector.broadcast %cst_70 : f32 to vector<128x32xf32>
    %125 = arith.subf %124, %114 : vector<128x32xf32>
    %126 = arith.mulf %125, %123 : vector<128x32xf32>
    %127 = arith.mulf %114, %65 : vector<128x32xf32>
    %128 = arith.addf %126, %127 : vector<128x32xf32>
    %129 = arith.truncf %128 : vector<128x32xf32> to vector<128x32xbf16>
    %cst_71 = arith.constant dense<0.000000e+00> : vector<4x32xf32>
    %130 = tpu.matmul %2, %129, %cst_71 {dimension_numbers = #tpu.dot_dimension_numbers<[1], [0], [0], [1], [0, 0, 1, 1], [], []>} : vector<4x128xbf16>, vector<128x32xbf16>, vector<4x32xf32> -> vector<4x32xf32>
    %c0_72 = arith.constant 0 : index
    %c0_73 = arith.constant 0 : index
    %131 = vector.load %arg12[%c0_72, %c0_73] : memref<1x32xf32, #tpu.memory_space<vmem>>, vector<1x32xf32>
    %132 = arith.truncf %4 : vector<4x32xf32> to vector<4x32xbf16>
    %c0_74 = arith.constant 0 : index
    %c0_75 = arith.constant 0 : index
    %c0_76 = arith.constant 0 : index
    %133 = vector.load %arg11[%c0_74, %c0_75, %c0_76] : memref<3x32x32xbf16, #tpu.memory_space<vmem>>, vector<1x32x32xbf16>
    %134 = vector.shape_cast %133 : vector<1x32x32xbf16> to vector<32x32xbf16>
    %cst_77 = arith.constant dense<0.000000e+00> : vector<4x32xf32>
    %135 = tpu.matmul %132, %134, %cst_77 {dimension_numbers = #tpu.dot_dimension_numbers<[1], [0], [0], [1], [0, 0, 1, 1], [], []>} : vector<4x32xbf16>, vector<32x32xbf16>, vector<4x32xf32> -> vector<4x32xf32>
    %136 = vector.broadcast %131 : vector<1x32xf32> to vector<4x32xf32>
    %137 = arith.addf %136, %135 : vector<4x32xf32>
    %138 = arith.truncf %67 : vector<4x32xf32> to vector<4x32xbf16>
    %c1_78 = arith.constant 1 : index
    %c0_79 = arith.constant 0 : index
    %c0_80 = arith.constant 0 : index
    %139 = vector.load %arg11[%c1_78, %c0_79, %c0_80] : memref<3x32x32xbf16, #tpu.memory_space<vmem>>, vector<1x32x32xbf16>
    %140 = vector.shape_cast %139 : vector<1x32x32xbf16> to vector<32x32xbf16>
    %cst_81 = arith.constant dense<0.000000e+00> : vector<4x32xf32>
    %141 = tpu.matmul %138, %140, %cst_81 {dimension_numbers = #tpu.dot_dimension_numbers<[1], [0], [0], [1], [0, 0, 1, 1], [], []>} : vector<4x32xbf16>, vector<32x32xbf16>, vector<4x32xf32> -> vector<4x32xf32>
    %142 = arith.addf %137, %141 : vector<4x32xf32>
    %143 = arith.truncf %130 : vector<4x32xf32> to vector<4x32xbf16>
    %c2_82 = arith.constant 2 : index
    %c0_83 = arith.constant 0 : index
    %c0_84 = arith.constant 0 : index
    %144 = vector.load %arg11[%c2_82, %c0_83, %c0_84] : memref<3x32x32xbf16, #tpu.memory_space<vmem>>, vector<1x32x32xbf16>
    %145 = vector.shape_cast %144 : vector<1x32x32xbf16> to vector<32x32xbf16>
    %cst_85 = arith.constant dense<0.000000e+00> : vector<4x32xf32>
    %146 = tpu.matmul %143, %145, %cst_85 {dimension_numbers = #tpu.dot_dimension_numbers<[1], [0], [0], [1], [0, 0, 1, 1], [], []>} : vector<4x32xbf16>, vector<32x32xbf16>, vector<4x32xf32> -> vector<4x32xf32>
    %147 = arith.addf %142, %146 : vector<4x32xf32>
    %cst_86 = arith.constant 0.000000e+00 : f32
    %148 = vector.broadcast %cst_86 : f32 to vector<4x32xf32>
    %149 = arith.maximumf %147, %148 : vector<4x32xf32>
    %150 = arith.truncf %149 : vector<4x32xf32> to vector<4x32xbf16>
    %c0_87 = arith.constant 0 : index
    %c0_88 = arith.constant 0 : index
    %151 = vector.load %arg13[%c0_87, %c0_88] : memref<32x1xbf16, #tpu.memory_space<vmem>>, vector<32x1xbf16>
    %cst_89 = arith.constant dense<0.000000e+00> : vector<4x1xf32>
    %152 = tpu.matmul %150, %151, %cst_89 {dimension_numbers = #tpu.dot_dimension_numbers<[1], [0], [0], [1], [0, 0, 1, 1], [], []>} : vector<4x32xbf16>, vector<32x1xbf16>, vector<4x1xf32> -> vector<4x1xf32>
    %c0_90 = arith.constant 0 : index
    %c0_91 = arith.constant 0 : index
    %153 = vector.load %arg14[%c0_90, %c0_91] : memref<1x1xf32, #tpu.memory_space<vmem>>, vector<1x1xf32>
    %154 = vector.broadcast %153 : vector<1x1xf32> to vector<4x1xf32>
    %155 = arith.addf %152, %154 : vector<4x1xf32>
    %c0_92 = arith.constant 0 : index
    %c0_93 = arith.constant 0 : index
    %156 = vector.load %arg15[%c0_92, %c0_93] : memref<4x1xf32, #tpu.memory_space<vmem>>, vector<4x1xf32>
    tpu.vector_store %arg15[%c0_92, %c0_93], %155 {strides = array<i32>} : memref<4x1xf32, #tpu.memory_space<vmem>>, vector<4x1xf32>,
    %c0_94 = arith.constant 0 : index
    %c0_95 = arith.constant 0 : index
    %157 = vector.load %arg16[%c0_94, %c0_95] : memref<4x96xf32, #tpu.memory_space<vmem>>, vector<4x32xf32>
    tpu.vector_store %arg16[%c0_94, %c0_95], %4 {strides = array<i32>} : memref<4x96xf32, #tpu.memory_space<vmem>>, vector<4x32xf32>,
    %c0_96 = arith.constant 0 : index
    %c32 = arith.constant 32 : index
    %158 = vector.load %arg16[%c0_96, %c32] : memref<4x96xf32, #tpu.memory_space<vmem>>, vector<4x32xf32>
    tpu.vector_store %arg16[%c0_96, %c32], %67 {strides = array<i32>} : memref<4x96xf32, #tpu.memory_space<vmem>>, vector<4x32xf32>,
    %c0_97 = arith.constant 0 : index
    %c64 = arith.constant 64 : index
    %159 = vector.load %arg16[%c0_97, %c64] : memref<4x96xf32, #tpu.memory_space<vmem>>, vector<4x32xf32>
    tpu.vector_store %arg16[%c0_97, %c64], %130 {strides = array<i32>} : memref<4x96xf32, #tpu.memory_space<vmem>>, vector<4x32xf32>,
    return
  }
  func.func @transform_0(%arg0: i32) -> (i32, i32) {
    %c0_i32 = arith.constant 0 : i32
    %c0_i32_0 = arith.constant 0 : i32
    %c0_i32_1 = arith.constant 0 : i32
    return %c0_i32, %c0_i32_0 : i32, i32
  }
  func.func @transform_1(%arg0: i32) -> (i32, i32) {
    %c0_i32 = arith.constant 0 : i32
    %c0_i32_0 = arith.constant 0 : i32
    %c0_i32_1 = arith.constant 0 : i32
    return %c0_i32, %c0_i32_0 : i32, i32
  }
  func.func @transform_2(%arg0: i32) -> (i32, i32) {
    %c0_i32 = arith.constant 0 : i32
    %c0_i32_0 = arith.constant 0 : i32
    %c0_i32_1 = arith.constant 0 : i32
    return %c0_i32, %c0_i32_0 : i32, i32
  }
  func.func @transform_3(%arg0: i32) -> (i32, i32, i32) {
    %c0_i32 = arith.constant 0 : i32
    %c0_i32_0 = arith.constant 0 : i32
    %c0_i32_1 = arith.constant 0 : i32
    %c0_i32_2 = arith.constant 0 : i32
    return %c0_i32, %c0_i32_0, %c0_i32_1 : i32, i32, i32
  }
  func.func @transform_4(%arg0: i32) -> (i32, i32, i32) {
    %c0_i32 = arith.constant 0 : i32
    %c0_i32_0 = arith.constant 0 : i32
    %c0_i32_1 = arith.constant 0 : i32
    %c0_i32_2 = arith.constant 0 : i32
    return %c0_i32, %c0_i32_0, %c0_i32_1 : i32, i32, i32
  }
  func.func @transform_5(%arg0: i32) -> (i32, i32, i32) {
    %c0_i32 = arith.constant 0 : i32
    %c0_i32_0 = arith.constant 0 : i32
    %c0_i32_1 = arith.constant 0 : i32
    %c0_i32_2 = arith.constant 0 : i32
    return %c0_i32, %c0_i32_0, %c0_i32_1 : i32, i32, i32
  }
  func.func @transform_6(%arg0: i32) -> (i32, i32, i32) {
    %c0_i32 = arith.constant 0 : i32
    %c0_i32_0 = arith.constant 0 : i32
    %c0_i32_1 = arith.constant 0 : i32
    %c0_i32_2 = arith.constant 0 : i32
    return %c0_i32, %c0_i32_0, %c0_i32_1 : i32, i32, i32
  }
  func.func @transform_7(%arg0: i32) -> (i32, i32, i32) {
    %c0_i32 = arith.constant 0 : i32
    %c0_i32_0 = arith.constant 0 : i32
    %c0_i32_1 = arith.constant 0 : i32
    %c0_i32_2 = arith.constant 0 : i32
    return %c0_i32, %c0_i32_0, %c0_i32_1 : i32, i32, i32
  }
  func.func @transform_8(%arg0: i32) -> (i32, i32, i32) {
    %c0_i32 = arith.constant 0 : i32
    %c0_i32_0 = arith.constant 0 : i32
    %c0_i32_1 = arith.constant 0 : i32
    %c0_i32_2 = arith.constant 0 : i32
    return %c0_i32, %c0_i32_0, %c0_i32_1 : i32, i32, i32
  }
  func.func @transform_9(%arg0: i32) -> (i32, i32, i32) {
    %c0_i32 = arith.constant 0 : i32
    %c0_i32_0 = arith.constant 0 : i32
    %c0_i32_1 = arith.constant 0 : i32
    %c0_i32_2 = arith.constant 0 : i32
    return %c0_i32, %c0_i32_0, %c0_i32_1 : i32, i32, i32
  }
  func.func @transform_10(%arg0: i32) -> (i32, i32, i32) {
    %c0_i32 = arith.constant 0 : i32
    %c0_i32_0 = arith.constant 0 : i32
    %c0_i32_1 = arith.constant 0 : i32
    %c0_i32_2 = arith.constant 0 : i32
    return %c0_i32, %c0_i32_0, %c0_i32_1 : i32, i32, i32
  }
  func.func @transform_11(%arg0: i32) -> (i32, i32) {
    %c0_i32 = arith.constant 0 : i32
    %c0_i32_0 = arith.constant 0 : i32
    %c0_i32_1 = arith.constant 0 : i32
    return %c0_i32, %c0_i32_0 : i32, i32
  }
  func.func @transform_12(%arg0: i32) -> (i32, i32) {
    %c0_i32 = arith.constant 0 : i32
    %c0_i32_0 = arith.constant 0 : i32
    %c0_i32_1 = arith.constant 0 : i32
    return %c0_i32, %c0_i32_0 : i32, i32
  }
  func.func @transform_13(%arg0: i32) -> (i32, i32) {
    %c0_i32 = arith.constant 0 : i32
    %c0_i32_0 = arith.constant 0 : i32
    %c0_i32_1 = arith.constant 0 : i32
    return %c0_i32, %c0_i32_0 : i32, i32
  }
  func.func @transform_14(%arg0: i32) -> (i32, i32) {
    %c0_i32 = arith.constant 0 : i32
    %c0_i32_0 = arith.constant 0 : i32
    %c0_i32_1 = arith.constant 0 : i32
    return %c0_i32, %c0_i32_0 : i32, i32
  }
  func.func @transform_15(%arg0: i32) -> (i32, i32) {
    %c0_i32 = arith.constant 0 : i32
    %c0_i32_0 = arith.constant 0 : i32
    %c0_i32_1 = arith.constant 0 : i32
    return %c0_i32, %c0_i32_0 : i32, i32
  }
}

</mosaic_0001>

<llo_original>
// kernel: tpu_custom_call.1
$region0: #{tpu_custom_call.1}
  #allocation0 [shape = 'u32[]', space=smem, size = 0x4, offset = 0x4, fixed_abs, tag = 'smem constant byte address 0x4 - core index']
  #allocation1 [shape = 'u32[144,128]{1,0:T(1,128)}', space=vmem, size = 0x12000, scoped, tag = 'internal scratch']
  #allocation2 [shape = 'f32[1,1]{1,0:T(1,128)S(1)}', space=vmem, size = 0x200, scoped, tag = 'scoped memory for tpu_custom_call.1']
  %s0 = inlined_call_operand.vmem [shape: f32[128,32], index: 0, kind: input, shape index: {}]
  %s1 = inlined_call_operand.vmem [shape: bf16[384,128], index: 1, kind: input, shape index: {}]
  %s2 = inlined_call_operand.vmem [shape: bf16[4,128], index: 2, kind: input, shape index: {}]
  %s3 = inlined_call_operand.vmem [shape: bf16[6,32,32], index: 3, kind: input, shape index: {}]
  %s4 = inlined_call_operand.vmem [shape: f32[2,128,32], index: 4, kind: input, shape index: {}]
  %s5 = inlined_call_operand.vmem [shape: bf16[2,32,96], index: 5, kind: input, shape index: {}]
  %s6 = inlined_call_operand.vmem [shape: bf16[2,32,96], index: 6, kind: input, shape index: {}]
  %s7 = inlined_call_operand.vmem [shape: f32[2,1,64], index: 7, kind: input, shape index: {}]
  %s8 = inlined_call_operand.vmem [shape: f32[2,1,32], index: 8, kind: input, shape index: {}]
  %s9 = inlined_call_operand.vmem [shape: f32[2,1,32], index: 9, kind: input, shape index: {}]
  %s10 = inlined_call_operand.vmem [shape: bf16[3,32,32], index: 10, kind: input, shape index: {}]
  %s11 = inlined_call_operand.vmem [shape: f32[1,32], index: 11, kind: input, shape index: {}]
  %s12 = inlined_call_operand.vmem [shape: bf16[32,1], index: 12, kind: input, shape index: {}]
  %s13 = inlined_call_operand.<no memory space> [shape: f32[1,1], index: 13, kind: input, shape index: {}]
  %s14 = inlined_call_operand.vmem [shape: f32[4,1], index: 14, kind: output, shape index: {0}]
  %s15 = inlined_call_operand.hbm [shape: f32[4,96], index: 15, kind: output, shape index: {1}]
  %16 = xla_tuple %s14, %s15
  %s17 = sld [smem:[#allocation0]]
  $region74: #{tpu_custom_call.1} parent=0
    _
  %s19 = ssub.s32 1, %s17
  %s20 = scalar_select 0, %s19, %s17
  %v21 = vstv %s13
  %22 = vst [vmem:[#allocation2] sm:$0x1] %v21
  $region1: #{tpu_custom_call.1} parent=0
    #allocation3 [shape = 'u8[2048]{0}', space=vmem, size = 0x800, scoped, tag = 'output window, operand 1, single buffered']
    #allocation4 [shape = 's32[1]{0}', space=sflag, size = 0x4, scoped, tag = 'scoped memory for tpu_custom_call.1']
    %23 = vsyncpa [#allocation4], 0
    // Predicated region
    $region2: #{tpu_custom_call.1} parent=1 // pred_check
      _
    $region3: #{tpu_custom_call.1} parent=1 // pred_check_branch
      %25 = sbr.rel (0) target = $region5
    $region4: #{tpu_custom_call.1} parent=1 // pred_region
      _
    $region5: #{tpu_custom_call.1} parent=1 // pred_fallthru
      _
    // Predicated region
    $region6: #{tpu_custom_call.1} parent=1 // pred_check
      _
    $region7: #{tpu_custom_call.1} parent=1 // pred_check_branch
      %27 = sbr.rel (0) target = $region9
    $region8: #{tpu_custom_call.1} parent=1 // pred_region
      _
    $region9: #{tpu_custom_call.1} parent=1 // pred_fallthru
      _
    // Predicated region
    $region10: #{tpu_custom_call.1} parent=1 // pred_check
      _
    $region11: #{tpu_custom_call.1} parent=1 // pred_check_branch
      %29 = sbr.rel (0) target = $region13
    $region12: #{tpu_custom_call.1} parent=1 // pred_region
      _
    $region13: #{tpu_custom_call.1} parent=1 // pred_fallthru
      _
    // Predicated region
    $region14: #{tpu_custom_call.1} parent=1 // pred_check
      _
    $region15: #{tpu_custom_call.1} parent=1 // pred_check_branch
      %31 = sbr.rel (0) target = $region17
    $region16: #{tpu_custom_call.1} parent=1 // pred_region
      _
    $region17: #{tpu_custom_call.1} parent=1 // pred_fallthru
      _
    // Predicated region
    $region18: #{tpu_custom_call.1} parent=1 // pred_check
      _
    $region19: #{tpu_custom_call.1} parent=1 // pred_check_branch
      %33 = sbr.rel (0) target = $region21
    $region20: #{tpu_custom_call.1} parent=1 // pred_region
      _
    $region21: #{tpu_custom_call.1} parent=1 // pred_fallthru
      _
    // Predicated region
    $region22: #{tpu_custom_call.1} parent=1 // pred_check
      _
    $region23: #{tpu_custom_call.1} parent=1 // pred_check_branch
      %35 = sbr.rel (0) target = $region25
    $region24: #{tpu_custom_call.1} parent=1 // pred_region
      _
    $region25: #{tpu_custom_call.1} parent=1 // pred_fallthru
      _
    // Predicated region
    $region26: #{tpu_custom_call.1} parent=1 // pred_check
      _
    $region27: #{tpu_custom_call.1} parent=1 // pred_check_branch
      %37 = sbr.rel (0) target = $region29
    $region28: #{tpu_custom_call.1} parent=1 // pred_region
      _
    $region29: #{tpu_custom_call.1} parent=1 // pred_fallthru
      _
    // Predicated region
    $region30: #{tpu_custom_call.1} parent=1 // pred_check
      _
    $region31: #{tpu_custom_call.1} parent=1 // pred_check_branch
      %39 = sbr.rel (0) target = $region33
    $region32: #{tpu_custom_call.1} parent=1 // pred_region
      _
    $region33: #{tpu_custom_call.1} parent=1 // pred_fallthru
      _
    // Predicated region
    $region34: #{tpu_custom_call.1} parent=1 // pred_check
      _
    $region35: #{tpu_custom_call.1} parent=1 // pred_check_branch
      %41 = sbr.rel (0) target = $region37
    $region36: #{tpu_custom_call.1} parent=1 // pred_region
      _
    $region37: #{tpu_custom_call.1} parent=1 // pred_fallthru
      _
    // Predicated region
    $region38: #{tpu_custom_call.1} parent=1 // pred_check
      _
    $region39: #{tpu_custom_call.1} parent=1 // pred_check_branch
      %43 = sbr.rel (0) target = $region41
    $region40: #{tpu_custom_call.1} parent=1 // pred_region
      _
    $region41: #{tpu_custom_call.1} parent=1 // pred_fallthru
      _
    // Predicated region
    $region42: #{tpu_custom_call.1} parent=1 // pred_check
      _
    $region43: #{tpu_custom_call.1} parent=1 // pred_check_branch
      %45 = sbr.rel (0) target = $region45
    $region44: #{tpu_custom_call.1} parent=1 // pred_region
      _
    $region45: #{tpu_custom_call.1} parent=1 // pred_fallthru
      _
    // Predicated region
    $region46: #{tpu_custom_call.1} parent=1 // pred_check
      _
    $region47: #{tpu_custom_call.1} parent=1 // pred_check_branch
      %47 = sbr.rel (0) target = $region49
    $region48: #{tpu_custom_call.1} parent=1 // pred_region
      _
    $region49: #{tpu_custom_call.1} parent=1 // pred_fallthru
      _
    // Predicated region
    $region50: #{tpu_custom_call.1} parent=1 // pred_check
      _
    $region51: #{tpu_custom_call.1} parent=1 // pred_check_branch
      %49 = sbr.rel (0) target = $region53
    $region52: #{tpu_custom_call.1} parent=1 // pred_region
      _
    $region53: #{tpu_custom_call.1} parent=1 // pred_fallthru
      _
    // Predicated region
    $region54: #{tpu_custom_call.1} parent=1 // pred_check
      _
    $region55: #{tpu_custom_call.1} parent=1 // pred_check_branch
      %51 = sbr.rel (0) target = $region57
    $region56: #{tpu_custom_call.1} parent=1 // pred_region
      _
    $region57: #{tpu_custom_call.1} parent=1 // pred_fallthru
      _
    %v53 = vld [vmem:[%s0] sm:$0xff]
    %v54 = vld [vmem:[%s0 + $0x8] sm:$0xff]
    %v55 = vld [vmem:[%s0 + $0x10] sm:$0xff]
    %v56 = vld [vmem:[%s0 + $0x18] sm:$0xff]
    %v57 = vld [vmem:[%s0 + $0x20] sm:$0xff]
    %v58 = vld [vmem:[%s0 + $0x28] sm:$0xff]
    %v59 = vld [vmem:[%s0 + $0x30] sm:$0xff]
    %v60 = vld [vmem:[%s0 + $0x38] sm:$0xff]
    %v61 = vld [vmem:[%s0 + $0x40] sm:$0xff]
    %v62 = vld [vmem:[%s0 + $0x48] sm:$0xff]
    %v63 = vld [vmem:[%s0 + $0x50] sm:$0xff]
    %v64 = vld [vmem:[%s0 + $0x58] sm:$0xff]
    %v65 = vld [vmem:[%s0 + $0x60] sm:$0xff]
    %v66 = vld [vmem:[%s0 + $0x68] sm:$0xff]
    %v67 = vld [vmem:[%s0 + $0x70] sm:$0xff]
    %v68 = vld [vmem:[%s0 + $0x78] sm:$0xff]
    %v69 = vld [vmem:[%s1] sm:$0xf]
    %v70 = vld [vmem:[%s1 + $0x4] sm:$0xf]
    %v71 = vld [vmem:[%s1 + $0x8] sm:$0xf]
    %v72 = vld [vmem:[%s1 + $0xc] sm:$0xf]
    %v73 = vld [vmem:[%s1 + $0x10] sm:$0xf]
    %v74 = vld [vmem:[%s1 + $0x14] sm:$0xf]
    %v75 = vld [vmem:[%s1 + $0x18] sm:$0xf]
    %v76 = vld [vmem:[%s1 + $0x1c] sm:$0xf]
    %v77 = vld [vmem:[%s1 + $0x20] sm:$0xf]
    %v78 = vld [vmem:[%s1 + $0x24] sm:$0xf]
    %v79 = vld [vmem:[%s1 + $0x28] sm:$0xf]
    %v80 = vld [vmem:[%s1 + $0x2c] sm:$0xf]
    %v81 = vld [vmem:[%s1 + $0x30] sm:$0xf]
    %v82 = vld [vmem:[%s1 + $0x34] sm:$0xf]
    %v83 = vld [vmem:[%s1 + $0x38] sm:$0xf]
    %v84 = vld [vmem:[%s1 + $0x3c] sm:$0xf]
    %v85 = vld [vmem:[%s1 + $0x40] sm:$0xf]
    %v86 = vld [vmem:[%s1 + $0x44] sm:$0xf]
    %v87 = vld [vmem:[%s1 + $0x48] sm:$0xf]
    %v88 = vld [vmem:[%s1 + $0x4c] sm:$0xf]
    %v89 = vld [vmem:[%s1 + $0x50] sm:$0xf]
    %v90 = vld [vmem:[%s1 + $0x54] sm:$0xf]
    %v91 = vld [vmem:[%s1 + $0x58] sm:$0xf]
    %v92 = vld [vmem:[%s1 + $0x5c] sm:$0xf]
    %v93 = vld [vmem:[%s1 + $0x60] sm:$0xf]
    %v94 = vld [vmem:[%s1 + $0x64] sm:$0xf]
    %v95 = vld [vmem:[%s1 + $0x68] sm:$0xf]
    %v96 = vld [vmem:[%s1 + $0x6c] sm:$0xf]
    %v97 = vld [vmem:[%s1 + $0x70] sm:$0xf]
    %v98 = vld [vmem:[%s1 + $0x74] sm:$0xf]
    %v99 = vld [vmem:[%s1 + $0x78] sm:$0xf]
    %v100 = vld [vmem:[%s1 + $0x7c] sm:$0xf]
    %v101 = vld [vmem:[%s1 + $0x80] sm:$0xf]
    %v102 = vld [vmem:[%s1 + $0x84] sm:$0xf]
    %v103 = vld [vmem:[%s1 + $0x88] sm:$0xf]
    %v104 = vld [vmem:[%s1 + $0x8c] sm:$0xf]
    %v105 = vld [vmem:[%s1 + $0x90] sm:$0xf]
    %v106 = vld [vmem:[%s1 + $0x94] sm:$0xf]
    %v107 = vld [vmem:[%s1 + $0x98] sm:$0xf]
    %v108 = vld [vmem:[%s1 + $0x9c] sm:$0xf]
    %v109 = vld [vmem:[%s1 + $0xa0] sm:$0xf]
    %v110 = vld [vmem:[%s1 + $0xa4] sm:$0xf]
    %v111 = vld [vmem:[%s1 + $0xa8] sm:$0xf]
    %v112 = vld [vmem:[%s1 + $0xac] sm:$0xf]
    %v113 = vld [vmem:[%s1 + $0xb0] sm:$0xf]
    %v114 = vld [vmem:[%s1 + $0xb4] sm:$0xf]
    %v115 = vld [vmem:[%s1 + $0xb8] sm:$0xf]
    %v116 = vld [vmem:[%s1 + $0xbc] sm:$0xf]
    %v117 = vld [vmem:[%s2] sm:$0x3]
    %v118 = vpack.c.bf16 %v54, %v53
    %v119 = vpack.c.bf16 %v56, %v55
    %v120 = vpack.c.bf16 %v58, %v57
    %v121 = vpack.c.bf16 %v60, %v59
    %v122 = vpack.c.bf16 %v62, %v61
    %v123 = vpack.c.bf16 %v64, %v63
    %v124 = vpack.c.bf16 %v66, %v65
    %v125 = vpack.c.bf16 %v68, %v67
    %126 = vmatprep.subr.bf16.mxu0 0
    %127 = vmatpush1.bf16.msra.mxu0 %v118
    %128 = vmatprep.subr.bf16.mxu0 0
    %129 = vmatpush1.bf16.msra.mxu0 %v119
    %130 = vmatprep.subr.bf16.mxu0 0
    %131 = vmatpush1.bf16.msra.mxu0 %v120
    %132 = vmatprep.subr.bf16.mxu0 0
    %133 = vmatpush1.bf16.msra.mxu0 %v121
    %134 = vmatprep.subr.bf16.mxu0 0
    %135 = vmatpush1.bf16.msra.mxu0 %v122
    %136 = vmatprep.subr.bf16.mxu0 0
    %137 = vmatpush1.bf16.msra.mxu0 %v123
    %138 = vmatprep.subr.bf16.mxu0 0
    %139 = vmatpush1.bf16.msra.mxu0 %v124
    %140 = vmatprep.subr.bf16.mxu0 0
    %141 = vmatpush1.bf16.msra.mxu0 %v125
    %142 = vmatprep.subr.bf16.mxu0 0
    %143 = vmatpush1.bf16.msra.mxu0 0
    %144 = vmatprep.subr.bf16.mxu0 0
    %145 = vmatpush1.bf16.msra.mxu0 0
    %146 = vmatprep.subr.bf16.mxu0 0
    %147 = vmatpush1.bf16.msra.mxu0 0
    %148 = vmatprep.subr.bf16.mxu0 0
    %149 = vmatpush1.bf16.msra.mxu0 0
    %150 = vmatprep.subr.bf16.mxu0 0
    %151 = vmatpush1.bf16.msra.mxu0 0
    %152 = vmatprep.subr.bf16.mxu0 0
    %153 = vmatpush1.bf16.msra.mxu0 0
    %154 = vmatprep.subr.bf16.mxu0 0
    %155 = vmatpush1.bf16.msra.mxu0 0
    %156 = vmatprep.subr.bf16.mxu0 0
    %157 = vmatpush1.bf16.msra.mxu0 0
    %158 = vmatprep.mubr.bf16.mxu0 0
    %159 = vmatmul.mubr.bf16.gmra.mrb[0].mxu0 %v117
    %v160 = vpop.f32.mrb[0].mxu0
    %v161 = vadd.f32 0.0, %v160
    %v162 = vpop.f32.mrb[0].mxu0
    %v163 = vpop.f32.mrb[0].mxu0
    %v164 = vpop.f32.mrb[0].mxu0
    %165 = vdwg.mxu0
    %v166 = vld [vmem:[%s5] sm:$0xf]
    %v167 = vld [vmem:[%s5 + $0x4] sm:$0xf]
    %v168 = vld [vmem:[%s5 + $0x8] sm:$0xf]
    %v169 = vld [vmem:[%s5 + $0xc] sm:$0xf]
    %v170 = vld [vmem:[%s6] sm:$0xf]
    %v171 = vld [vmem:[%s6 + $0x4] sm:$0xf]
    %v172 = vld [vmem:[%s6 + $0x8] sm:$0xf]
    %v173 = vld [vmem:[%s6 + $0xc] sm:$0xf]
    %v174 = vld [vmem:[%s7] sm:$0x1]
    %v175 = vld [vmem:[%s8] sm:$0x1]
    %v176 = vld [vmem:[%s9] sm:$0x1]
    %v177 = vld [vmem:[%s4] sm:$0xff]
    %v178 = vld [vmem:[%s4 + $0x8] sm:$0xff]
    %v179 = vld [vmem:[%s4 + $0x10] sm:$0xff]
    %v180 = vld [vmem:[%s4 + $0x18] sm:$0xff]
    %v181 = vld [vmem:[%s4 + $0x20] sm:$0xff]
    %v182 = vld [vmem:[%s4 + $0x28] sm:$0xff]
    %v183 = vld [vmem:[%s4 + $0x30] sm:$0xff]
    %v184 = vld [vmem:[%s4 + $0x38] sm:$0xff]
    %v185 = vld [vmem:[%s4 + $0x40] sm:$0xff]
    %v186 = vld [vmem:[%s4 + $0x48] sm:$0xff]
    %v187 = vld [vmem:[%s4 + $0x50] sm:$0xff]
    %v188 = vld [vmem:[%s4 + $0x58] sm:$0xff]
    %v189 = vld [vmem:[%s4 + $0x60] sm:$0xff]
    %v190 = vld [vmem:[%s4 + $0x68] sm:$0xff]
    %v191 = vld [vmem:[%s4 + $0x70] sm:$0xff]
    %v192 = vld [vmem:[%s4 + $0x78] sm:$0xff]
    %v241 = vunpack.c.l.b16 %v69
    %v242 = vunpack.c.l.b16 %v70
    %v243 = vunpack.c.l.b16 %v71
    %v244 = vunpack.c.l.b16 %v72
    %v245 = vunpack.c.l.b16 %v73
    %v246 = vunpack.c.l.b16 %v74
    %v247 = vunpack.c.l.b16 %v75
    %v248 = vunpack.c.l.b16 %v76
    %v249 = vunpack.c.l.b16 %v77
    %v250 = vunpack.c.l.b16 %v78
    %v251 = vunpack.c.l.b16 %v79
    %v252 = vunpack.c.l.b16 %v80
    %v253 = vunpack.c.l.b16 %v81
    %v254 = vunpack.c.l.b16 %v82
    %v255 = vunpack.c.l.b16 %v83
    %v256 = vunpack.c.l.b16 %v84
    %v257 = vunpack.c.l.b16 %v85
    %v258 = vunpack.c.l.b16 %v86
    %v259 = vunpack.c.l.b16 %v87
    %v260 = vunpack.c.l.b16 %v88
    %v261 = vunpack.c.l.b16 %v89
    %v262 = vunpack.c.l.b16 %v90
    %v263 = vunpack.c.l.b16 %v91
    %v264 = vunpack.c.l.b16 %v92
    %v265 = vunpack.c.l.b16 %v93
    %v266 = vunpack.c.l.b16 %v94
    %v267 = vunpack.c.l.b16 %v95
    %v268 = vunpack.c.l.b16 %v96
    %v269 = vunpack.c.l.b16 %v97
    %v270 = vunpack.c.l.b16 %v98
    %v271 = vunpack.c.l.b16 %v99
    %v272 = vunpack.c.l.b16 %v100
    %v273 = vunpack.c.l.b16 %v101
    %v274 = vunpack.c.l.b16 %v102
    %v275 = vunpack.c.l.b16 %v103
    %v276 = vunpack.c.l.b16 %v104
    %v277 = vunpack.c.l.b16 %v105
    %v278 = vunpack.c.l.b16 %v106
    %v279 = vunpack.c.l.b16 %v107
    %v280 = vunpack.c.l.b16 %v108
    %v281 = vunpack.c.l.b16 %v109
    %v282 = vunpack.c.l.b16 %v110
    %v283 = vunpack.c.l.b16 %v111
    %v284 = vunpack.c.l.b16 %v112
    %v285 = vunpack.c.l.b16 %v113
    %v286 = vunpack.c.l.b16 %v114
    %v287 = vunpack.c.l.b16 %v115
    %v288 = vunpack.c.l.b16 %v116
    %v289 = vpack.c.b16 %v242, %v241
    %v290 = vpack.c.b16 %v244, %v243
    %v291 = vpack.c.b16 %v246, %v245
    %v292 = vpack.c.b16 %v248, %v247
    %v293 = vpack.c.b16 %v250, %v249
    %v294 = vpack.c.b16 %v252, %v251
    %v295 = vpack.c.b16 %v254, %v253
    %v296 = vpack.c.b16 %v256, %v255
    %v297 = vpack.c.b16 %v258, %v257
    %v298 = vpack.c.b16 %v260, %v259
    %v299 = vpack.c.b16 %v262, %v261
    %v300 = vpack.c.b16 %v264, %v263
    %v301 = vpack.c.b16 %v266, %v265
    %v302 = vpack.c.b16 %v268, %v267
    %v303 = vpack.c.b16 %v270, %v269
    %v304 = vpack.c.b16 %v272, %v271
    %v305 = vpack.c.b16 %v274, %v273
    %v306 = vpack.c.b16 %v276, %v275
    %v307 = vpack.c.b16 %v278, %v277
    %v308 = vpack.c.b16 %v280, %v279
    %v309 = vpack.c.b16 %v282, %v281
    %v310 = vpack.c.b16 %v284, %v283
    %v311 = vpack.c.b16 %v286, %v285
    %v312 = vpack.c.b16 %v288, %v287
    %337 = vmatprep.subr.bf16.mxu0 0
    %338 = vmatpush1.bf16.msra.mxu0 %v118
    %339 = vmatprep.subr.bf16.mxu0 0
    %340 = vmatpush1.bf16.msra.mxu0 %v119
    %341 = vmatprep.subr.bf16.mxu0 0
    %342 = vmatpush1.bf16.msra.mxu0 %v120
    %343 = vmatprep.subr.bf16.mxu0 0
    %344 = vmatpush1.bf16.msra.mxu0 %v121
    %345 = vmatprep.subr.bf16.mxu0 0
    %346 = vmatpush1.bf16.msra.mxu0 %v122
    %347 = vmatprep.subr.bf16.mxu0 0
    %348 = vmatpush1.bf16.msra.mxu0 %v123
    %349 = vmatprep.subr.bf16.mxu0 0
    %350 = vmatpush1.bf16.msra.mxu0 %v124
    %351 = vmatprep.subr.bf16.mxu0 0
    %352 = vmatpush1.bf16.msra.mxu0 %v125
    %353 = vmatprep.subr.bf16.mxu0 0
    %354 = vmatpush1.bf16.msra.mxu0 0
    %355 = vmatprep.subr.bf16.mxu0 0
    %356 = vmatpush1.bf16.msra.mxu0 0
    %357 = vmatprep.subr.bf16.mxu0 0
    %358 = vmatpush1.bf16.msra.mxu0 0
    %359 = vmatprep.subr.bf16.mxu0 0
    %360 = vmatpush1.bf16.msra.mxu0 0
    %361 = vmatprep.subr.bf16.mxu0 0
    %362 = vmatpush1.bf16.msra.mxu0 0
    %363 = vmatprep.subr.bf16.mxu0 0
    %364 = vmatpush1.bf16.msra.mxu0 0
    %365 = vmatprep.subr.bf16.mxu0 0
    %366 = vmatpush1.bf16.msra.mxu0 0
    %367 = vmatprep.subr.bf16.mxu0 0
    %368 = vmatpush1.bf16.msra.mxu0 0
    %369 = vmatprep.mubr.bf16.mxu0 0
    %370 = vmatmul.mubr.bf16.gmra.mrb[0].mxu0 %v289
    %v371 = vpop.f32.mrb[0].mxu0
    %v372 = vadd.f32 0.0, %v371
    %v373 = vpop.f32.mrb[0].mxu0
    %v374 = vpop.f32.mrb[0].mxu0
    %v375 = vadd.f32 0.0, %v374
    %v376 = vpop.f32.mrb[0].mxu0
    %377 = vmatprep.mubr.bf16.mxu0 0
    %378 = vmatmul.mubr.bf16.gmra.mrb[0].mxu0 %v290
    %v379 = vpop.f32.mrb[0].mxu0
    %v380 = vadd.f32 0.0, %v379
    %v381 = vpop.f32.mrb[0].mxu0
    %v382 = vpop.f32.mrb[0].mxu0
    %v383 = vadd.f32 0.0, %v382
    %v384 = vpop.f32.mrb[0].mxu0
    %385 = vmatprep.mubr.bf16.mxu0 0
    %386 = vmatmul.mubr.bf16.gmra.mrb[0].mxu0 %v291
    %v387 = vpop.f32.mrb[0].mxu0
    %v388 = vadd.f32 0.0, %v387
    %v389 = vpop.f32.mrb[0].mxu0
    %v390 = vpop.f32.mrb[0].mxu0
    %v391 = vadd.f32 0.0, %v390
    %v392 = vpop.f32.mrb[0].mxu0
    %393 = vmatprep.mubr.bf16.mxu0 0
    %394 = vmatmul.mubr.bf16.gmra.mrb[0].mxu0 %v292
    %v395 = vpop.f32.mrb[0].mxu0
    %v396 = vadd.f32 0.0, %v395
    %v397 = vpop.f32.mrb[0].mxu0
    %v398 = vpop.f32.mrb[0].mxu0
    %v399 = vadd.f32 0.0, %v398
    %v400 = vpop.f32.mrb[0].mxu0
    %401 = vmatprep.mubr.bf16.mxu0 0
    %402 = vmatmul.mubr.bf16.gmra.mrb[0].mxu0 %v293
    %v403 = vpop.f32.mrb[0].mxu0
    %v404 = vadd.f32 0.0, %v403
    %v405 = vpop.f32.mrb[0].mxu0
    %v406 = vpop.f32.mrb[0].mxu0
    %v407 = vadd.f32 0.0, %v406
    %v408 = vpop.f32.mrb[0].mxu0
    %409 = vmatprep.mubr.bf16.mxu0 0
    %410 = vmatmul.mubr.bf16.gmra.mrb[0].mxu0 %v294
    %v411 = vpop.f32.mrb[0].mxu0
    %v412 = vadd.f32 0.0, %v411
    %v413 = vpop.f32.mrb[0].mxu0
    %v414 = vpop.f32.mrb[0].mxu0
    %v415 = vadd.f32 0.0, %v414
    %v416 = vpop.f32.mrb[0].mxu0
    %417 = vmatprep.mubr.bf16.mxu0 0
    %418 = vmatmul.mubr.bf16.gmra.mrb[0].mxu0 %v295
    %v419 = vpop.f32.mrb[0].mxu0
    %v420 = vadd.f32 0.0, %v419
    %v421 = vpop.f32.mrb[0].mxu0
    %v422 = vpop.f32.mrb[0].mxu0
    %v423 = vadd.f32 0.0, %v422
    %v424 = vpop.f32.mrb[0].mxu0
    %425 = vmatprep.mubr.bf16.mxu0 0
    %426 = vmatmul.mubr.bf16.gmra.mrb[0].mxu0 %v296
    %v427 = vpop.f32.mrb[0].mxu0
    %v428 = vadd.f32 0.0, %v427
    %v429 = vpop.f32.mrb[0].mxu0
    %v430 = vpop.f32.mrb[0].mxu0
    %v431 = vadd.f32 0.0, %v430
    %v432 = vpop.f32.mrb[0].mxu0
    %433 = vmatprep.mubr.bf16.mxu0 0
    %434 = vmatmul.mubr.bf16.gmra.mrb[0].mxu0 %v297
    %v435 = vpop.f32.mrb[0].mxu0
    %v436 = vadd.f32 0.0, %v435
    %v437 = vpop.f32.mrb[0].mxu0
    %v438 = vpop.f32.mrb[0].mxu0
    %v439 = vadd.f32 0.0, %v438
    %v440 = vpop.f32.mrb[0].mxu0
    %441 = vmatprep.mubr.bf16.mxu0 0
    %442 = vmatmul.mubr.bf16.gmra.mrb[0].mxu0 %v298
    %v443 = vpop.f32.mrb[0].mxu0
    %v444 = vadd.f32 0.0, %v443
    %v445 = vpop.f32.mrb[0].mxu0
    %v446 = vpop.f32.mrb[0].mxu0
    %v447 = vadd.f32 0.0, %v446
    %v448 = vpop.f32.mrb[0].mxu0
    %449 = vmatprep.mubr.bf16.mxu0 0
    %450 = vmatmul.mubr.bf16.gmra.mrb[0].mxu0 %v299
    %v451 = vpop.f32.mrb[0].mxu0
    %v452 = vadd.f32 0.0, %v451
    %v453 = vpop.f32.mrb[0].mxu0
    %v454 = vpop.f32.mrb[0].mxu0
    %v455 = vadd.f32 0.0, %v454
    %v456 = vpop.f32.mrb[0].mxu0
    %457 = vmatprep.mubr.bf16.mxu0 0
    %458 = vmatmul.mubr.bf16.gmra.mrb[0].mxu0 %v300
    %v459 = vpop.f32.mrb[0].mxu0
    %v460 = vadd.f32 0.0, %v459
    %v461 = vpop.f32.mrb[0].mxu0
    %v462 = vpop.f32.mrb[0].mxu0
    %v463 = vadd.f32 0.0, %v462
    %v464 = vpop.f32.mrb[0].mxu0
    %465 = vmatprep.mubr.bf16.mxu0 0
    %466 = vmatmul.mubr.bf16.gmra.mrb[0].mxu0 %v301
    %v467 = vpop.f32.mrb[0].mxu0
    %v468 = vadd.f32 0.0, %v467
    %v469 = vpop.f32.mrb[0].mxu0
    %v470 = vpop.f32.mrb[0].mxu0
    %v471 = vadd.f32 0.0, %v470
    %v472 = vpop.f32.mrb[0].mxu0
    %473 = vmatprep.mubr.bf16.mxu0 0
    %474 = vmatmul.mubr.bf16.gmra.mrb[0].mxu0 %v302
    %v475 = vpop.f32.mrb[0].mxu0
    %v476 = vadd.f32 0.0, %v475
    %v477 = vpop.f32.mrb[0].mxu0
    %v478 = vpop.f32.mrb[0].mxu0
    %v479 = vadd.f32 0.0, %v478
    %v480 = vpop.f32.mrb[0].mxu0
    %481 = vmatprep.mubr.bf16.mxu0 0
    %482 = vmatmul.mubr.bf16.gmra.mrb[0].mxu0 %v303
    %v483 = vpop.f32.mrb[0].mxu0
    %v484 = vadd.f32 0.0, %v483
    %v485 = vpop.f32.mrb[0].mxu0
    %v486 = vpop.f32.mrb[0].mxu0
    %v487 = vadd.f32 0.0, %v486
    %v488 = vpop.f32.mrb[0].mxu0
    %489 = vmatprep.mubr.bf16.mxu0 0
    %490 = vmatmul.mubr.bf16.gmra.mrb[0].mxu0 %v304
    %v491 = vpop.f32.mrb[0].mxu0
    %v492 = vadd.f32 0.0, %v491
    %v493 = vpop.f32.mrb[0].mxu0
    %v494 = vpop.f32.mrb[0].mxu0
    %v495 = vadd.f32 0.0, %v494
    %v496 = vpop.f32.mrb[0].mxu0
    %497 = vmatprep.mubr.bf16.mxu0 0
    %498 = vmatmul.mubr.bf16.gmra.mrb[0].mxu0 %v305
    %v499 = vpop.f32.mrb[0].mxu0
    %v500 = vadd.f32 0.0, %v499
    %v501 = vpop.f32.mrb[0].mxu0
    %v502 = vpop.f32.mrb[0].mxu0
    %v503 = vadd.f32 0.0, %v502
    %v504 = vpop.f32.mrb[0].mxu0
    %505 = vmatprep.mubr.bf16.mxu0 0
    %506 = vmatmul.mubr.bf16.gmra.mrb[0].mxu0 %v306
    %v507 = vpop.f32.mrb[0].mxu0
    %v508 = vadd.f32 0.0, %v507
    %v509 = vpop.f32.mrb[0].mxu0
    %v510 = vpop.f32.mrb[0].mxu0
    %v511 = vadd.f32 0.0, %v510
    %v512 = vpop.f32.mrb[0].mxu0
    %513 = vmatprep.mubr.bf16.mxu0 0
    %514 = vmatmul.mubr.bf16.gmra.mrb[0].mxu0 %v307
    %v515 = vpop.f32.mrb[0].mxu0
    %v516 = vadd.f32 0.0, %v515
    %v517 = vpop.f32.mrb[0].mxu0
    %v518 = vpop.f32.mrb[0].mxu0
    %v519 = vadd.f32 0.0, %v518
    %v520 = vpop.f32.mrb[0].mxu0
    %521 = vmatprep.mubr.bf16.mxu0 0
    %522 = vmatmul.mubr.bf16.gmra.mrb[0].mxu0 %v308
    %v523 = vpop.f32.mrb[0].mxu0
    %v524 = vadd.f32 0.0, %v523
    %v525 = vpop.f32.mrb[0].mxu0
    %v526 = vpop.f32.mrb[0].mxu0
    %v527 = vadd.f32 0.0, %v526
    %v528 = vpop.f32.mrb[0].mxu0
    %529 = vmatprep.mubr.bf16.mxu0 0
    %530 = vmatmul.mubr.bf16.gmra.mrb[0].mxu0 %v309
    %v531 = vpop.f32.mrb[0].mxu0
    %v532 = vadd.f32 0.0, %v531
    %v533 = vpop.f32.mrb[0].mxu0
    %v534 = vpop.f32.mrb[0].mxu0
    %v535 = vadd.f32 0.0, %v534
    %v536 = vpop.f32.mrb[0].mxu0
    %537 = vmatprep.mubr.bf16.mxu0 0
    %538 = vmatmul.mubr.bf16.gmra.mrb[0].mxu0 %v310
    %v539 = vpop.f32.mrb[0].mxu0
    %v540 = vadd.f32 0.0, %v539
    %v541 = vpop.f32.mrb[0].mxu0
    %v542 = vpop.f32.mrb[0].mxu0
    %v543 = vadd.f32 0.0, %v542
    %v544 = vpop.f32.mrb[0].mxu0
    %545 = vmatprep.mubr.bf16.mxu0 0
    %546 = vmatmul.mubr.bf16.gmra.mrb[0].mxu0 %v311
    %v547 = vpop.f32.mrb[0].mxu0
    %v548 = vadd.f32 0.0, %v547
    %v549 = vpop.f32.mrb[0].mxu0
    %v550 = vpop.f32.mrb[0].mxu0
    %v551 = vadd.f32 0.0, %v550
    %v552 = vpop.f32.mrb[0].mxu0
    %553 = vmatprep.mubr.bf16.mxu0 0
    %554 = vmatmul.mubr.bf16.gmra.mrb[0].mxu0 %v312
    %v555 = vpop.f32.mrb[0].mxu0
    %v556 = vadd.f32 0.0, %v555
    %v557 = vpop.f32.mrb[0].mxu0
    %v558 = vpop.f32.mrb[0].mxu0
    %v559 = vadd.f32 0.0, %v558
    %v560 = vpop.f32.mrb[0].mxu0
    %561 = vdwg.mxu0
    %v562 = vpack.c.bf16 %v375, %v372
    %v563 = vpack.c.bf16 %v383, %v380
    %v564 = vpack.c.bf16 %v391, %v388
    %v565 = vpack.c.bf16 %v399, %v396
    %v566 = vpack.c.bf16 %v407, %v404
    %v567 = vpack.c.bf16 %v415, %v412
    %v568 = vpack.c.bf16 %v423, %v420
    %v569 = vpack.c.bf16 %v431, %v428
    %v570 = vld [vmem:[%s3] sm:$0xf]
    %v571 = vld [vmem:[%s3 + $0x4] sm:$0xf]
    %v572 = vld [vmem:[%s3 + $0x8] sm:$0xf]
    %v573 = vld [vmem:[%s3 + $0xc] sm:$0xf]
    %v578 = vunpack.c.l.b16 %v570
    %v579 = vunpack.c.l.b16 %v571
    %v580 = vunpack.c.l.b16 %v572
    %v581 = vunpack.c.l.b16 %v573
    %v582 = vpack.c.b16 %v579, %v578
    %v583 = vpack.c.b16 %v581, %v580
    %vm586 = vcmask 261120
    %v588 = vsel %vm586, %v562, 0
    %v591 = vsel %vm586, %v563, 0
    %v594 = vsel %vm586, %v564, 0
    %v597 = vsel %vm586, %v565, 0
    %v600 = vsel %vm586, %v566, 0
    %v603 = vsel %vm586, %v567, 0
    %v606 = vsel %vm586, %v568, 0
    %v609 = vsel %vm586, %v569, 0
    %611 = vmatprep.subr.bf16.mxu0 0
    %612 = vmatpush1.bf16.msra.mxu0 %v582
    %613 = vmatprep.subr.bf16.mxu0 0
    %614 = vmatpush1.bf16.msra.mxu0 %v583
    %615 = vmatprep.subr.bf16.mxu0 0
    %616 = vmatpush1.bf16.msra.mxu0 0
    %617 = vmatprep.subr.bf16.mxu0 0
    %618 = vmatpush1.bf16.msra.mxu0 0
    %619 = vmatprep.subr.bf16.mxu0 0
    %620 = vmatpush1.bf16.msra.mxu0 0
    %621 = vmatprep.subr.bf16.mxu0 0
    %622 = vmatpush1.bf16.msra.mxu0 0
    %623 = vmatprep.subr.bf16.mxu0 0
    %624 = vmatpush1.bf16.msra.mxu0 0
    %625 = vmatprep.subr.bf16.mxu0 0
    %626 = vmatpush1.bf16.msra.mxu0 0
    %627 = vmatprep.subr.bf16.mxu0 0
    %628 = vmatpush1.bf16.msra.mxu0 0
    %629 = vmatprep.subr.bf16.mxu0 0
    %630 = vmatpush1.bf16.msra.mxu0 0
    %631 = vmatprep.subr.bf16.mxu0 0
    %632 = vmatpush1.bf16.msra.mxu0 0
    %633 = vmatprep.subr.bf16.mxu0 0
    %634 = vmatpush1.bf16.msra.mxu0 0
    %635 = vmatprep.subr.bf16.mxu0 0
    %636 = vmatpush1.bf16.msra.mxu0 0
    %637 = vmatprep.subr.bf16.mxu0 0
    %638 = vmatpush1.bf16.msra.mxu0 0
    %639 = vmatprep.subr.bf16.mxu0 0
    %640 = vmatpush1.bf16.msra.mxu0 0
    %641 = vmatprep.subr.bf16.mxu0 0
    %642 = vmatpush1.bf16.msra.mxu0 0
    %643 = vmatprep.mubr.bf16.mxu0 0
    %644 = vmatmul.mubr.bf16.gmra.mrb[0].mxu0 %v588
    %v645 = vpop.f32.mrb[0].mxu0
    %v646 = vadd.f32 0.0, %v645
    %v647 = vpop.f32.mrb[0].mxu0
    %v648 = vpop.f32.mrb[0].mxu0
    %v649 = vadd.f32 0.0, %v648
    %v650 = vpop.f32.mrb[0].mxu0
    %651 = vmatprep.mubr.bf16.mxu0 0
    %652 = vmatmul.mubr.bf16.gmra.mrb[0].mxu0 %v591
    %v653 = vpop.f32.mrb[0].mxu0
    %v654 = vadd.f32 0.0, %v653
    %v655 = vpop.f32.mrb[0].mxu0
    %v656 = vpop.f32.mrb[0].mxu0
    %v657 = vadd.f32 0.0, %v656
    %v658 = vpop.f32.mrb[0].mxu0
    %659 = vmatprep.mubr.bf16.mxu0 0
    %660 = vmatmul.mubr.bf16.gmra.mrb[0].mxu0 %v594
    %v661 = vpop.f32.mrb[0].mxu0
    %v662 = vadd.f32 0.0, %v661
    %v663 = vpop.f32.mrb[0].mxu0
    %v664 = vpop.f32.mrb[0].mxu0
    %v665 = vadd.f32 0.0, %v664
    %v666 = vpop.f32.mrb[0].mxu0
    %667 = vmatprep.mubr.bf16.mxu0 0
    %668 = vmatmul.mubr.bf16.gmra.mrb[0].mxu0 %v597
    %v669 = vpop.f32.mrb[0].mxu0
    %v670 = vadd.f32 0.0, %v669
    %v671 = vpop.f32.mrb[0].mxu0
    %v672 = vpop.f32.mrb[0].mxu0
    %v673 = vadd.f32 0.0, %v672
    %v674 = vpop.f32.mrb[0].mxu0
    %675 = vmatprep.mubr.bf16.mxu0 0
    %676 = vmatmul.mubr.bf16.gmra.mrb[0].mxu0 %v600
    %v677 = vpop.f32.mrb[0].mxu0
    %v678 = vadd.f32 0.0, %v677
    %v679 = vpop.f32.mrb[0].mxu0
    %v680 = vpop.f32.mrb[0].mxu0
    %v681 = vadd.f32 0.0, %v680
    %v682 = vpop.f32.mrb[0].mxu0
    %683 = vmatprep.mubr.bf16.mxu0 0
    %684 = vmatmul.mubr.bf16.gmra.mrb[0].mxu0 %v603
    %v685 = vpop.f32.mrb[0].mxu0
    %v686 = vadd.f32 0.0, %v685
    %v687 = vpop.f32.mrb[0].mxu0
    %v688 = vpop.f32.mrb[0].mxu0
    %v689 = vadd.f32 0.0, %v688
    %v690 = vpop.f32.mrb[0].mxu0
    %691 = vmatprep.mubr.bf16.mxu0 0
    %692 = vmatmul.mubr.bf16.gmra.mrb[0].mxu0 %v606
    %v693 = vpop.f32.mrb[0].mxu0
    %v694 = vadd.f32 0.0, %v693
    %v695 = vpop.f32.mrb[0].mxu0
    %v696 = vpop.f32.mrb[0].mxu0
    %v697 = vadd.f32 0.0, %v696
    %v698 = vpop.f32.mrb[0].mxu0
    %699 = vmatprep.mubr.bf16.mxu0 0
    %700 = vmatmul.mubr.bf16.gmra.mrb[0].mxu0 %v609
    %v701 = vpop.f32.mrb[0].mxu0
    %v702 = vadd.f32 0.0, %v701
    %v703 = vpop.f32.mrb[0].mxu0
    %v704 = vpop.f32.mrb[0].mxu0
    %v705 = vadd.f32 0.0, %v704
    %v706 = vpop.f32.mrb[0].mxu0
    %707 = vdwg.mxu0
    %v708 = vadd.f32 %v177, %v646
    %v709 = vadd.f32 %v178, %v649
    %v710 = vadd.f32 %v179, %v654
    %v711 = vadd.f32 %v180, %v657
    %v712 = vadd.f32 %v181, %v662
    %v713 = vadd.f32 %v182, %v665
    %v714 = vadd.f32 %v183, %v670
    %v715 = vadd.f32 %v184, %v673
    %v716 = vadd.f32 %v185, %v678
    %v717 = vadd.f32 %v186, %v681
    %v718 = vadd.f32 %v187, %v686
    %v719 = vadd.f32 %v188, %v689
    %v720 = vadd.f32 %v189, %v694
    %v721 = vadd.f32 %v190, %v697
    %v722 = vadd.f32 %v191, %v702
    %v723 = vadd.f32 %v192, %v705
    %v724 = vpack.c.bf16 %v439, %v436
    %v725 = vpack.c.bf16 %v447, %v444
    %v726 = vpack.c.bf16 %v455, %v452
    %v727 = vpack.c.bf16 %v463, %v460
    %v728 = vpack.c.bf16 %v471, %v468
    %v729 = vpack.c.bf16 %v479, %v476
    %v730 = vpack.c.bf16 %v487, %v484
    %v731 = vpack.c.bf16 %v495, %v492
    %s732 = scalar_lea.vmem %s3, 16
    %v733 = vld [vmem:[%s732] sm:$0xf]
    %v734 = vld [vmem:[%s732 + $0x4] sm:$0xf]
    %v735 = vld [vmem:[%s732 + $0x8] sm:$0xf]
    %v736 = vld [vmem:[%s732 + $0xc] sm:$0xf]
    %v741 = vunpack.c.l.b16 %v733
    %v742 = vunpack.c.l.b16 %v734
    %v743 = vunpack.c.l.b16 %v735
    %v744 = vunpack.c.l.b16 %v736
    %v745 = vpack.c.b16 %v742, %v741
    %v746 = vpack.c.b16 %v744, %v743
    %v750 = vsel %vm586, %v724, 0
    %v753 = vsel %vm586, %v725, 0
    %v756 = vsel %vm586, %v726, 0
    %v759 = vsel %vm586, %v727, 0
    %v762 = vsel %vm586, %v728, 0
    %v765 = vsel %vm586, %v729, 0
    %v768 = vsel %vm586, %v730, 0
    %v771 = vsel %vm586, %v731, 0
    %773 = vmatprep.subr.bf16.mxu0 0
    %774 = vmatpush1.bf16.msra.mxu0 %v745
    %775 = vmatprep.subr.bf16.mxu0 0
    %776 = vmatpush1.bf16.msra.mxu0 %v746
    %777 = vmatprep.subr.bf16.mxu0 0
    %778 = vmatpush1.bf16.msra.mxu0 0
    %779 = vmatprep.subr.bf16.mxu0 0
    %780 = vmatpush1.bf16.msra.mxu0 0
    %781 = vmatprep.subr.bf16.mxu0 0
    %782 = vmatpush1.bf16.msra.mxu0 0
    %783 = vmatprep.subr.bf16.mxu0 0
    %784 = vmatpush1.bf16.msra.mxu0 0
    %785 = vmatprep.subr.bf16.mxu0 0
    %786 = vmatpush1.bf16.msra.mxu0 0
    %787 = vmatprep.subr.bf16.mxu0 0
    %788 = vmatpush1.bf16.msra.mxu0 0
    %789 = vmatprep.subr.bf16.mxu0 0
    %790 = vmatpush1.bf16.msra.mxu0 0
    %791 = vmatprep.subr.bf16.mxu0 0
    %792 = vmatpush1.bf16.msra.mxu0 0
    %793 = vmatprep.subr.bf16.mxu0 0
    %794 = vmatpush1.bf16.msra.mxu0 0
    %795 = vmatprep.subr.bf16.mxu0 0
    %796 = vmatpush1.bf16.msra.mxu0 0
    %797 = vmatprep.subr.bf16.mxu0 0
    %798 = vmatpush1.bf16.msra.mxu0 0
    %799 = vmatprep.subr.bf16.mxu0 0
    %800 = vmatpush1.bf16.msra.mxu0 0
    %801 = vmatprep.subr.bf16.mxu0 0
    %802 = vmatpush1.bf16.msra.mxu0 0
    %803 = vmatprep.subr.bf16.mxu0 0
    %804 = vmatpush1.bf16.msra.mxu0 0
    %805 = vmatprep.mubr.bf16.mxu0 0
    %806 = vmatmul.mubr.bf16.gmra.mrb[0].mxu0 %v750
    %v807 = vpop.f32.mrb[0].mxu0
    %v808 = vadd.f32 0.0, %v807
    %v809 = vpop.f32.mrb[0].mxu0
    %v810 = vpop.f32.mrb[0].mxu0
    %v811 = vadd.f32 0.0, %v810
    %v812 = vpop.f32.mrb[0].mxu0
    %813 = vmatprep.mubr.bf16.mxu0 0
    %814 = vmatmul.mubr.bf16.gmra.mrb[0].mxu0 %v753
    %v815 = vpop.f32.mrb[0].mxu0
    %v816 = vadd.f32 0.0, %v815
    %v817 = vpop.f32.mrb[0].mxu0
    %v818 = vpop.f32.mrb[0].mxu0
    %v819 = vadd.f32 0.0, %v818
    %v820 = vpop.f32.mrb[0].mxu0
    %821 = vmatprep.mubr.bf16.mxu0 0
    %822 = vmatmul.mubr.bf16.gmra.mrb[0].mxu0 %v756
    %v823 = vpop.f32.mrb[0].mxu0
    %v824 = vadd.f32 0.0, %v823
    %v825 = vpop.f32.mrb[0].mxu0
    %v826 = vpop.f32.mrb[0].mxu0
    %v827 = vadd.f32 0.0, %v826
    %v828 = vpop.f32.mrb[0].mxu0
    %829 = vmatprep.mubr.bf16.mxu0 0
    %830 = vmatmul.mubr.bf16.gmra.mrb[0].mxu0 %v759
    %v831 = vpop.f32.mrb[0].mxu0
    %v832 = vadd.f32 0.0, %v831
    %v833 = vpop.f32.mrb[0].mxu0
    %v834 = vpop.f32.mrb[0].mxu0
    %v835 = vadd.f32 0.0, %v834
    %v836 = vpop.f32.mrb[0].mxu0
    %837 = vmatprep.mubr.bf16.mxu0 0
    %838 = vmatmul.mubr.bf16.gmra.mrb[0].mxu0 %v762
    %v839 = vpop.f32.mrb[0].mxu0
    %v840 = vadd.f32 0.0, %v839
    %v841 = vpop.f32.mrb[0].mxu0
    %v842 = vpop.f32.mrb[0].mxu0
    %v843 = vadd.f32 0.0, %v842
    %v844 = vpop.f32.mrb[0].mxu0
    %845 = vmatprep.mubr.bf16.mxu0 0
    %846 = vmatmul.mubr.bf16.gmra.mrb[0].mxu0 %v765
    %v847 = vpop.f32.mrb[0].mxu0
    %v848 = vadd.f32 0.0, %v847
    %v849 = vpop.f32.mrb[0].mxu0
    %v850 = vpop.f32.mrb[0].mxu0
    %v851 = vadd.f32 0.0, %v850
    %v852 = vpop.f32.mrb[0].mxu0
    %853 = vmatprep.mubr.bf16.mxu0 0
    %854 = vmatmul.mubr.bf16.gmra.mrb[0].mxu0 %v768
    %v855 = vpop.f32.mrb[0].mxu0
    %v856 = vadd.f32 0.0, %v855
    %v857 = vpop.f32.mrb[0].mxu0
    %v858 = vpop.f32.mrb[0].mxu0
    %v859 = vadd.f32 0.0, %v858
    %v860 = vpop.f32.mrb[0].mxu0
    %861 = vmatprep.mubr.bf16.mxu0 0
    %862 = vmatmul.mubr.bf16.gmra.mrb[0].mxu0 %v771
    %v863 = vpop.f32.mrb[0].mxu0
    %v864 = vadd.f32 0.0, %v863
    %v865 = vpop.f32.mrb[0].mxu0
    %v866 = vpop.f32.mrb[0].mxu0
    %v867 = vadd.f32 0.0, %v866
    %v868 = vpop.f32.mrb[0].mxu0
    %869 = vdwg.mxu0
    %v870 = vadd.f32 %v708, %v808
    %v871 = vadd.f32 %v709, %v811
    %v872 = vadd.f32 %v710, %v816
    %v873 = vadd.f32 %v711, %v819
    %v874 = vadd.f32 %v712, %v824
    %v875 = vadd.f32 %v713, %v827
    %v876 = vadd.f32 %v714, %v832
    %v877 = vadd.f32 %v715, %v835
    %v878 = vadd.f32 %v716, %v840
    %v879 = vadd.f32 %v717, %v843
    %v880 = vadd.f32 %v718, %v848
    %v881 = vadd.f32 %v719, %v851
    %v882 = vadd.f32 %v720, %v856
    %v883 = vadd.f32 %v721, %v859
    %v884 = vadd.f32 %v722, %v864
    %v885 = vadd.f32 %v723, %v867
    %v886 = vpack.c.bf16 %v503, %v500
    %v887 = vpack.c.bf16 %v511, %v508
    %v888 = vpack.c.bf16 %v519, %v516
    %v889 = vpack.c.bf16 %v527, %v524
    %v890 = vpack.c.bf16 %v535, %v532
    %v891 = vpack.c.bf16 %v543, %v540
    %v892 = vpack.c.bf16 %v551, %v548
    %v893 = vpack.c.bf16 %v559, %v556
    %s894 = scalar_lea.vmem %s3, 32
    %v895 = vld [vmem:[%s894] sm:$0xf]
    %v896 = vld [vmem:[%s894 + $0x4] sm:$0xf]
    %v897 = vld [vmem:[%s894 + $0x8] sm:$0xf]
    %v898 = vld [vmem:[%s894 + $0xc] sm:$0xf]
    %v903 = vunpack.c.l.b16 %v895
    %v904 = vunpack.c.l.b16 %v896
    %v905 = vunpack.c.l.b16 %v897
    %v906 = vunpack.c.l.b16 %v898
    %v907 = vpack.c.b16 %v904, %v903
    %v908 = vpack.c.b16 %v906, %v905
    %v912 = vsel %vm586, %v886, 0
    %v915 = vsel %vm586, %v887, 0
    %v918 = vsel %vm586, %v888, 0
    %v921 = vsel %vm586, %v889, 0
    %v924 = vsel %vm586, %v890, 0
    %v927 = vsel %vm586, %v891, 0
    %v930 = vsel %vm586, %v892, 0
    %v933 = vsel %vm586, %v893, 0
    %935 = vmatprep.subr.bf16.mxu0 0
    %936 = vmatpush1.bf16.msra.mxu0 %v907
    %937 = vmatprep.subr.bf16.mxu0 0
    %938 = vmatpush1.bf16.msra.mxu0 %v908
    %939 = vmatprep.subr.bf16.mxu0 0
    %940 = vmatpush1.bf16.msra.mxu0 0
    %941 = vmatprep.subr.bf16.mxu0 0
    %942 = vmatpush1.bf16.msra.mxu0 0
    %943 = vmatprep.subr.bf16.mxu0 0
    %944 = vmatpush1.bf16.msra.mxu0 0
    %945 = vmatprep.subr.bf16.mxu0 0
    %946 = vmatpush1.bf16.msra.mxu0 0
    %947 = vmatprep.subr.bf16.mxu0 0
    %948 = vmatpush1.bf16.msra.mxu0 0
    %949 = vmatprep.subr.bf16.mxu0 0
    %950 = vmatpush1.bf16.msra.mxu0 0
    %951 = vmatprep.subr.bf16.mxu0 0
    %952 = vmatpush1.bf16.msra.mxu0 0
    %953 = vmatprep.subr.bf16.mxu0 0
    %954 = vmatpush1.bf16.msra.mxu0 0
    %955 = vmatprep.subr.bf16.mxu0 0
    %956 = vmatpush1.bf16.msra.mxu0 0
    %957 = vmatprep.subr.bf16.mxu0 0
    %958 = vmatpush1.bf16.msra.mxu0 0
    %959 = vmatprep.subr.bf16.mxu0 0
    %960 = vmatpush1.bf16.msra.mxu0 0
    %961 = vmatprep.subr.bf16.mxu0 0
    %962 = vmatpush1.bf16.msra.mxu0 0
    %963 = vmatprep.subr.bf16.mxu0 0
    %964 = vmatpush1.bf16.msra.mxu0 0
    %965 = vmatprep.subr.bf16.mxu0 0
    %966 = vmatpush1.bf16.msra.mxu0 0
    %967 = vmatprep.mubr.bf16.mxu0 0
    %968 = vmatmul.mubr.bf16.gmra.mrb[0].mxu0 %v912
    %v969 = vpop.f32.mrb[0].mxu0
    %v970 = vadd.f32 0.0, %v969
    %v971 = vpop.f32.mrb[0].mxu0
    %v972 = vpop.f32.mrb[0].mxu0
    %v973 = vadd.f32 0.0, %v972
    %v974 = vpop.f32.mrb[0].mxu0
    %975 = vmatprep.mubr.bf16.mxu0 0
    %976 = vmatmul.mubr.bf16.gmra.mrb[0].mxu0 %v915
    %v977 = vpop.f32.mrb[0].mxu0
    %v978 = vadd.f32 0.0, %v977
    %v979 = vpop.f32.mrb[0].mxu0
    %v980 = vpop.f32.mrb[0].mxu0
    %v981 = vadd.f32 0.0, %v980
    %v982 = vpop.f32.mrb[0].mxu0
    %983 = vmatprep.mubr.bf16.mxu0 0
    %984 = vmatmul.mubr.bf16.gmra.mrb[0].mxu0 %v918
    %v985 = vpop.f32.mrb[0].mxu0
    %v986 = vadd.f32 0.0, %v985
    %v987 = vpop.f32.mrb[0].mxu0
    %v988 = vpop.f32.mrb[0].mxu0
    %v989 = vadd.f32 0.0, %v988
    %v990 = vpop.f32.mrb[0].mxu0
    %991 = vmatprep.mubr.bf16.mxu0 0
    %992 = vmatmul.mubr.bf16.gmra.mrb[0].mxu0 %v921
    %v993 = vpop.f32.mrb[0].mxu0
    %v994 = vadd.f32 0.0, %v993
    %v995 = vpop.f32.mrb[0].mxu0
    %v996 = vpop.f32.mrb[0].mxu0
    %v997 = vadd.f32 0.0, %v996
    %v998 = vpop.f32.mrb[0].mxu0
    %999 = vmatprep.mubr.bf16.mxu0 0
    %1000 = vmatmul.mubr.bf16.gmra.mrb[0].mxu0 %v924
    %v1001 = vpop.f32.mrb[0].mxu0
    %v1002 = vadd.f32 0.0, %v1001
    %v1003 = vpop.f32.mrb[0].mxu0
    %v1004 = vpop.f32.mrb[0].mxu0
    %v1005 = vadd.f32 0.0, %v1004
    %v1006 = vpop.f32.mrb[0].mxu0
    %1007 = vmatprep.mubr.bf16.mxu0 0
    %1008 = vmatmul.mubr.bf16.gmra.mrb[0].mxu0 %v927
    %v1009 = vpop.f32.mrb[0].mxu0
    %v1010 = vadd.f32 0.0, %v1009
    %v1011 = vpop.f32.mrb[0].mxu0
    %v1012 = vpop.f32.mrb[0].mxu0
    %v1013 = vadd.f32 0.0, %v1012
    %v1014 = vpop.f32.mrb[0].mxu0
    %1015 = vmatprep.mubr.bf16.mxu0 0
    %1016 = vmatmul.mubr.bf16.gmra.mrb[0].mxu0 %v930
    %v1017 = vpop.f32.mrb[0].mxu0
    %v1018 = vadd.f32 0.0, %v1017
    %v1019 = vpop.f32.mrb[0].mxu0
    %v1020 = vpop.f32.mrb[0].mxu0
    %v1021 = vadd.f32 0.0, %v1020
    %v1022 = vpop.f32.mrb[0].mxu0
    %1023 = vmatprep.mubr.bf16.mxu0 0
    %1024 = vmatmul.mubr.bf16.gmra.mrb[0].mxu0 %v933
    %v1025 = vpop.f32.mrb[0].mxu0
    %v1026 = vadd.f32 0.0, %v1025
    %v1027 = vpop.f32.mrb[0].mxu0
    %v1028 = vpop.f32.mrb[0].mxu0
    %v1029 = vadd.f32 0.0, %v1028
    %v1030 = vpop.f32.mrb[0].mxu0
    %1031 = vdwg.mxu0
    %v1032 = vadd.f32 %v870, %v970
    %v1033 = vadd.f32 %v871, %v973
    %v1034 = vadd.f32 %v872, %v978
    %v1035 = vadd.f32 %v873, %v981
    %v1036 = vadd.f32 %v874, %v986
    %v1037 = vadd.f32 %v875, %v989
    %v1038 = vadd.f32 %v876, %v994
    %v1039 = vadd.f32 %v877, %v997
    %v1040 = vadd.f32 %v878, %v1002
    %v1041 = vadd.f32 %v879, %v1005
    %v1042 = vadd.f32 %v880, %v1010
    %v1043 = vadd.f32 %v881, %v1013
    %v1044 = vadd.f32 %v882, %v1018
    %v1045 = vadd.f32 %v883, %v1021
    %v1046 = vadd.f32 %v884, %v1026
    %v1047 = vadd.f32 %v885, %v1029
    %v1048 = vpack.c.bf16 %v1033, %v1032
    %v1049 = vpack.c.bf16 %v1035, %v1034
    %v1050 = vpack.c.bf16 %v1037, %v1036
    %v1051 = vpack.c.bf16 %v1039, %v1038
    %v1052 = vpack.c.bf16 %v1041, %v1040
    %v1053 = vpack.c.bf16 %v1043, %v1042
    %v1054 = vpack.c.bf16 %v1045, %v1044
    %v1055 = vpack.c.bf16 %v1047, %v1046
    %v1060 = vunpack.c.l.b16 %v166
    %v1061 = vunpack.c.l.b16 %v167
    %v1062 = vunpack.c.l.b16 %v168
    %v1063 = vunpack.c.l.b16 %v169
    %v1064 = vpack.c.b16 %v1061, %v1060
    %v1065 = vpack.c.b16 %v1063, %v1062
    %v1069 = vsel %vm586, %v1048, 0
    %v1072 = vsel %vm586, %v1049, 0
    %v1075 = vsel %vm586, %v1050, 0
    %v1078 = vsel %vm586, %v1051, 0
    %v1081 = vsel %vm586, %v1052, 0
    %v1084 = vsel %vm586, %v1053, 0
    %v1087 = vsel %vm586, %v1054, 0
    %v1090 = vsel %vm586, %v1055, 0
    %1092 = vmatprep.subr.bf16.mxu0 0
    %1093 = vmatpush1.bf16.msra.mxu0 %v1064
    %1094 = vmatprep.subr.bf16.mxu0 0
    %1095 = vmatpush1.bf16.msra.mxu0 %v1065
    %1096 = vmatprep.subr.bf16.mxu0 0
    %1097 = vmatpush1.bf16.msra.mxu0 0
    %1098 = vmatprep.subr.bf16.mxu0 0
    %1099 = vmatpush1.bf16.msra.mxu0 0
    %1100 = vmatprep.subr.bf16.mxu0 0
    %1101 = vmatpush1.bf16.msra.mxu0 0
    %1102 = vmatprep.subr.bf16.mxu0 0
    %1103 = vmatpush1.bf16.msra.mxu0 0
    %1104 = vmatprep.subr.bf16.mxu0 0
    %1105 = vmatpush1.bf16.msra.mxu0 0
    %1106 = vmatprep.subr.bf16.mxu0 0
    %1107 = vmatpush1.bf16.msra.mxu0 0
    %1108 = vmatprep.subr.bf16.mxu0 0
    %1109 = vmatpush1.bf16.msra.mxu0 0
    %1110 = vmatprep.subr.bf16.mxu0 0
    %1111 = vmatpush1.bf16.msra.mxu0 0
    %1112 = vmatprep.subr.bf16.mxu0 0
    %1113 = vmatpush1.bf16.msra.mxu0 0
    %1114 = vmatprep.subr.bf16.mxu0 0
    %1115 = vmatpush1.bf16.msra.mxu0 0
    %1116 = vmatprep.subr.bf16.mxu0 0
    %1117 = vmatpush1.bf16.msra.mxu0 0
    %1118 = vmatprep.subr.bf16.mxu0 0
    %1119 = vmatpush1.bf16.msra.mxu0 0
    %1120 = vmatprep.subr.bf16.mxu0 0
    %1121 = vmatpush1.bf16.msra.mxu0 0
    %1122 = vmatprep.subr.bf16.mxu0 0
    %1123 = vmatpush1.bf16.msra.mxu0 0
    %1124 = vmatprep.mubr.bf16.mxu0 0
    %1125 = vmatmul.mubr.bf16.gmra.mrb[0].mxu0 %v1069
    %v1126 = vpop.f32.mrb[0].mxu0
    %v1127 = vadd.f32 0.0, %v1126
    %v1128 = vpop.f32.mrb[0].mxu0
    %v1129 = vpop.f32.mrb[0].mxu0
    %v1130 = vadd.f32 0.0, %v1129
    %v1131 = vpop.f32.mrb[0].mxu0
    %1132 = vmatprep.mubr.bf16.mxu0 0
    %1133 = vmatmul.mubr.bf16.gmra.mrb[0].mxu0 %v1072
    %v1134 = vpop.f32.mrb[0].mxu0
    %v1135 = vadd.f32 0.0, %v1134
    %v1136 = vpop.f32.mrb[0].mxu0
    %v1137 = vpop.f32.mrb[0].mxu0
    %v1138 = vadd.f32 0.0, %v1137
    %v1139 = vpop.f32.mrb[0].mxu0
    %1140 = vmatprep.mubr.bf16.mxu0 0
    %1141 = vmatmul.mubr.bf16.gmra.mrb[0].mxu0 %v1075
    %v1142 = vpop.f32.mrb[0].mxu0
    %v1143 = vadd.f32 0.0, %v1142
    %v1144 = vpop.f32.mrb[0].mxu0
    %v1145 = vpop.f32.mrb[0].mxu0
    %v1146 = vadd.f32 0.0, %v1145
    %v1147 = vpop.f32.mrb[0].mxu0
    %1148 = vmatprep.mubr.bf16.mxu0 0
    %1149 = vmatmul.mubr.bf16.gmra.mrb[0].mxu0 %v1078
    %v1150 = vpop.f32.mrb[0].mxu0
    %v1151 = vadd.f32 0.0, %v1150
    %v1152 = vpop.f32.mrb[0].mxu0
    %v1153 = vpop.f32.mrb[0].mxu0
    %v1154 = vadd.f32 0.0, %v1153
    %v1155 = vpop.f32.mrb[0].mxu0
    %1156 = vmatprep.mubr.bf16.mxu0 0
    %1157 = vmatmul.mubr.bf16.gmra.mrb[0].mxu0 %v1081
    %v1158 = vpop.f32.mrb[0].mxu0
    %v1159 = vadd.f32 0.0, %v1158
    %v1160 = vpop.f32.mrb[0].mxu0
    %v1161 = vpop.f32.mrb[0].mxu0
    %v1162 = vadd.f32 0.0, %v1161
    %v1163 = vpop.f32.mrb[0].mxu0
    %1164 = vmatprep.mubr.bf16.mxu0 0
    %1165 = vmatmul.mubr.bf16.gmra.mrb[0].mxu0 %v1084
    %v1166 = vpop.f32.mrb[0].mxu0
    %v1167 = vadd.f32 0.0, %v1166
    %v1168 = vpop.f32.mrb[0].mxu0
    %v1169 = vpop.f32.mrb[0].mxu0
    %v1170 = vadd.f32 0.0, %v1169
    %v1171 = vpop.f32.mrb[0].mxu0
    %1172 = vmatprep.mubr.bf16.mxu0 0
    %1173 = vmatmul.mubr.bf16.gmra.mrb[0].mxu0 %v1087
    %v1174 = vpop.f32.mrb[0].mxu0
    %v1175 = vadd.f32 0.0, %v1174
    %v1176 = vpop.f32.mrb[0].mxu0
    %v1177 = vpop.f32.mrb[0].mxu0
    %v1178 = vadd.f32 0.0, %v1177
    %v1179 = vpop.f32.mrb[0].mxu0
    %1180 = vmatprep.mubr.bf16.mxu0 0
    %1181 = vmatmul.mubr.bf16.gmra.mrb[0].mxu0 %v1090
    %v1182 = vpop.f32.mrb[0].mxu0
    %v1183 = vadd.f32 0.0, %v1182
    %v1184 = vpop.f32.mrb[0].mxu0
    %v1185 = vpop.f32.mrb[0].mxu0
    %v1186 = vadd.f32 0.0, %v1185
    %v1187 = vpop.f32.mrb[0].mxu0
    %1188 = vdwg.mxu0
    %v1193 = vunpack.c.l.b16 %v170
    %v1194 = vunpack.c.l.b16 %v171
    %v1195 = vunpack.c.l.b16 %v172
    %v1196 = vunpack.c.l.b16 %v173
    %v1197 = vpack.c.b16 %v1194, %v1193
    %v1198 = vpack.c.b16 %v1196, %v1195
    %v1202 = vsel %vm586, %v118, 0
    %v1205 = vsel %vm586, %v119, 0
    %v1208 = vsel %vm586, %v120, 0
    %v1211 = vsel %vm586, %v121, 0
    %v1214 = vsel %vm586, %v122, 0
    %v1217 = vsel %vm586, %v123, 0
    %v1220 = vsel %vm586, %v124, 0
    %v1223 = vsel %vm586, %v125, 0
    %1225 = vmatprep.subr.bf16.mxu0 0
    %1226 = vmatpush1.bf16.msra.mxu0 %v1197
    %1227 = vmatprep.subr.bf16.mxu0 0
    %1228 = vmatpush1.bf16.msra.mxu0 %v1198
    %1229 = vmatprep.subr.bf16.mxu0 0
    %1230 = vmatpush1.bf16.msra.mxu0 0
    %1231 = vmatprep.subr.bf16.mxu0 0
    %1232 = vmatpush1.bf16.msra.mxu0 0
    %1233 = vmatprep.subr.bf16.mxu0 0
    %1234 = vmatpush1.bf16.msra.mxu0 0
    %1235 = vmatprep.subr.bf16.mxu0 0
    %1236 = vmatpush1.bf16.msra.mxu0 0
    %1237 = vmatprep.subr.bf16.mxu0 0
    %1238 = vmatpush1.bf16.msra.mxu0 0
    %1239 = vmatprep.subr.bf16.mxu0 0
    %1240 = vmatpush1.bf16.msra.mxu0 0
    %1241 = vmatprep.subr.bf16.mxu0 0
    %1242 = vmatpush1.bf16.msra.mxu0 0
    %1243 = vmatprep.subr.bf16.mxu0 0
    %1244 = vmatpush1.bf16.msra.mxu0 0
    %1245 = vmatprep.subr.bf16.mxu0 0
    %1246 = vmatpush1.bf16.msra.mxu0 0
    %1247 = vmatprep.subr.bf16.mxu0 0
    %1248 = vmatpush1.bf16.msra.mxu0 0
    %1249 = vmatprep.subr.bf16.mxu0 0
    %1250 = vmatpush1.bf16.msra.mxu0 0
    %1251 = vmatprep.subr.bf16.mxu0 0
    %1252 = vmatpush1.bf16.msra.mxu0 0
    %1253 = vmatprep.subr.bf16.mxu0 0
    %1254 = vmatpush1.bf16.msra.mxu0 0
    %1255 = vmatprep.subr.bf16.mxu0 0
    %1256 = vmatpush1.bf16.msra.mxu0 0
    %1257 = vmatprep.mubr.bf16.mxu0 0
    %1258 = vmatmul.mubr.bf16.gmra.mrb[0].mxu0 %v1202
    %v1259 = vpop.f32.mrb[0].mxu0
    %v1260 = vadd.f32 0.0, %v1259
    %v1261 = vpop.f32.mrb[0].mxu0
    %v1262 = vpop.f32.mrb[0].mxu0
    %v1263 = vadd.f32 0.0, %v1262
    %v1264 = vpop.f32.mrb[0].mxu0
    %1265 = vmatprep.mubr.bf16.mxu0 0
    %1266 = vmatmul.mubr.bf16.gmra.mrb[0].mxu0 %v1205
    %v1267 = vpop.f32.mrb[0].mxu0
    %v1268 = vadd.f32 0.0, %v1267
    %v1269 = vpop.f32.mrb[0].mxu0
    %v1270 = vpop.f32.mrb[0].mxu0
    %v1271 = vadd.f32 0.0, %v1270
    %v1272 = vpop.f32.mrb[0].mxu0
    %1273 = vmatprep.mubr.bf16.mxu0 0
    %1274 = vmatmul.mubr.bf16.gmra.mrb[0].mxu0 %v1208
    %v1275 = vpop.f32.mrb[0].mxu0
    %v1276 = vadd.f32 0.0, %v1275
    %v1277 = vpop.f32.mrb[0].mxu0
    %v1278 = vpop.f32.mrb[0].mxu0
    %v1279 = vadd.f32 0.0, %v1278
    %v1280 = vpop.f32.mrb[0].mxu0
    %1281 = vmatprep.mubr.bf16.mxu0 0
    %1282 = vmatmul.mubr.bf16.gmra.mrb[0].mxu0 %v1211
    %v1283 = vpop.f32.mrb[0].mxu0
    %v1284 = vadd.f32 0.0, %v1283
    %v1285 = vpop.f32.mrb[0].mxu0
    %v1286 = vpop.f32.mrb[0].mxu0
    %v1287 = vadd.f32 0.0, %v1286
    %v1288 = vpop.f32.mrb[0].mxu0
    %1289 = vmatprep.mubr.bf16.mxu0 0
    %1290 = vmatmul.mubr.bf16.gmra.mrb[0].mxu0 %v1214
    %v1291 = vpop.f32.mrb[0].mxu0
    %v1292 = vadd.f32 0.0, %v1291
    %v1293 = vpop.f32.mrb[0].mxu0
    %v1294 = vpop.f32.mrb[0].mxu0
    %v1295 = vadd.f32 0.0, %v1294
    %v1296 = vpop.f32.mrb[0].mxu0
    %1297 = vmatprep.mubr.bf16.mxu0 0
    %1298 = vmatmul.mubr.bf16.gmra.mrb[0].mxu0 %v1217
    %v1299 = vpop.f32.mrb[0].mxu0
    %v1300 = vadd.f32 0.0, %v1299
    %v1301 = vpop.f32.mrb[0].mxu0
    %v1302 = vpop.f32.mrb[0].mxu0
    %v1303 = vadd.f32 0.0, %v1302
    %v1304 = vpop.f32.mrb[0].mxu0
    %1305 = vmatprep.mubr.bf16.mxu0 0
    %1306 = vmatmul.mubr.bf16.gmra.mrb[0].mxu0 %v1220
    %v1307 = vpop.f32.mrb[0].mxu0
    %v1308 = vadd.f32 0.0, %v1307
    %v1309 = vpop.f32.mrb[0].mxu0
    %v1310 = vpop.f32.mrb[0].mxu0
    %v1311 = vadd.f32 0.0, %v1310
    %v1312 = vpop.f32.mrb[0].mxu0
    %1313 = vmatprep.mubr.bf16.mxu0 0
    %1314 = vmatmul.mubr.bf16.gmra.mrb[0].mxu0 %v1223
    %v1315 = vpop.f32.mrb[0].mxu0
    %v1316 = vadd.f32 0.0, %v1315
    %v1317 = vpop.f32.mrb[0].mxu0
    %v1318 = vpop.f32.mrb[0].mxu0
    %v1319 = vadd.f32 0.0, %v1318
    %v1320 = vpop.f32.mrb[0].mxu0
    %1321 = vdwg.mxu0
    %v1322 = vadd.f32 %v1127, %v1260
    %v1323 = vadd.f32 %v1130, %v1263
    %v1324 = vadd.f32 %v1135, %v1268
    %v1325 = vadd.f32 %v1138, %v1271
    %v1326 = vadd.f32 %v1143, %v1276
    %v1327 = vadd.f32 %v1146, %v1279
    %v1328 = vadd.f32 %v1151, %v1284
    %v1329 = vadd.f32 %v1154, %v1287
    %v1330 = vadd.f32 %v1159, %v1292
    %v1331 = vadd.f32 %v1162, %v1295
    %v1332 = vadd.f32 %v1167, %v1300
    %v1333 = vadd.f32 %v1170, %v1303
    %v1334 = vadd.f32 %v1175, %v1308
    %v1335 = vadd.f32 %v1178, %v1311
    %v1336 = vadd.f32 %v1183, %v1316
    %v1337 = vadd.f32 %v1186, %v1319
    %v1339 = vlaneseq
    %v1340 = vshrl.u32 %v1339, 7
    %v1341 = vsub.s32 0, %v1340
    %v1342 = vrot.slane %v174, %v1341
    %v1344 = vadd.f32 %v1322, %v1342
    %v1345 = vadd.f32 %v1323, %v1342
    %v1346 = vadd.f32 %v1324, %v1342
    %v1347 = vadd.f32 %v1325, %v1342
    %v1348 = vadd.f32 %v1326, %v1342
    %v1349 = vadd.f32 %v1327, %v1342
    %v1350 = vadd.f32 %v1328, %v1342
    %v1351 = vadd.f32 %v1329, %v1342
    %v1352 = vadd.f32 %v1330, %v1342
    %v1353 = vadd.f32 %v1331, %v1342
    %v1354 = vadd.f32 %v1332, %v1342
    %v1355 = vadd.f32 %v1333, %v1342
    %v1356 = vadd.f32 %v1334, %v1342
    %v1357 = vadd.f32 %v1335, %v1342
    %v1358 = vadd.f32 %v1336, %v1342
    %v1359 = vadd.f32 %v1337, %v1342
    %v1360 = vxor.u32 %v1344, 2147483648
    %v1361 = vxor.u32 %v1345, 2147483648
    %v1362 = vxor.u32 %v1346, 2147483648
    %v1363 = vxor.u32 %v1347, 2147483648
    %v1364 = vxor.u32 %v1348, 2147483648
    %v1365 = vxor.u32 %v1349, 2147483648
    %v1366 = vxor.u32 %v1350, 2147483648
    %v1367 = vxor.u32 %v1351, 2147483648
    %v1368 = vxor.u32 %v1352, 2147483648
    %v1369 = vxor.u32 %v1353, 2147483648
    %v1370 = vxor.u32 %v1354, 2147483648
    %v1371 = vxor.u32 %v1355, 2147483648
    %v1372 = vxor.u32 %v1356, 2147483648
    %v1373 = vxor.u32 %v1357, 2147483648
    %v1374 = vxor.u32 %v1358, 2147483648
    %v1375 = vxor.u32 %v1359, 2147483648
    %v1376 = vmul.f32 %v1360, 1.442695
    %v1377 = vpow.pop %v1376
    %v1378 = vmul.f32 %v1361, 1.442695
    %v1379 = vpow.pop %v1378
    %v1380 = vmul.f32 %v1362, 1.442695
    %v1381 = vpow.pop %v1380
    %v1382 = vmul.f32 %v1363, 1.442695
    %v1383 = vpow.pop %v1382
    %v1384 = vmul.f32 %v1364, 1.442695
    %v1385 = vpow.pop %v1384
    %v1386 = vmul.f32 %v1365, 1.442695
    %v1387 = vpow.pop %v1386
    %v1388 = vmul.f32 %v1366, 1.442695
    %v1389 = vpow.pop %v1388
    %v1390 = vmul.f32 %v1367, 1.442695
    %v1391 = vpow.pop %v1390
    %v1392 = vmul.f32 %v1368, 1.442695
    %v1393 = vpow.pop %v1392
    %v1394 = vmul.f32 %v1369, 1.442695
    %v1395 = vpow.pop %v1394
    %v1396 = vmul.f32 %v1370, 1.442695
    %v1397 = vpow.pop %v1396
    %v1398 = vmul.f32 %v1371, 1.442695
    %v1399 = vpow.pop %v1398
    %v1400 = vmul.f32 %v1372, 1.442695
    %v1401 = vpow.pop %v1400
    %v1402 = vmul.f32 %v1373, 1.442695
    %v1403 = vpow.pop %v1402
    %v1404 = vmul.f32 %v1374, 1.442695
    %v1405 = vpow.pop %v1404
    %v1406 = vmul.f32 %v1375, 1.442695
    %v1407 = vpow.pop %v1406
    %v1408 = vadd.f32 %v1377, 1.0
    %v1409 = vadd.f32 %v1379, 1.0
    %v1410 = vadd.f32 %v1381, 1.0
    %v1411 = vadd.f32 %v1383, 1.0
    %v1412 = vadd.f32 %v1385, 1.0
    %v1413 = vadd.f32 %v1387, 1.0
    %v1414 = vadd.f32 %v1389, 1.0
    %v1415 = vadd.f32 %v1391, 1.0
    %v1416 = vadd.f32 %v1393, 1.0
    %v1417 = vadd.f32 %v1395, 1.0
    %v1418 = vadd.f32 %v1397, 1.0
    %v1419 = vadd.f32 %v1399, 1.0
    %v1420 = vadd.f32 %v1401, 1.0
    %v1421 = vadd.f32 %v1403, 1.0
    %v1422 = vadd.f32 %v1405, 1.0
    %v1423 = vadd.f32 %v1407, 1.0
    %v1424 = vrcp.pop %v1408
    %v1425 = vmul.f32 1.0, %v1424
    %v1426 = vrcp.pop %v1409
    %v1427 = vmul.f32 1.0, %v1426
    %v1428 = vrcp.pop %v1410
    %v1429 = vmul.f32 1.0, %v1428
    %v1430 = vrcp.pop %v1411
    %v1431 = vmul.f32 1.0, %v1430
    %v1432 = vrcp.pop %v1412
    %v1433 = vmul.f32 1.0, %v1432
    %v1434 = vrcp.pop %v1413
    %v1435 = vmul.f32 1.0, %v1434
    %v1436 = vrcp.pop %v1414
    %v1437 = vmul.f32 1.0, %v1436
    %v1438 = vrcp.pop %v1415
    %v1439 = vmul.f32 1.0, %v1438
    %v1440 = vrcp.pop %v1416
    %v1441 = vmul.f32 1.0, %v1440
    %v1442 = vrcp.pop %v1417
    %v1443 = vmul.f32 1.0, %v1442
    %v1444 = vrcp.pop %v1418
    %v1445 = vmul.f32 1.0, %v1444
    %v1446 = vrcp.pop %v1419
    %v1447 = vmul.f32 1.0, %v1446
    %v1448 = vrcp.pop %v1420
    %v1449 = vmul.f32 1.0, %v1448
    %v1450 = vrcp.pop %v1421
    %v1451 = vmul.f32 1.0, %v1450
    %v1452 = vrcp.pop %v1422
    %v1453 = vmul.f32 1.0, %v1452
    %v1454 = vrcp.pop %v1423
    %v1455 = vmul.f32 1.0, %v1454
    %v1457 = vlaneseq
    %v1458 = vshrl.u32 %v1457, 7
    %v1459 = vsub.s32 0, %v1458
    %v1460 = vrot.slane %v175, %v1459
    %1461 = vrot.lane.b32.xlu0 %v1460, 64
    %v1462 = vpop.permute.xlu0 %1461
    %v1464 = vadd.f32 %v1127, %v1462
    %v1465 = vadd.f32 %v1130, %v1462
    %v1466 = vadd.f32 %v1135, %v1462
    %v1467 = vadd.f32 %v1138, %v1462
    %v1468 = vadd.f32 %v1143, %v1462
    %v1469 = vadd.f32 %v1146, %v1462
    %v1470 = vadd.f32 %v1151, %v1462
    %v1471 = vadd.f32 %v1154, %v1462
    %v1472 = vadd.f32 %v1159, %v1462
    %v1473 = vadd.f32 %v1162, %v1462
    %v1474 = vadd.f32 %v1167, %v1462
    %v1475 = vadd.f32 %v1170, %v1462
    %v1476 = vadd.f32 %v1175, %v1462
    %v1477 = vadd.f32 %v1178, %v1462
    %v1478 = vadd.f32 %v1183, %v1462
    %v1479 = vadd.f32 %v1186, %v1462
    %v1481 = vlaneseq
    %v1482 = vshrl.u32 %v1481, 7
    %v1483 = vsub.s32 0, %v1482
    %v1484 = vrot.slane %v176, %v1483
    %1485 = vrot.lane.b32.xlu0 %v1484, 64
    %v1486 = vpop.permute.xlu0 %1485
    %v1488 = vadd.f32 %v1260, %v1486
    %v1489 = vadd.f32 %v1263, %v1486
    %v1490 = vadd.f32 %v1268, %v1486
    %v1491 = vadd.f32 %v1271, %v1486
    %v1492 = vadd.f32 %v1276, %v1486
    %v1493 = vadd.f32 %v1279, %v1486
    %v1494 = vadd.f32 %v1284, %v1486
    %v1495 = vadd.f32 %v1287, %v1486
    %v1496 = vadd.f32 %v1292, %v1486
    %v1497 = vadd.f32 %v1295, %v1486
    %v1498 = vadd.f32 %v1300, %v1486
    %v1499 = vadd.f32 %v1303, %v1486
    %v1500 = vadd.f32 %v1308, %v1486
    %v1501 = vadd.f32 %v1311, %v1486
    %v1502 = vadd.f32 %v1316, %v1486
    %v1503 = vadd.f32 %v1319, %v1486
    %1520 = vrot.lane.b32.xlu0 %v1488, 64
    %v1521 = vpop.permute.xlu0 %1520
    %1522 = vrot.lane.b32.xlu0 %v1489, 64
    %v1523 = vpop.permute.xlu0 %1522
    %1524 = vrot.lane.b32.xlu0 %v1490, 64
    %v1525 = vpop.permute.xlu0 %1524
    %1526 = vrot.lane.b32.xlu0 %v1491, 64
    %v1527 = vpop.permute.xlu0 %1526
    %1528 = vrot.lane.b32.xlu0 %v1492, 64
    %v1529 = vpop.permute.xlu0 %1528
    %1530 = vrot.lane.b32.xlu0 %v1493, 64
    %v1531 = vpop.permute.xlu0 %1530
    %1532 = vrot.lane.b32.xlu0 %v1494, 64
    %v1533 = vpop.permute.xlu0 %1532
    %1534 = vrot.lane.b32.xlu0 %v1495, 64
    %v1535 = vpop.permute.xlu0 %1534
    %1536 = vrot.lane.b32.xlu0 %v1496, 64
    %v1537 = vpop.permute.xlu0 %1536
    %1538 = vrot.lane.b32.xlu0 %v1497, 64
    %v1539 = vpop.permute.xlu0 %1538
    %1540 = vrot.lane.b32.xlu0 %v1498, 64
    %v1541 = vpop.permute.xlu0 %1540
    %1542 = vrot.lane.b32.xlu0 %v1499, 64
    %v1543 = vpop.permute.xlu0 %1542
    %1544 = vrot.lane.b32.xlu0 %v1500, 64
    %v1545 = vpop.permute.xlu0 %1544
    %1546 = vrot.lane.b32.xlu0 %v1501, 64
    %v1547 = vpop.permute.xlu0 %1546
    %1548 = vrot.lane.b32.xlu0 %v1502, 64
    %v1549 = vpop.permute.xlu0 %1548
    %1550 = vrot.lane.b32.xlu0 %v1503, 64
    %v1551 = vpop.permute.xlu0 %1550
    %v1568 = vmul.f32 %v1425, %v1521
    %v1569 = vmul.f32 %v1427, %v1523
    %v1570 = vmul.f32 %v1429, %v1525
    %v1571 = vmul.f32 %v1431, %v1527
    %v1572 = vmul.f32 %v1433, %v1529
    %v1573 = vmul.f32 %v1435, %v1531
    %v1574 = vmul.f32 %v1437, %v1533
    %v1575 = vmul.f32 %v1439, %v1535
    %v1576 = vmul.f32 %v1441, %v1537
    %v1577 = vmul.f32 %v1443, %v1539
    %v1578 = vmul.f32 %v1445, %v1541
    %v1579 = vmul.f32 %v1447, %v1543
    %v1580 = vmul.f32 %v1449, %v1545
    %v1581 = vmul.f32 %v1451, %v1547
    %v1582 = vmul.f32 %v1453, %v1549
    %v1583 = vmul.f32 %v1455, %v1551
    %1600 = vrot.lane.b32.xlu0 %v1568, 64
    %v1601 = vpop.permute.xlu0 %1600
    %1602 = vrot.lane.b32.xlu0 %v1569, 64
    %v1603 = vpop.permute.xlu0 %1602
    %1604 = vrot.lane.b32.xlu0 %v1570, 64
    %v1605 = vpop.permute.xlu0 %1604
    %1606 = vrot.lane.b32.xlu0 %v1571, 64
    %v1607 = vpop.permute.xlu0 %1606
    %1608 = vrot.lane.b32.xlu0 %v1572, 64
    %v1609 = vpop.permute.xlu0 %1608
    %1610 = vrot.lane.b32.xlu0 %v1573, 64
    %v1611 = vpop.permute.xlu0 %1610
    %1612 = vrot.lane.b32.xlu0 %v1574, 64
    %v1613 = vpop.permute.xlu0 %1612
    %1614 = vrot.lane.b32.xlu0 %v1575, 64
    %v1615 = vpop.permute.xlu0 %1614
    %1616 = vrot.lane.b32.xlu0 %v1576, 64
    %v1617 = vpop.permute.xlu0 %1616
    %1618 = vrot.lane.b32.xlu0 %v1577, 64
    %v1619 = vpop.permute.xlu0 %1618
    %1620 = vrot.lane.b32.xlu0 %v1578, 64
    %v1621 = vpop.permute.xlu0 %1620
    %1622 = vrot.lane.b32.xlu0 %v1579, 64
    %v1623 = vpop.permute.xlu0 %1622
    %1624 = vrot.lane.b32.xlu0 %v1580, 64
    %v1625 = vpop.permute.xlu0 %1624
    %1626 = vrot.lane.b32.xlu0 %v1581, 64
    %v1627 = vpop.permute.xlu0 %1626
    %1628 = vrot.lane.b32.xlu0 %v1582, 64
    %v1629 = vpop.permute.xlu0 %1628
    %1630 = vrot.lane.b32.xlu0 %v1583, 64
    %v1631 = vpop.permute.xlu0 %1630
    %v1648 = vadd.f32 %v1464, %v1601
    %v1649 = vadd.f32 %v1465, %v1603
    %v1650 = vadd.f32 %v1466, %v1605
    %v1651 = vadd.f32 %v1467, %v1607
    %v1652 = vadd.f32 %v1468, %v1609
    %v1653 = vadd.f32 %v1469, %v1611
    %v1654 = vadd.f32 %v1470, %v1613
    %v1655 = vadd.f32 %v1471, %v1615
    %v1656 = vadd.f32 %v1472, %v1617
    %v1657 = vadd.f32 %v1473, %v1619
    %v1658 = vadd.f32 %v1474, %v1621
    %v1659 = vadd.f32 %v1475, %v1623
    %v1660 = vadd.f32 %v1476, %v1625
    %v1661 = vadd.f32 %v1477, %v1627
    %v1662 = vadd.f32 %v1478, %v1629
    %v1663 = vadd.f32 %v1479, %v1631
    %v1664 = vtanh.pop %v1648
    %v1665 = vtanh.pop %v1649
    %v1666 = vtanh.pop %v1650
    %v1667 = vtanh.pop %v1651
    %v1668 = vtanh.pop %v1652
    %v1669 = vtanh.pop %v1653
    %v1670 = vtanh.pop %v1654
    %v1671 = vtanh.pop %v1655
    %v1672 = vtanh.pop %v1656
    %v1673 = vtanh.pop %v1657
    %v1674 = vtanh.pop %v1658
    %v1675 = vtanh.pop %v1659
    %v1676 = vtanh.pop %v1660
    %v1677 = vtanh.pop %v1661
    %v1678 = vtanh.pop %v1662
    %v1679 = vtanh.pop %v1663
    %v1680 = vsub.f32 1.0, %v1425
    %v1681 = vsub.f32 1.0, %v1427
    %v1682 = vsub.f32 1.0, %v1429
    %v1683 = vsub.f32 1.0, %v1431
    %v1684 = vsub.f32 1.0, %v1433
    %v1685 = vsub.f32 1.0, %v1435
    %v1686 = vsub.f32 1.0, %v1437
    %v1687 = vsub.f32 1.0, %v1439
    %v1688 = vsub.f32 1.0, %v1441
    %v1689 = vsub.f32 1.0, %v1443
    %v1690 = vsub.f32 1.0, %v1445
    %v1691 = vsub.f32 1.0, %v1447
    %v1692 = vsub.f32 1.0, %v1449
    %v1693 = vsub.f32 1.0, %v1451
    %v1694 = vsub.f32 1.0, %v1453
    %v1695 = vsub.f32 1.0, %v1455
    %1712 = vrot.lane.b32.xlu0 %v1664, 96
    %v1713 = vpop.permute.xlu0 %1712
    %1714 = vrot.lane.b32.xlu0 %v1665, 96
    %v1715 = vpop.permute.xlu0 %1714
    %1716 = vrot.lane.b32.xlu0 %v1666, 96
    %v1717 = vpop.permute.xlu0 %1716
    %1718 = vrot.lane.b32.xlu0 %v1667, 96
    %v1719 = vpop.permute.xlu0 %1718
    %1720 = vrot.lane.b32.xlu0 %v1668, 96
    %v1721 = vpop.permute.xlu0 %1720
    %1722 = vrot.lane.b32.xlu0 %v1669, 96
    %v1723 = vpop.permute.xlu0 %1722
    %1724 = vrot.lane.b32.xlu0 %v1670, 96
    %v1725 = vpop.permute.xlu0 %1724
    %1726 = vrot.lane.b32.xlu0 %v1671, 96
    %v1727 = vpop.permute.xlu0 %1726
    %1728 = vrot.lane.b32.xlu0 %v1672, 96
    %v1729 = vpop.permute.xlu0 %1728
    %1730 = vrot.lane.b32.xlu0 %v1673, 96
    %v1731 = vpop.permute.xlu0 %1730
    %1732 = vrot.lane.b32.xlu0 %v1674, 96
    %v1733 = vpop.permute.xlu0 %1732
    %1734 = vrot.lane.b32.xlu0 %v1675, 96
    %v1735 = vpop.permute.xlu0 %1734
    %1736 = vrot.lane.b32.xlu0 %v1676, 96
    %v1737 = vpop.permute.xlu0 %1736
    %1738 = vrot.lane.b32.xlu0 %v1677, 96
    %v1739 = vpop.permute.xlu0 %1738
    %1740 = vrot.lane.b32.xlu0 %v1678, 96
    %v1741 = vpop.permute.xlu0 %1740
    %1742 = vrot.lane.b32.xlu0 %v1679, 96
    %v1743 = vpop.permute.xlu0 %1742
    %v1760 = vmul.f32 %v1680, %v1713
    %v1761 = vmul.f32 %v1681, %v1715
    %v1762 = vmul.f32 %v1682, %v1717
    %v1763 = vmul.f32 %v1683, %v1719
    %v1764 = vmul.f32 %v1684, %v1721
    %v1765 = vmul.f32 %v1685, %v1723
    %v1766 = vmul.f32 %v1686, %v1725
    %v1767 = vmul.f32 %v1687, %v1727
    %v1768 = vmul.f32 %v1688, %v1729
    %v1769 = vmul.f32 %v1689, %v1731
    %v1770 = vmul.f32 %v1690, %v1733
    %v1771 = vmul.f32 %v1691, %v1735
    %v1772 = vmul.f32 %v1692, %v1737
    %v1773 = vmul.f32 %v1693, %v1739
    %v1774 = vmul.f32 %v1694, %v1741
    %v1775 = vmul.f32 %v1695, %v1743
    %1792 = vrot.lane.b32.xlu0 %v53, 32
    %v1793 = vpop.permute.xlu0 %1792
    %1794 = vrot.lane.b32.xlu0 %v54, 32
    %v1795 = vpop.permute.xlu0 %1794
    %1796 = vrot.lane.b32.xlu0 %v55, 32
    %v1797 = vpop.permute.xlu0 %1796
    %1798 = vrot.lane.b32.xlu0 %v56, 32
    %v1799 = vpop.permute.xlu0 %1798
    %1800 = vrot.lane.b32.xlu0 %v57, 32
    %v1801 = vpop.permute.xlu0 %1800
    %1802 = vrot.lane.b32.xlu0 %v58, 32
    %v1803 = vpop.permute.xlu0 %1802
    %1804 = vrot.lane.b32.xlu0 %v59, 32
    %v1805 = vpop.permute.xlu0 %1804
    %1806 = vrot.lane.b32.xlu0 %v60, 32
    %v1807 = vpop.permute.xlu0 %1806
    %1808 = vrot.lane.b32.xlu0 %v61, 32
    %v1809 = vpop.permute.xlu0 %1808
    %1810 = vrot.lane.b32.xlu0 %v62, 32
    %v1811 = vpop.permute.xlu0 %1810
    %1812 = vrot.lane.b32.xlu0 %v63, 32
    %v1813 = vpop.permute.xlu0 %1812
    %1814 = vrot.lane.b32.xlu0 %v64, 32
    %v1815 = vpop.permute.xlu0 %1814
    %1816 = vrot.lane.b32.xlu0 %v65, 32
    %v1817 = vpop.permute.xlu0 %1816
    %1818 = vrot.lane.b32.xlu0 %v66, 32
    %v1819 = vpop.permute.xlu0 %1818
    %1820 = vrot.lane.b32.xlu0 %v67, 32
    %v1821 = vpop.permute.xlu0 %1820
    %1822 = vrot.lane.b32.xlu0 %v68, 32
    %v1823 = vpop.permute.xlu0 %1822
    %v1840 = vmul.f32 %v1425, %v1793
    %v1841 = vmul.f32 %v1427, %v1795
    %v1842 = vmul.f32 %v1429, %v1797
    %v1843 = vmul.f32 %v1431, %v1799
    %v1844 = vmul.f32 %v1433, %v1801
    %v1845 = vmul.f32 %v1435, %v1803
    %v1846 = vmul.f32 %v1437, %v1805
    %v1847 = vmul.f32 %v1439, %v1807
    %v1848 = vmul.f32 %v1441, %v1809
    %v1849 = vmul.f32 %v1443, %v1811
    %v1850 = vmul.f32 %v1445, %v1813
    %v1851 = vmul.f32 %v1447, %v1815
    %v1852 = vmul.f32 %v1449, %v1817
    %v1853 = vmul.f32 %v1451, %v1819
    %v1854 = vmul.f32 %v1453, %v1821
    %v1855 = vmul.f32 %v1455, %v1823
    %v1856 = vadd.f32 %v1760, %v1840
    %v1857 = vadd.f32 %v1761, %v1841
    %v1858 = vadd.f32 %v1762, %v1842
    %v1859 = vadd.f32 %v1763, %v1843
    %v1860 = vadd.f32 %v1764, %v1844
    %v1861 = vadd.f32 %v1765, %v1845
    %v1862 = vadd.f32 %v1766, %v1846
    %v1863 = vadd.f32 %v1767, %v1847
    %v1864 = vadd.f32 %v1768, %v1848
    %v1865 = vadd.f32 %v1769, %v1849
    %v1866 = vadd.f32 %v1770, %v1850
    %v1867 = vadd.f32 %v1771, %v1851
    %v1868 = vadd.f32 %v1772, %v1852
    %v1869 = vadd.f32 %v1773, %v1853
    %v1870 = vadd.f32 %v1774, %v1854
    %v1871 = vadd.f32 %v1775, %v1855
    %v1872 = vpack.c.bf16 %v1857, %v1856
    %v1873 = vpack.c.bf16 %v1859, %v1858
    %v1874 = vpack.c.bf16 %v1861, %v1860
    %v1875 = vpack.c.bf16 %v1863, %v1862
    %v1876 = vpack.c.bf16 %v1865, %v1864
    %v1877 = vpack.c.bf16 %v1867, %v1866
    %v1878 = vpack.c.bf16 %v1869, %v1868
    %v1879 = vpack.c.bf16 %v1871, %v1870
    %1888 = vrot.lane.b32.xlu0 %v1872, 96
    %v1889 = vpop.permute.xlu0 %1888
    %1890 = vrot.lane.b32.xlu0 %v1873, 96
    %v1891 = vpop.permute.xlu0 %1890
    %1892 = vrot.lane.b32.xlu0 %v1874, 96
    %v1893 = vpop.permute.xlu0 %1892
    %1894 = vrot.lane.b32.xlu0 %v1875, 96
    %v1895 = vpop.permute.xlu0 %1894
    %1896 = vrot.lane.b32.xlu0 %v1876, 96
    %v1897 = vpop.permute.xlu0 %1896
    %1898 = vrot.lane.b32.xlu0 %v1877, 96
    %v1899 = vpop.permute.xlu0 %1898
    %1900 = vrot.lane.b32.xlu0 %v1878, 96
    %v1901 = vpop.permute.xlu0 %1900
    %1902 = vrot.lane.b32.xlu0 %v1879, 96
    %v1903 = vpop.permute.xlu0 %1902
    %1912 = vmatprep.subr.bf16.mxu0 0
    %1913 = vmatpush1.bf16.msra.mxu0 %v1889
    %1914 = vmatprep.subr.bf16.mxu0 0
    %1915 = vmatpush1.bf16.msra.mxu0 %v1891
    %1916 = vmatprep.subr.bf16.mxu0 0
    %1917 = vmatpush1.bf16.msra.mxu0 %v1893
    %1918 = vmatprep.subr.bf16.mxu0 0
    %1919 = vmatpush1.bf16.msra.mxu0 %v1895
    %1920 = vmatprep.subr.bf16.mxu0 0
    %1921 = vmatpush1.bf16.msra.mxu0 %v1897
    %1922 = vmatprep.subr.bf16.mxu0 0
    %1923 = vmatpush1.bf16.msra.mxu0 %v1899
    %1924 = vmatprep.subr.bf16.mxu0 0
    %1925 = vmatpush1.bf16.msra.mxu0 %v1901
    %1926 = vmatprep.subr.bf16.mxu0 0
    %1927 = vmatpush1.bf16.msra.mxu0 %v1903
    %1928 = vmatprep.subr.bf16.mxu0 0
    %1929 = vmatpush1.bf16.msra.mxu0 0
    %1930 = vmatprep.subr.bf16.mxu0 0
    %1931 = vmatpush1.bf16.msra.mxu0 0
    %1932 = vmatprep.subr.bf16.mxu0 0
    %1933 = vmatpush1.bf16.msra.mxu0 0
    %1934 = vmatprep.subr.bf16.mxu0 0
    %1935 = vmatpush1.bf16.msra.mxu0 0
    %1936 = vmatprep.subr.bf16.mxu0 0
    %1937 = vmatpush1.bf16.msra.mxu0 0
    %1938 = vmatprep.subr.bf16.mxu0 0
    %1939 = vmatpush1.bf16.msra.mxu0 0
    %1940 = vmatprep.subr.bf16.mxu0 0
    %1941 = vmatpush1.bf16.msra.mxu0 0
    %1942 = vmatprep.subr.bf16.mxu0 0
    %1943 = vmatpush1.bf16.msra.mxu0 0
    %1944 = vmatprep.mubr.bf16.mxu0 0
    %1945 = vmatmul.mubr.bf16.gmra.mrb[0].mxu0 %v117
    %v1946 = vpop.f32.mrb[0].mxu0
    %v1947 = vadd.f32 0.0, %v1946
    %v1948 = vpop.f32.mrb[0].mxu0
    %v1949 = vpop.f32.mrb[0].mxu0
    %v1950 = vpop.f32.mrb[0].mxu0
    %1951 = vdwg.mxu0
    %s1952 = scalar_lea.vmem %s5, 16
    %v1953 = vld [vmem:[%s1952] sm:$0xf]
    %v1954 = vld [vmem:[%s1952 + $0x4] sm:$0xf]
    %v1955 = vld [vmem:[%s1952 + $0x8] sm:$0xf]
    %v1956 = vld [vmem:[%s1952 + $0xc] sm:$0xf]
    %s1957 = scalar_lea.vmem %s6, 16
    %v1958 = vld [vmem:[%s1957] sm:$0xf]
    %v1959 = vld [vmem:[%s1957 + $0x4] sm:$0xf]
    %v1960 = vld [vmem:[%s1957 + $0x8] sm:$0xf]
    %v1961 = vld [vmem:[%s1957 + $0xc] sm:$0xf]
    %s1962 = scalar_lea.vmem %s7, 1
    %v1963 = vld [vmem:[%s1962] sm:$0x1]
    %s1964 = scalar_lea.vmem %s8, 1
    %v1965 = vld [vmem:[%s1964] sm:$0x1]
    %s1966 = scalar_lea.vmem %s9, 1
    %v1967 = vld [vmem:[%s1966] sm:$0x1]
    %s1968 = scalar_lea.vmem %s4, 128
    %v1969 = vld [vmem:[%s1968] sm:$0xff]
    %v1970 = vld [vmem:[%s1968 + $0x8] sm:$0xff]
    %v1971 = vld [vmem:[%s1968 + $0x10] sm:$0xff]
    %v1972 = vld [vmem:[%s1968 + $0x18] sm:$0xff]
    %v1973 = vld [vmem:[%s1968 + $0x20] sm:$0xff]
    %v1974 = vld [vmem:[%s1968 + $0x28] sm:$0xff]
    %v1975 = vld [vmem:[%s1968 + $0x30] sm:$0xff]
    %v1976 = vld [vmem:[%s1968 + $0x38] sm:$0xff]
    %v1977 = vld [vmem:[%s1968 + $0x40] sm:$0xff]
    %v1978 = vld [vmem:[%s1968 + $0x48] sm:$0xff]
    %v1979 = vld [vmem:[%s1968 + $0x50] sm:$0xff]
    %v1980 = vld [vmem:[%s1968 + $0x58] sm:$0xff]
    %v1981 = vld [vmem:[%s1968 + $0x60] sm:$0xff]
    %v1982 = vld [vmem:[%s1968 + $0x68] sm:$0xff]
    %v1983 = vld [vmem:[%s1968 + $0x70] sm:$0xff]
    %v1984 = vld [vmem:[%s1968 + $0x78] sm:$0xff]
    %1985 = vmatprep.subr.bf16.mxu0 0
    %1986 = vmatpush1.bf16.msra.mxu0 %v1889
    %1987 = vmatprep.subr.bf16.mxu0 0
    %1988 = vmatpush1.bf16.msra.mxu0 %v1891
    %1989 = vmatprep.subr.bf16.mxu0 0
    %1990 = vmatpush1.bf16.msra.mxu0 %v1893
    %1991 = vmatprep.subr.bf16.mxu0 0
    %1992 = vmatpush1.bf16.msra.mxu0 %v1895
    %1993 = vmatprep.subr.bf16.mxu0 0
    %1994 = vmatpush1.bf16.msra.mxu0 %v1897
    %1995 = vmatprep.subr.bf16.mxu0 0
    %1996 = vmatpush1.bf16.msra.mxu0 %v1899
    %1997 = vmatprep.subr.bf16.mxu0 0
    %1998 = vmatpush1.bf16.msra.mxu0 %v1901
    %1999 = vmatprep.subr.bf16.mxu0 0
    %2000 = vmatpush1.bf16.msra.mxu0 %v1903
    %2001 = vmatprep.subr.bf16.mxu0 0
    %2002 = vmatpush1.bf16.msra.mxu0 0
    %2003 = vmatprep.subr.bf16.mxu0 0
    %2004 = vmatpush1.bf16.msra.mxu0 0
    %2005 = vmatprep.subr.bf16.mxu0 0
    %2006 = vmatpush1.bf16.msra.mxu0 0
    %2007 = vmatprep.subr.bf16.mxu0 0
    %2008 = vmatpush1.bf16.msra.mxu0 0
    %2009 = vmatprep.subr.bf16.mxu0 0
    %2010 = vmatpush1.bf16.msra.mxu0 0
    %2011 = vmatprep.subr.bf16.mxu0 0
    %2012 = vmatpush1.bf16.msra.mxu0 0
    %2013 = vmatprep.subr.bf16.mxu0 0
    %2014 = vmatpush1.bf16.msra.mxu0 0
    %2015 = vmatprep.subr.bf16.mxu0 0
    %2016 = vmatpush1.bf16.msra.mxu0 0
    %2017 = vmatprep.mubr.bf16.mxu0 0
    %2018 = vmatmul.mubr.bf16.gmra.mrb[0].mxu0 %v289
    %v2019 = vpop.f32.mrb[0].mxu0
    %v2020 = vadd.f32 0.0, %v2019
    %v2021 = vpop.f32.mrb[0].mxu0
    %v2022 = vpop.f32.mrb[0].mxu0
    %v2023 = vadd.f32 0.0, %v2022
    %v2024 = vpop.f32.mrb[0].mxu0
    %2025 = vmatprep.mubr.bf16.mxu0 0
    %2026 = vmatmul.mubr.bf16.gmra.mrb[0].mxu0 %v290
    %v2027 = vpop.f32.mrb[0].mxu0
    %v2028 = vadd.f32 0.0, %v2027
    %v2029 = vpop.f32.mrb[0].mxu0
    %v2030 = vpop.f32.mrb[0].mxu0
    %v2031 = vadd.f32 0.0, %v2030
    %v2032 = vpop.f32.mrb[0].mxu0
    %2033 = vmatprep.mubr.bf16.mxu0 0
    %2034 = vmatmul.mubr.bf16.gmra.mrb[0].mxu0 %v291
    %v2035 = vpop.f32.mrb[0].mxu0
    %v2036 = vadd.f32 0.0, %v2035
    %v2037 = vpop.f32.mrb[0].mxu0
    %v2038 = vpop.f32.mrb[0].mxu0
    %v2039 = vadd.f32 0.0, %v2038
    %v2040 = vpop.f32.mrb[0].mxu0
    %2041 = vmatprep.mubr.bf16.mxu0 0
    %2042 = vmatmul.mubr.bf16.gmra.mrb[0].mxu0 %v292
    %v2043 = vpop.f32.mrb[0].mxu0
    %v2044 = vadd.f32 0.0, %v2043
    %v2045 = vpop.f32.mrb[0].mxu0
    %v2046 = vpop.f32.mrb[0].mxu0
    %v2047 = vadd.f32 0.0, %v2046
    %v2048 = vpop.f32.mrb[0].mxu0
    %2049 = vmatprep.mubr.bf16.mxu0 0
    %2050 = vmatmul.mubr.bf16.gmra.mrb[0].mxu0 %v293
    %v2051 = vpop.f32.mrb[0].mxu0
    %v2052 = vadd.f32 0.0, %v2051
    %v2053 = vpop.f32.mrb[0].mxu0
    %v2054 = vpop.f32.mrb[0].mxu0
    %v2055 = vadd.f32 0.0, %v2054
    %v2056 = vpop.f32.mrb[0].mxu0
    %2057 = vmatprep.mubr.bf16.mxu0 0
    %2058 = vmatmul.mubr.bf16.gmra.mrb[0].mxu0 %v294
    %v2059 = vpop.f32.mrb[0].mxu0
    %v2060 = vadd.f32 0.0, %v2059
    %v2061 = vpop.f32.mrb[0].mxu0
    %v2062 = vpop.f32.mrb[0].mxu0
    %v2063 = vadd.f32 0.0, %v2062
    %v2064 = vpop.f32.mrb[0].mxu0
    %2065 = vmatprep.mubr.bf16.mxu0 0
    %2066 = vmatmul.mubr.bf16.gmra.mrb[0].mxu0 %v295
    %v2067 = vpop.f32.mrb[0].mxu0
    %v2068 = vadd.f32 0.0, %v2067
    %v2069 = vpop.f32.mrb[0].mxu0
    %v2070 = vpop.f32.mrb[0].mxu0
    %v2071 = vadd.f32 0.0, %v2070
    %v2072 = vpop.f32.mrb[0].mxu0
    %2073 = vmatprep.mubr.bf16.mxu0 0
    %2074 = vmatmul.mubr.bf16.gmra.mrb[0].mxu0 %v296
    %v2075 = vpop.f32.mrb[0].mxu0
    %v2076 = vadd.f32 0.0, %v2075
    %v2077 = vpop.f32.mrb[0].mxu0
    %v2078 = vpop.f32.mrb[0].mxu0
    %v2079 = vadd.f32 0.0, %v2078
    %v2080 = vpop.f32.mrb[0].mxu0
    %2081 = vmatprep.mubr.bf16.mxu0 0
    %2082 = vmatmul.mubr.bf16.gmra.mrb[0].mxu0 %v297
    %v2083 = vpop.f32.mrb[0].mxu0
    %v2084 = vadd.f32 0.0, %v2083
    %v2085 = vpop.f32.mrb[0].mxu0
    %v2086 = vpop.f32.mrb[0].mxu0
    %v2087 = vadd.f32 0.0, %v2086
    %v2088 = vpop.f32.mrb[0].mxu0
    %2089 = vmatprep.mubr.bf16.mxu0 0
    %2090 = vmatmul.mubr.bf16.gmra.mrb[0].mxu0 %v298
    %v2091 = vpop.f32.mrb[0].mxu0
    %v2092 = vadd.f32 0.0, %v2091
    %v2093 = vpop.f32.mrb[0].mxu0
    %v2094 = vpop.f32.mrb[0].mxu0
    %v2095 = vadd.f32 0.0, %v2094
    %v2096 = vpop.f32.mrb[0].mxu0
    %2097 = vmatprep.mubr.bf16.mxu0 0
    %2098 = vmatmul.mubr.bf16.gmra.mrb[0].mxu0 %v299
    %v2099 = vpop.f32.mrb[0].mxu0
    %v2100 = vadd.f32 0.0, %v2099
    %v2101 = vpop.f32.mrb[0].mxu0
    %v2102 = vpop.f32.mrb[0].mxu0
    %v2103 = vadd.f32 0.0, %v2102
    %v2104 = vpop.f32.mrb[0].mxu0
    %2105 = vmatprep.mubr.bf16.mxu0 0
    %2106 = vmatmul.mubr.bf16.gmra.mrb[0].mxu0 %v300
    %v2107 = vpop.f32.mrb[0].mxu0
    %v2108 = vadd.f32 0.0, %v2107
    %v2109 = vpop.f32.mrb[0].mxu0
    %v2110 = vpop.f32.mrb[0].mxu0
    %v2111 = vadd.f32 0.0, %v2110
    %v2112 = vpop.f32.mrb[0].mxu0
    %2113 = vmatprep.mubr.bf16.mxu0 0
    %2114 = vmatmul.mubr.bf16.gmra.mrb[0].mxu0 %v301
    %v2115 = vpop.f32.mrb[0].mxu0
    %v2116 = vadd.f32 0.0, %v2115
    %v2117 = vpop.f32.mrb[0].mxu0
    %v2118 = vpop.f32.mrb[0].mxu0
    %v2119 = vadd.f32 0.0, %v2118
    %v2120 = vpop.f32.mrb[0].mxu0
    %2121 = vmatprep.mubr.bf16.mxu0 0
    %2122 = vmatmul.mubr.bf16.gmra.mrb[0].mxu0 %v302
    %v2123 = vpop.f32.mrb[0].mxu0
    %v2124 = vadd.f32 0.0, %v2123
    %v2125 = vpop.f32.mrb[0].mxu0
    %v2126 = vpop.f32.mrb[0].mxu0
    %v2127 = vadd.f32 0.0, %v2126
    %v2128 = vpop.f32.mrb[0].mxu0
    %2129 = vmatprep.mubr.bf16.mxu0 0
    %2130 = vmatmul.mubr.bf16.gmra.mrb[0].mxu0 %v303
    %v2131 = vpop.f32.mrb[0].mxu0
    %v2132 = vadd.f32 0.0, %v2131
    %v2133 = vpop.f32.mrb[0].mxu0
    %v2134 = vpop.f32.mrb[0].mxu0
    %v2135 = vadd.f32 0.0, %v2134
    %v2136 = vpop.f32.mrb[0].mxu0
    %2137 = vmatprep.mubr.bf16.mxu0 0
    %2138 = vmatmul.mubr.bf16.gmra.mrb[0].mxu0 %v304
    %v2139 = vpop.f32.mrb[0].mxu0
    %v2140 = vadd.f32 0.0, %v2139
    %v2141 = vpop.f32.mrb[0].mxu0
    %v2142 = vpop.f32.mrb[0].mxu0
    %v2143 = vadd.f32 0.0, %v2142
    %v2144 = vpop.f32.mrb[0].mxu0
    %2145 = vmatprep.mubr.bf16.mxu0 0
    %2146 = vmatmul.mubr.bf16.gmra.mrb[0].mxu0 %v305
    %v2147 = vpop.f32.mrb[0].mxu0
    %v2148 = vadd.f32 0.0, %v2147
    %v2149 = vpop.f32.mrb[0].mxu0
    %v2150 = vpop.f32.mrb[0].mxu0
    %v2151 = vadd.f32 0.0, %v2150
    %v2152 = vpop.f32.mrb[0].mxu0
    %2153 = vmatprep.mubr.bf16.mxu0 0
    %2154 = vmatmul.mubr.bf16.gmra.mrb[0].mxu0 %v306
    %v2155 = vpop.f32.mrb[0].mxu0
    %v2156 = vadd.f32 0.0, %v2155
    %v2157 = vpop.f32.mrb[0].mxu0
    %v2158 = vpop.f32.mrb[0].mxu0
    %v2159 = vadd.f32 0.0, %v2158
    %v2160 = vpop.f32.mrb[0].mxu0
    %2161 = vmatprep.mubr.bf16.mxu0 0
    %2162 = vmatmul.mubr.bf16.gmra.mrb[0].mxu0 %v307
    %v2163 = vpop.f32.mrb[0].mxu0
    %v2164 = vadd.f32 0.0, %v2163
    %v2165 = vpop.f32.mrb[0].mxu0
    %v2166 = vpop.f32.mrb[0].mxu0
    %v2167 = vadd.f32 0.0, %v2166
    %v2168 = vpop.f32.mrb[0].mxu0
    %2169 = vmatprep.mubr.bf16.mxu0 0
    %2170 = vmatmul.mubr.bf16.gmra.mrb[0].mxu0 %v308
    %v2171 = vpop.f32.mrb[0].mxu0
    %v2172 = vadd.f32 0.0, %v2171
    %v2173 = vpop.f32.mrb[0].mxu0
    %v2174 = vpop.f32.mrb[0].mxu0
    %v2175 = vadd.f32 0.0, %v2174
    %v2176 = vpop.f32.mrb[0].mxu0
    %2177 = vmatprep.mubr.bf16.mxu0 0
    %2178 = vmatmul.mubr.bf16.gmra.mrb[0].mxu0 %v309
    %v2179 = vpop.f32.mrb[0].mxu0
    %v2180 = vadd.f32 0.0, %v2179
    %v2181 = vpop.f32.mrb[0].mxu0
    %v2182 = vpop.f32.mrb[0].mxu0
    %v2183 = vadd.f32 0.0, %v2182
    %v2184 = vpop.f32.mrb[0].mxu0
    %2185 = vmatprep.mubr.bf16.mxu0 0
    %2186 = vmatmul.mubr.bf16.gmra.mrb[0].mxu0 %v310
    %v2187 = vpop.f32.mrb[0].mxu0
    %v2188 = vadd.f32 0.0, %v2187
    %v2189 = vpop.f32.mrb[0].mxu0
    %v2190 = vpop.f32.mrb[0].mxu0
    %v2191 = vadd.f32 0.0, %v2190
    %v2192 = vpop.f32.mrb[0].mxu0
    %2193 = vmatprep.mubr.bf16.mxu0 0
    %2194 = vmatmul.mubr.bf16.gmra.mrb[0].mxu0 %v311
    %v2195 = vpop.f32.mrb[0].mxu0
    %v2196 = vadd.f32 0.0, %v2195
    %v2197 = vpop.f32.mrb[0].mxu0
    %v2198 = vpop.f32.mrb[0].mxu0
    %v2199 = vadd.f32 0.0, %v2198
    %v2200 = vpop.f32.mrb[0].mxu0
    %2201 = vmatprep.mubr.bf16.mxu0 0
    %2202 = vmatmul.mubr.bf16.gmra.mrb[0].mxu0 %v312
    %v2203 = vpop.f32.mrb[0].mxu0
    %v2204 = vadd.f32 0.0, %v2203
    %v2205 = vpop.f32.mrb[0].mxu0
    %v2206 = vpop.f32.mrb[0].mxu0
    %v2207 = vadd.f32 0.0, %v2206
    %v2208 = vpop.f32.mrb[0].mxu0
    %2209 = vdwg.mxu0
    %v2210 = vpack.c.bf16 %v2023, %v2020
    %v2211 = vpack.c.bf16 %v2031, %v2028
    %v2212 = vpack.c.bf16 %v2039, %v2036
    %v2213 = vpack.c.bf16 %v2047, %v2044
    %v2214 = vpack.c.bf16 %v2055, %v2052
    %v2215 = vpack.c.bf16 %v2063, %v2060
    %v2216 = vpack.c.bf16 %v2071, %v2068
    %v2217 = vpack.c.bf16 %v2079, %v2076
    %s2218 = scalar_lea.vmem %s3, 48
    %v2219 = vld [vmem:[%s2218] sm:$0xf]
    %v2220 = vld [vmem:[%s2218 + $0x4] sm:$0xf]
    %v2221 = vld [vmem:[%s2218 + $0x8] sm:$0xf]
    %v2222 = vld [vmem:[%s2218 + $0xc] sm:$0xf]
    %v2227 = vunpack.c.l.b16 %v2219
    %v2228 = vunpack.c.l.b16 %v2220
    %v2229 = vunpack.c.l.b16 %v2221
    %v2230 = vunpack.c.l.b16 %v2222
    %v2231 = vpack.c.b16 %v2228, %v2227
    %v2232 = vpack.c.b16 %v2230, %v2229
    %v2236 = vsel %vm586, %v2210, 0
    %v2239 = vsel %vm586, %v2211, 0
    %v2242 = vsel %vm586, %v2212, 0
    %v2245 = vsel %vm586, %v2213, 0
    %v2248 = vsel %vm586, %v2214, 0
    %v2251 = vsel %vm586, %v2215, 0
    %v2254 = vsel %vm586, %v2216, 0
    %v2257 = vsel %vm586, %v2217, 0
    %2259 = vmatprep.subr.bf16.mxu0 0
    %2260 = vmatpush1.bf16.msra.mxu0 %v2231
    %2261 = vmatprep.subr.bf16.mxu0 0
    %2262 = vmatpush1.bf16.msra.mxu0 %v2232
    %2263 = vmatprep.subr.bf16.mxu0 0
    %2264 = vmatpush1.bf16.msra.mxu0 0
    %2265 = vmatprep.subr.bf16.mxu0 0
    %2266 = vmatpush1.bf16.msra.mxu0 0
    %2267 = vmatprep.subr.bf16.mxu0 0
    %2268 = vmatpush1.bf16.msra.mxu0 0
    %2269 = vmatprep.subr.bf16.mxu0 0
    %2270 = vmatpush1.bf16.msra.mxu0 0
    %2271 = vmatprep.subr.bf16.mxu0 0
    %2272 = vmatpush1.bf16.msra.mxu0 0
    %2273 = vmatprep.subr.bf16.mxu0 0
    %2274 = vmatpush1.bf16.msra.mxu0 0
    %2275 = vmatprep.subr.bf16.mxu0 0
    %2276 = vmatpush1.bf16.msra.mxu0 0
    %2277 = vmatprep.subr.bf16.mxu0 0
    %2278 = vmatpush1.bf16.msra.mxu0 0
    %2279 = vmatprep.subr.bf16.mxu0 0
    %2280 = vmatpush1.bf16.msra.mxu0 0
    %2281 = vmatprep.subr.bf16.mxu0 0
    %2282 = vmatpush1.bf16.msra.mxu0 0
    %2283 = vmatprep.subr.bf16.mxu0 0
    %2284 = vmatpush1.bf16.msra.mxu0 0
    %2285 = vmatprep.subr.bf16.mxu0 0
    %2286 = vmatpush1.bf16.msra.mxu0 0
    %2287 = vmatprep.subr.bf16.mxu0 0
    %2288 = vmatpush1.bf16.msra.mxu0 0
    %2289 = vmatprep.subr.bf16.mxu0 0
    %2290 = vmatpush1.bf16.msra.mxu0 0
    %2291 = vmatprep.mubr.bf16.mxu0 0
    %2292 = vmatmul.mubr.bf16.gmra.mrb[0].mxu0 %v2236
    %v2293 = vpop.f32.mrb[0].mxu0
    %v2294 = vadd.f32 0.0, %v2293
    %v2295 = vpop.f32.mrb[0].mxu0
    %v2296 = vpop.f32.mrb[0].mxu0
    %v2297 = vadd.f32 0.0, %v2296
    %v2298 = vpop.f32.mrb[0].mxu0
    %2299 = vmatprep.mubr.bf16.mxu0 0
    %2300 = vmatmul.mubr.bf16.gmra.mrb[0].mxu0 %v2239
    %v2301 = vpop.f32.mrb[0].mxu0
    %v2302 = vadd.f32 0.0, %v2301
    %v2303 = vpop.f32.mrb[0].mxu0
    %v2304 = vpop.f32.mrb[0].mxu0
    %v2305 = vadd.f32 0.0, %v2304
    %v2306 = vpop.f32.mrb[0].mxu0
    %2307 = vmatprep.mubr.bf16.mxu0 0
    %2308 = vmatmul.mubr.bf16.gmra.mrb[0].mxu0 %v2242
    %v2309 = vpop.f32.mrb[0].mxu0
    %v2310 = vadd.f32 0.0, %v2309
    %v2311 = vpop.f32.mrb[0].mxu0
    %v2312 = vpop.f32.mrb[0].mxu0
    %v2313 = vadd.f32 0.0, %v2312
    %v2314 = vpop.f32.mrb[0].mxu0
    %2315 = vmatprep.mubr.bf16.mxu0 0
    %2316 = vmatmul.mubr.bf16.gmra.mrb[0].mxu0 %v2245
    %v2317 = vpop.f32.mrb[0].mxu0
    %v2318 = vadd.f32 0.0, %v2317
    %v2319 = vpop.f32.mrb[0].mxu0
    %v2320 = vpop.f32.mrb[0].mxu0
    %v2321 = vadd.f32 0.0, %v2320
    %v2322 = vpop.f32.mrb[0].mxu0
    %2323 = vmatprep.mubr.bf16.mxu0 0
    %2324 = vmatmul.mubr.bf16.gmra.mrb[0].mxu0 %v2248
    %v2325 = vpop.f32.mrb[0].mxu0
    %v2326 = vadd.f32 0.0, %v2325
    %v2327 = vpop.f32.mrb[0].mxu0
    %v2328 = vpop.f32.mrb[0].mxu0
    %v2329 = vadd.f32 0.0, %v2328
    %v2330 = vpop.f32.mrb[0].mxu0
    %2331 = vmatprep.mubr.bf16.mxu0 0
    %2332 = vmatmul.mubr.bf16.gmra.mrb[0].mxu0 %v2251
    %v2333 = vpop.f32.mrb[0].mxu0
    %v2334 = vadd.f32 0.0, %v2333
    %v2335 = vpop.f32.mrb[0].mxu0
    %v2336 = vpop.f32.mrb[0].mxu0
    %v2337 = vadd.f32 0.0, %v2336
    %v2338 = vpop.f32.mrb[0].mxu0
    %2339 = vmatprep.mubr.bf16.mxu0 0
    %2340 = vmatmul.mubr.bf16.gmra.mrb[0].mxu0 %v2254
    %v2341 = vpop.f32.mrb[0].mxu0
    %v2342 = vadd.f32 0.0, %v2341
    %v2343 = vpop.f32.mrb[0].mxu0
    %v2344 = vpop.f32.mrb[0].mxu0
    %v2345 = vadd.f32 0.0, %v2344
    %v2346 = vpop.f32.mrb[0].mxu0
    %2347 = vmatprep.mubr.bf16.mxu0 0
    %2348 = vmatmul.mubr.bf16.gmra.mrb[0].mxu0 %v2257
    %v2349 = vpop.f32.mrb[0].mxu0
    %v2350 = vadd.f32 0.0, %v2349
    %v2351 = vpop.f32.mrb[0].mxu0
    %v2352 = vpop.f32.mrb[0].mxu0
    %v2353 = vadd.f32 0.0, %v2352
    %v2354 = vpop.f32.mrb[0].mxu0
    %2355 = vdwg.mxu0
    %v2356 = vadd.f32 %v1969, %v2294
    %v2357 = vadd.f32 %v1970, %v2297
    %v2358 = vadd.f32 %v1971, %v2302
    %v2359 = vadd.f32 %v1972, %v2305
    %v2360 = vadd.f32 %v1973, %v2310
    %v2361 = vadd.f32 %v1974, %v2313
    %v2362 = vadd.f32 %v1975, %v2318
    %v2363 = vadd.f32 %v1976, %v2321
    %v2364 = vadd.f32 %v1977, %v2326
    %v2365 = vadd.f32 %v1978, %v2329
    %v2366 = vadd.f32 %v1979, %v2334
    %v2367 = vadd.f32 %v1980, %v2337
    %v2368 = vadd.f32 %v1981, %v2342
    %v2369 = vadd.f32 %v1982, %v2345
    %v2370 = vadd.f32 %v1983, %v2350
    %v2371 = vadd.f32 %v1984, %v2353
    %v2372 = vpack.c.bf16 %v2087, %v2084
    %v2373 = vpack.c.bf16 %v2095, %v2092
    %v2374 = vpack.c.bf16 %v2103, %v2100
    %v2375 = vpack.c.bf16 %v2111, %v2108
    %v2376 = vpack.c.bf16 %v2119, %v2116
    %v2377 = vpack.c.bf16 %v2127, %v2124
    %v2378 = vpack.c.bf16 %v2135, %v2132
    %v2379 = vpack.c.bf16 %v2143, %v2140
    %s2380 = scalar_lea.vmem %s3, 64
    %v2381 = vld [vmem:[%s2380] sm:$0xf]
    %v2382 = vld [vmem:[%s2380 + $0x4] sm:$0xf]
    %v2383 = vld [vmem:[%s2380 + $0x8] sm:$0xf]
    %v2384 = vld [vmem:[%s2380 + $0xc] sm:$0xf]
    %v2389 = vunpack.c.l.b16 %v2381
    %v2390 = vunpack.c.l.b16 %v2382
    %v2391 = vunpack.c.l.b16 %v2383
    %v2392 = vunpack.c.l.b16 %v2384
    %v2393 = vpack.c.b16 %v2390, %v2389
    %v2394 = vpack.c.b16 %v2392, %v2391
    %v2398 = vsel %vm586, %v2372, 0
    %v2401 = vsel %vm586, %v2373, 0
    %v2404 = vsel %vm586, %v2374, 0
    %v2407 = vsel %vm586, %v2375, 0
    %v2410 = vsel %vm586, %v2376, 0
    %v2413 = vsel %vm586, %v2377, 0
    %v2416 = vsel %vm586, %v2378, 0
    %v2419 = vsel %vm586, %v2379, 0
    %2421 = vmatprep.subr.bf16.mxu0 0
    %2422 = vmatpush1.bf16.msra.mxu0 %v2393
    %2423 = vmatprep.subr.bf16.mxu0 0
    %2424 = vmatpush1.bf16.msra.mxu0 %v2394
    %2425 = vmatprep.subr.bf16.mxu0 0
    %2426 = vmatpush1.bf16.msra.mxu0 0
    %2427 = vmatprep.subr.bf16.mxu0 0
    %2428 = vmatpush1.bf16.msra.mxu0 0
    %2429 = vmatprep.subr.bf16.mxu0 0
    %2430 = vmatpush1.bf16.msra.mxu0 0
    %2431 = vmatprep.subr.bf16.mxu0 0
    %2432 = vmatpush1.bf16.msra.mxu0 0
    %2433 = vmatprep.subr.bf16.mxu0 0
    %2434 = vmatpush1.bf16.msra.mxu0 0
    %2435 = vmatprep.subr.bf16.mxu0 0
    %2436 = vmatpush1.bf16.msra.mxu0 0
    %2437 = vmatprep.subr.bf16.mxu0 0
    %2438 = vmatpush1.bf16.msra.mxu0 0
    %2439 = vmatprep.subr.bf16.mxu0 0
    %2440 = vmatpush1.bf16.msra.mxu0 0
    %2441 = vmatprep.subr.bf16.mxu0 0
    %2442 = vmatpush1.bf16.msra.mxu0 0
    %2443 = vmatprep.subr.bf16.mxu0 0
    %2444 = vmatpush1.bf16.msra.mxu0 0
    %2445 = vmatprep.subr.bf16.mxu0 0
    %2446 = vmatpush1.bf16.msra.mxu0 0
    %2447 = vmatprep.subr.bf16.mxu0 0
    %2448 = vmatpush1.bf16.msra.mxu0 0
    %2449 = vmatprep.subr.bf16.mxu0 0
    %2450 = vmatpush1.bf16.msra.mxu0 0
    %2451 = vmatprep.subr.bf16.mxu0 0
    %2452 = vmatpush1.bf16.msra.mxu0 0
    %2453 = vmatprep.mubr.bf16.mxu0 0
    %2454 = vmatmul.mubr.bf16.gmra.mrb[0].mxu0 %v2398
    %v2455 = vpop.f32.mrb[0].mxu0
    %v2456 = vadd.f32 0.0, %v2455
    %v2457 = vpop.f32.mrb[0].mxu0
    %v2458 = vpop.f32.mrb[0].mxu0
    %v2459 = vadd.f32 0.0, %v2458
    %v2460 = vpop.f32.mrb[0].mxu0
    %2461 = vmatprep.mubr.bf16.mxu0 0
    %2462 = vmatmul.mubr.bf16.gmra.mrb[0].mxu0 %v2401
    %v2463 = vpop.f32.mrb[0].mxu0
    %v2464 = vadd.f32 0.0, %v2463
    %v2465 = vpop.f32.mrb[0].mxu0
    %v2466 = vpop.f32.mrb[0].mxu0
    %v2467 = vadd.f32 0.0, %v2466
    %v2468 = vpop.f32.mrb[0].mxu0
    %2469 = vmatprep.mubr.bf16.mxu0 0
    %2470 = vmatmul.mubr.bf16.gmra.mrb[0].mxu0 %v2404
    %v2471 = vpop.f32.mrb[0].mxu0
    %v2472 = vadd.f32 0.0, %v2471
    %v2473 = vpop.f32.mrb[0].mxu0
    %v2474 = vpop.f32.mrb[0].mxu0
    %v2475 = vadd.f32 0.0, %v2474
    %v2476 = vpop.f32.mrb[0].mxu0
    %2477 = vmatprep.mubr.bf16.mxu0 0
    %2478 = vmatmul.mubr.bf16.gmra.mrb[0].mxu0 %v2407
    %v2479 = vpop.f32.mrb[0].mxu0
    %v2480 = vadd.f32 0.0, %v2479
    %v2481 = vpop.f32.mrb[0].mxu0
    %v2482 = vpop.f32.mrb[0].mxu0
    %v2483 = vadd.f32 0.0, %v2482
    %v2484 = vpop.f32.mrb[0].mxu0
    %2485 = vmatprep.mubr.bf16.mxu0 0
    %2486 = vmatmul.mubr.bf16.gmra.mrb[0].mxu0 %v2410
    %v2487 = vpop.f32.mrb[0].mxu0
    %v2488 = vadd.f32 0.0, %v2487
    %v2489 = vpop.f32.mrb[0].mxu0
    %v2490 = vpop.f32.mrb[0].mxu0
    %v2491 = vadd.f32 0.0, %v2490
    %v2492 = vpop.f32.mrb[0].mxu0
    %2493 = vmatprep.mubr.bf16.mxu0 0
    %2494 = vmatmul.mubr.bf16.gmra.mrb[0].mxu0 %v2413
    %v2495 = vpop.f32.mrb[0].mxu0
    %v2496 = vadd.f32 0.0, %v2495
    %v2497 = vpop.f32.mrb[0].mxu0
    %v2498 = vpop.f32.mrb[0].mxu0
    %v2499 = vadd.f32 0.0, %v2498
    %v2500 = vpop.f32.mrb[0].mxu0
    %2501 = vmatprep.mubr.bf16.mxu0 0
    %2502 = vmatmul.mubr.bf16.gmra.mrb[0].mxu0 %v2416
    %v2503 = vpop.f32.mrb[0].mxu0
    %v2504 = vadd.f32 0.0, %v2503
    %v2505 = vpop.f32.mrb[0].mxu0
    %v2506 = vpop.f32.mrb[0].mxu0
    %v2507 = vadd.f32 0.0, %v2506
    %v2508 = vpop.f32.mrb[0].mxu0
    %2509 = vmatprep.mubr.bf16.mxu0 0
    %2510 = vmatmul.mubr.bf16.gmra.mrb[0].mxu0 %v2419
    %v2511 = vpop.f32.mrb[0].mxu0
    %v2512 = vadd.f32 0.0, %v2511
    %v2513 = vpop.f32.mrb[0].mxu0
    %v2514 = vpop.f32.mrb[0].mxu0
    %v2515 = vadd.f32 0.0, %v2514
    %v2516 = vpop.f32.mrb[0].mxu0
    %2517 = vdwg.mxu0
    %v2518 = vadd.f32 %v2356, %v2456
    %v2519 = vadd.f32 %v2357, %v2459
    %v2520 = vadd.f32 %v2358, %v2464
    %v2521 = vadd.f32 %v2359, %v2467
    %v2522 = vadd.f32 %v2360, %v2472
    %v2523 = vadd.f32 %v2361, %v2475
    %v2524 = vadd.f32 %v2362, %v2480
    %v2525 = vadd.f32 %v2363, %v2483
    %v2526 = vadd.f32 %v2364, %v2488
    %v2527 = vadd.f32 %v2365, %v2491
    %v2528 = vadd.f32 %v2366, %v2496
    %v2529 = vadd.f32 %v2367, %v2499
    %v2530 = vadd.f32 %v2368, %v2504
    %v2531 = vadd.f32 %v2369, %v2507
    %v2532 = vadd.f32 %v2370, %v2512
    %v2533 = vadd.f32 %v2371, %v2515
    %v2534 = vpack.c.bf16 %v2151, %v2148
    %v2535 = vpack.c.bf16 %v2159, %v2156
    %v2536 = vpack.c.bf16 %v2167, %v2164
    %v2537 = vpack.c.bf16 %v2175, %v2172
    %v2538 = vpack.c.bf16 %v2183, %v2180
    %v2539 = vpack.c.bf16 %v2191, %v2188
    %v2540 = vpack.c.bf16 %v2199, %v2196
    %v2541 = vpack.c.bf16 %v2207, %v2204
    %s2542 = scalar_lea.vmem %s3, 80
    %v2543 = vld [vmem:[%s2542] sm:$0xf]
    %v2544 = vld [vmem:[%s2542 + $0x4] sm:$0xf]
    %v2545 = vld [vmem:[%s2542 + $0x8] sm:$0xf]
    %v2546 = vld [vmem:[%s2542 + $0xc] sm:$0xf]
    %v2551 = vunpack.c.l.b16 %v2543
    %v2552 = vunpack.c.l.b16 %v2544
    %v2553 = vunpack.c.l.b16 %v2545
    %v2554 = vunpack.c.l.b16 %v2546
    %v2555 = vpack.c.b16 %v2552, %v2551
    %v2556 = vpack.c.b16 %v2554, %v2553
    %v2560 = vsel %vm586, %v2534, 0
    %v2563 = vsel %vm586, %v2535, 0
    %v2566 = vsel %vm586, %v2536, 0
    %v2569 = vsel %vm586, %v2537, 0
    %v2572 = vsel %vm586, %v2538, 0
    %v2575 = vsel %vm586, %v2539, 0
    %v2578 = vsel %vm586, %v2540, 0
    %v2581 = vsel %vm586, %v2541, 0
    %2583 = vmatprep.subr.bf16.mxu0 0
    %2584 = vmatpush1.bf16.msra.mxu0 %v2555
    %2585 = vmatprep.subr.bf16.mxu0 0
    %2586 = vmatpush1.bf16.msra.mxu0 %v2556
    %2587 = vmatprep.subr.bf16.mxu0 0
    %2588 = vmatpush1.bf16.msra.mxu0 0
    %2589 = vmatprep.subr.bf16.mxu0 0
    %2590 = vmatpush1.bf16.msra.mxu0 0
    %2591 = vmatprep.subr.bf16.mxu0 0
    %2592 = vmatpush1.bf16.msra.mxu0 0
    %2593 = vmatprep.subr.bf16.mxu0 0
    %2594 = vmatpush1.bf16.msra.mxu0 0
    %2595 = vmatprep.subr.bf16.mxu0 0
    %2596 = vmatpush1.bf16.msra.mxu0 0
    %2597 = vmatprep.subr.bf16.mxu0 0
    %2598 = vmatpush1.bf16.msra.mxu0 0
    %2599 = vmatprep.subr.bf16.mxu0 0
    %2600 = vmatpush1.bf16.msra.mxu0 0
    %2601 = vmatprep.subr.bf16.mxu0 0
    %2602 = vmatpush1.bf16.msra.mxu0 0
    %2603 = vmatprep.subr.bf16.mxu0 0
    %2604 = vmatpush1.bf16.msra.mxu0 0
    %2605 = vmatprep.subr.bf16.mxu0 0
    %2606 = vmatpush1.bf16.msra.mxu0 0
    %2607 = vmatprep.subr.bf16.mxu0 0
    %2608 = vmatpush1.bf16.msra.mxu0 0
    %2609 = vmatprep.subr.bf16.mxu0 0
    %2610 = vmatpush1.bf16.msra.mxu0 0
    %2611 = vmatprep.subr.bf16.mxu0 0
    %2612 = vmatpush1.bf16.msra.mxu0 0
    %2613 = vmatprep.subr.bf16.mxu0 0
    %2614 = vmatpush1.bf16.msra.mxu0 0
    %2615 = vmatprep.mubr.bf16.mxu0 0
    %2616 = vmatmul.mubr.bf16.gmra.mrb[0].mxu0 %v2560
    %v2617 = vpop.f32.mrb[0].mxu0
    %v2618 = vadd.f32 0.0, %v2617
    %v2619 = vpop.f32.mrb[0].mxu0
    %v2620 = vpop.f32.mrb[0].mxu0
    %v2621 = vadd.f32 0.0, %v2620
    %v2622 = vpop.f32.mrb[0].mxu0
    %2623 = vmatprep.mubr.bf16.mxu0 0
    %2624 = vmatmul.mubr.bf16.gmra.mrb[0].mxu0 %v2563
    %v2625 = vpop.f32.mrb[0].mxu0
    %v2626 = vadd.f32 0.0, %v2625
    %v2627 = vpop.f32.mrb[0].mxu0
    %v2628 = vpop.f32.mrb[0].mxu0
    %v2629 = vadd.f32 0.0, %v2628
    %v2630 = vpop.f32.mrb[0].mxu0
    %2631 = vmatprep.mubr.bf16.mxu0 0
    %2632 = vmatmul.mubr.bf16.gmra.mrb[0].mxu0 %v2566
    %v2633 = vpop.f32.mrb[0].mxu0
    %v2634 = vadd.f32 0.0, %v2633
    %v2635 = vpop.f32.mrb[0].mxu0
    %v2636 = vpop.f32.mrb[0].mxu0
    %v2637 = vadd.f32 0.0, %v2636
    %v2638 = vpop.f32.mrb[0].mxu0
    %2639 = vmatprep.mubr.bf16.mxu0 0
    %2640 = vmatmul.mubr.bf16.gmra.mrb[0].mxu0 %v2569
    %v2641 = vpop.f32.mrb[0].mxu0
    %v2642 = vadd.f32 0.0, %v2641
    %v2643 = vpop.f32.mrb[0].mxu0
    %v2644 = vpop.f32.mrb[0].mxu0
    %v2645 = vadd.f32 0.0, %v2644
    %v2646 = vpop.f32.mrb[0].mxu0
    %2647 = vmatprep.mubr.bf16.mxu0 0
    %2648 = vmatmul.mubr.bf16.gmra.mrb[0].mxu0 %v2572
    %v2649 = vpop.f32.mrb[0].mxu0
    %v2650 = vadd.f32 0.0, %v2649
    %v2651 = vpop.f32.mrb[0].mxu0
    %v2652 = vpop.f32.mrb[0].mxu0
    %v2653 = vadd.f32 0.0, %v2652
    %v2654 = vpop.f32.mrb[0].mxu0
    %2655 = vmatprep.mubr.bf16.mxu0 0
    %2656 = vmatmul.mubr.bf16.gmra.mrb[0].mxu0 %v2575
    %v2657 = vpop.f32.mrb[0].mxu0
    %v2658 = vadd.f32 0.0, %v2657
    %v2659 = vpop.f32.mrb[0].mxu0
    %v2660 = vpop.f32.mrb[0].mxu0
    %v2661 = vadd.f32 0.0, %v2660
    %v2662 = vpop.f32.mrb[0].mxu0
    %2663 = vmatprep.mubr.bf16.mxu0 0
    %2664 = vmatmul.mubr.bf16.gmra.mrb[0].mxu0 %v2578
    %v2665 = vpop.f32.mrb[0].mxu0
    %v2666 = vadd.f32 0.0, %v2665
    %v2667 = vpop.f32.mrb[0].mxu0
    %v2668 = vpop.f32.mrb[0].mxu0
    %v2669 = vadd.f32 0.0, %v2668
    %v2670 = vpop.f32.mrb[0].mxu0
    %2671 = vmatprep.mubr.bf16.mxu0 0
    %2672 = vmatmul.mubr.bf16.gmra.mrb[0].mxu0 %v2581
    %v2673 = vpop.f32.mrb[0].mxu0
    %v2674 = vadd.f32 0.0, %v2673
    %v2675 = vpop.f32.mrb[0].mxu0
    %v2676 = vpop.f32.mrb[0].mxu0
    %v2677 = vadd.f32 0.0, %v2676
    %v2678 = vpop.f32.mrb[0].mxu0
    %2679 = vdwg.mxu0
    %v2680 = vadd.f32 %v2518, %v2618
    %v2681 = vadd.f32 %v2519, %v2621
    %v2682 = vadd.f32 %v2520, %v2626
    %v2683 = vadd.f32 %v2521, %v2629
    %v2684 = vadd.f32 %v2522, %v2634
    %v2685 = vadd.f32 %v2523, %v2637
    %v2686 = vadd.f32 %v2524, %v2642
    %v2687 = vadd.f32 %v2525, %v2645
    %v2688 = vadd.f32 %v2526, %v2650
    %v2689 = vadd.f32 %v2527, %v2653
    %v2690 = vadd.f32 %v2528, %v2658
    %v2691 = vadd.f32 %v2529, %v2661
    %v2692 = vadd.f32 %v2530, %v2666
    %v2693 = vadd.f32 %v2531, %v2669
    %v2694 = vadd.f32 %v2532, %v2674
    %v2695 = vadd.f32 %v2533, %v2677
    %v2696 = vpack.c.bf16 %v2681, %v2680
    %v2697 = vpack.c.bf16 %v2683, %v2682
    %v2698 = vpack.c.bf16 %v2685, %v2684
    %v2699 = vpack.c.bf16 %v2687, %v2686
    %v2700 = vpack.c.bf16 %v2689, %v2688
    %v2701 = vpack.c.bf16 %v2691, %v2690
    %v2702 = vpack.c.bf16 %v2693, %v2692
    %v2703 = vpack.c.bf16 %v2695, %v2694
    %v2708 = vunpack.c.l.b16 %v1953
    %v2709 = vunpack.c.l.b16 %v1954
    %v2710 = vunpack.c.l.b16 %v1955
    %v2711 = vunpack.c.l.b16 %v1956
    %v2712 = vpack.c.b16 %v2709, %v2708
    %v2713 = vpack.c.b16 %v2711, %v2710
    %v2717 = vsel %vm586, %v2696, 0
    %v2720 = vsel %vm586, %v2697, 0
    %v2723 = vsel %vm586, %v2698, 0
    %v2726 = vsel %vm586, %v2699, 0
    %v2729 = vsel %vm586, %v2700, 0
    %v2732 = vsel %vm586, %v2701, 0
    %v2735 = vsel %vm586, %v2702, 0
    %v2738 = vsel %vm586, %v2703, 0
    %2740 = vmatprep.subr.bf16.mxu0 0
    %2741 = vmatpush1.bf16.msra.mxu0 %v2712
    %2742 = vmatprep.subr.bf16.mxu0 0
    %2743 = vmatpush1.bf16.msra.mxu0 %v2713
    %2744 = vmatprep.subr.bf16.mxu0 0
    %2745 = vmatpush1.bf16.msra.mxu0 0
    %2746 = vmatprep.subr.bf16.mxu0 0
    %2747 = vmatpush1.bf16.msra.mxu0 0
    %2748 = vmatprep.subr.bf16.mxu0 0
    %2749 = vmatpush1.bf16.msra.mxu0 0
    %2750 = vmatprep.subr.bf16.mxu0 0
    %2751 = vmatpush1.bf16.msra.mxu0 0
    %2752 = vmatprep.subr.bf16.mxu0 0
    %2753 = vmatpush1.bf16.msra.mxu0 0
    %2754 = vmatprep.subr.bf16.mxu0 0
    %2755 = vmatpush1.bf16.msra.mxu0 0
    %2756 = vmatprep.subr.bf16.mxu0 0
    %2757 = vmatpush1.bf16.msra.mxu0 0
    %2758 = vmatprep.subr.bf16.mxu0 0
    %2759 = vmatpush1.bf16.msra.mxu0 0
    %2760 = vmatprep.subr.bf16.mxu0 0
    %2761 = vmatpush1.bf16.msra.mxu0 0
    %2762 = vmatprep.subr.bf16.mxu0 0
    %2763 = vmatpush1.bf16.msra.mxu0 0
    %2764 = vmatprep.subr.bf16.mxu0 0
    %2765 = vmatpush1.bf16.msra.mxu0 0
    %2766 = vmatprep.subr.bf16.mxu0 0
    %2767 = vmatpush1.bf16.msra.mxu0 0
    %2768 = vmatprep.subr.bf16.mxu0 0
    %2769 = vmatpush1.bf16.msra.mxu0 0
    %2770 = vmatprep.subr.bf16.mxu0 0
    %2771 = vmatpush1.bf16.msra.mxu0 0
    %2772 = vmatprep.mubr.bf16.mxu0 0
    %2773 = vmatmul.mubr.bf16.gmra.mrb[0].mxu0 %v2717
    %v2774 = vpop.f32.mrb[0].mxu0
    %v2775 = vadd.f32 0.0, %v2774
    %v2776 = vpop.f32.mrb[0].mxu0
    %v2777 = vpop.f32.mrb[0].mxu0
    %v2778 = vadd.f32 0.0, %v2777
    %v2779 = vpop.f32.mrb[0].mxu0
    %2780 = vmatprep.mubr.bf16.mxu0 0
    %2781 = vmatmul.mubr.bf16.gmra.mrb[0].mxu0 %v2720
    %v2782 = vpop.f32.mrb[0].mxu0
    %v2783 = vadd.f32 0.0, %v2782
    %v2784 = vpop.f32.mrb[0].mxu0
    %v2785 = vpop.f32.mrb[0].mxu0
    %v2786 = vadd.f32 0.0, %v2785
    %v2787 = vpop.f32.mrb[0].mxu0
    %2788 = vmatprep.mubr.bf16.mxu0 0
    %2789 = vmatmul.mubr.bf16.gmra.mrb[0].mxu0 %v2723
    %v2790 = vpop.f32.mrb[0].mxu0
    %v2791 = vadd.f32 0.0, %v2790
    %v2792 = vpop.f32.mrb[0].mxu0
    %v2793 = vpop.f32.mrb[0].mxu0
    %v2794 = vadd.f32 0.0, %v2793
    %v2795 = vpop.f32.mrb[0].mxu0
    %2796 = vmatprep.mubr.bf16.mxu0 0
    %2797 = vmatmul.mubr.bf16.gmra.mrb[0].mxu0 %v2726
    %v2798 = vpop.f32.mrb[0].mxu0
    %v2799 = vadd.f32 0.0, %v2798
    %v2800 = vpop.f32.mrb[0].mxu0
    %v2801 = vpop.f32.mrb[0].mxu0
    %v2802 = vadd.f32 0.0, %v2801
    %v2803 = vpop.f32.mrb[0].mxu0
    %2804 = vmatprep.mubr.bf16.mxu0 0
    %2805 = vmatmul.mubr.bf16.gmra.mrb[0].mxu0 %v2729
    %v2806 = vpop.f32.mrb[0].mxu0
    %v2807 = vadd.f32 0.0, %v2806
    %v2808 = vpop.f32.mrb[0].mxu0
    %v2809 = vpop.f32.mrb[0].mxu0
    %v2810 = vadd.f32 0.0, %v2809
    %v2811 = vpop.f32.mrb[0].mxu0
    %2812 = vmatprep.mubr.bf16.mxu0 0
    %2813 = vmatmul.mubr.bf16.gmra.mrb[0].mxu0 %v2732
    %v2814 = vpop.f32.mrb[0].mxu0
    %v2815 = vadd.f32 0.0, %v2814
    %v2816 = vpop.f32.mrb[0].mxu0
    %v2817 = vpop.f32.mrb[0].mxu0
    %v2818 = vadd.f32 0.0, %v2817
    %v2819 = vpop.f32.mrb[0].mxu0
    %2820 = vmatprep.mubr.bf16.mxu0 0
    %2821 = vmatmul.mubr.bf16.gmra.mrb[0].mxu0 %v2735
    %v2822 = vpop.f32.mrb[0].mxu0
    %v2823 = vadd.f32 0.0, %v2822
    %v2824 = vpop.f32.mrb[0].mxu0
    %v2825 = vpop.f32.mrb[0].mxu0
    %v2826 = vadd.f32 0.0, %v2825
    %v2827 = vpop.f32.mrb[0].mxu0
    %2828 = vmatprep.mubr.bf16.mxu0 0
    %2829 = vmatmul.mubr.bf16.gmra.mrb[0].mxu0 %v2738
    %v2830 = vpop.f32.mrb[0].mxu0
    %v2831 = vadd.f32 0.0, %v2830
    %v2832 = vpop.f32.mrb[0].mxu0
    %v2833 = vpop.f32.mrb[0].mxu0
    %v2834 = vadd.f32 0.0, %v2833
    %v2835 = vpop.f32.mrb[0].mxu0
    %2836 = vdwg.mxu0
    %v2841 = vunpack.c.l.b16 %v1958
    %v2842 = vunpack.c.l.b16 %v1959
    %v2843 = vunpack.c.l.b16 %v1960
    %v2844 = vunpack.c.l.b16 %v1961
    %v2845 = vpack.c.b16 %v2842, %v2841
    %v2846 = vpack.c.b16 %v2844, %v2843
    %v2850 = vsel %vm586, %v1889, 0
    %v2853 = vsel %vm586, %v1891, 0
    %v2856 = vsel %vm586, %v1893, 0
    %v2859 = vsel %vm586, %v1895, 0
    %v2862 = vsel %vm586, %v1897, 0
    %v2865 = vsel %vm586, %v1899, 0
    %v2868 = vsel %vm586, %v1901, 0
    %v2871 = vsel %vm586, %v1903, 0
    %2873 = vmatprep.subr.bf16.mxu0 0
    %2874 = vmatpush1.bf16.msra.mxu0 %v2845
    %2875 = vmatprep.subr.bf16.mxu0 0
    %2876 = vmatpush1.bf16.msra.mxu0 %v2846
    %2877 = vmatprep.subr.bf16.mxu0 0
    %2878 = vmatpush1.bf16.msra.mxu0 0
    %2879 = vmatprep.subr.bf16.mxu0 0
    %2880 = vmatpush1.bf16.msra.mxu0 0
    %2881 = vmatprep.subr.bf16.mxu0 0
    %2882 = vmatpush1.bf16.msra.mxu0 0
    %2883 = vmatprep.subr.bf16.mxu0 0
    %2884 = vmatpush1.bf16.msra.mxu0 0
    %2885 = vmatprep.subr.bf16.mxu0 0
    %2886 = vmatpush1.bf16.msra.mxu0 0
    %2887 = vmatprep.subr.bf16.mxu0 0
    %2888 = vmatpush1.bf16.msra.mxu0 0
    %2889 = vmatprep.subr.bf16.mxu0 0
    %2890 = vmatpush1.bf16.msra.mxu0 0
    %2891 = vmatprep.subr.bf16.mxu0 0
    %2892 = vmatpush1.bf16.msra.mxu0 0
    %2893 = vmatprep.subr.bf16.mxu0 0
    %2894 = vmatpush1.bf16.msra.mxu0 0
    %2895 = vmatprep.subr.bf16.mxu0 0
    %2896 = vmatpush1.bf16.msra.mxu0 0
    %2897 = vmatprep.subr.bf16.mxu0 0
    %2898 = vmatpush1.bf16.msra.mxu0 0
    %2899 = vmatprep.subr.bf16.mxu0 0
    %2900 = vmatpush1.bf16.msra.mxu0 0
    %2901 = vmatprep.subr.bf16.mxu0 0
    %2902 = vmatpush1.bf16.msra.mxu0 0
    %2903 = vmatprep.subr.bf16.mxu0 0
    %2904 = vmatpush1.bf16.msra.mxu0 0
    %2905 = vmatprep.mubr.bf16.mxu0 0
    %2906 = vmatmul.mubr.bf16.gmra.mrb[0].mxu0 %v2850
    %v2907 = vpop.f32.mrb[0].mxu0
    %v2908 = vadd.f32 0.0, %v2907
    %v2909 = vpop.f32.mrb[0].mxu0
    %v2910 = vpop.f32.mrb[0].mxu0
    %v2911 = vadd.f32 0.0, %v2910
    %v2912 = vpop.f32.mrb[0].mxu0
    %2913 = vmatprep.mubr.bf16.mxu0 0
    %2914 = vmatmul.mubr.bf16.gmra.mrb[0].mxu0 %v2853
    %v2915 = vpop.f32.mrb[0].mxu0
    %v2916 = vadd.f32 0.0, %v2915
    %v2917 = vpop.f32.mrb[0].mxu0
    %v2918 = vpop.f32.mrb[0].mxu0
    %v2919 = vadd.f32 0.0, %v2918
    %v2920 = vpop.f32.mrb[0].mxu0
    %2921 = vmatprep.mubr.bf16.mxu0 0
    %2922 = vmatmul.mubr.bf16.gmra.mrb[0].mxu0 %v2856
    %v2923 = vpop.f32.mrb[0].mxu0
    %v2924 = vadd.f32 0.0, %v2923
    %v2925 = vpop.f32.mrb[0].mxu0
    %v2926 = vpop.f32.mrb[0].mxu0
    %v2927 = vadd.f32 0.0, %v2926
    %v2928 = vpop.f32.mrb[0].mxu0
    %2929 = vmatprep.mubr.bf16.mxu0 0
    %2930 = vmatmul.mubr.bf16.gmra.mrb[0].mxu0 %v2859
    %v2931 = vpop.f32.mrb[0].mxu0
    %v2932 = vadd.f32 0.0, %v2931
    %v2933 = vpop.f32.mrb[0].mxu0
    %v2934 = vpop.f32.mrb[0].mxu0
    %v2935 = vadd.f32 0.0, %v2934
    %v2936 = vpop.f32.mrb[0].mxu0
    %2937 = vmatprep.mubr.bf16.mxu0 0
    %2938 = vmatmul.mubr.bf16.gmra.mrb[0].mxu0 %v2862
    %v2939 = vpop.f32.mrb[0].mxu0
    %v2940 = vadd.f32 0.0, %v2939
    %v2941 = vpop.f32.mrb[0].mxu0
    %v2942 = vpop.f32.mrb[0].mxu0
    %v2943 = vadd.f32 0.0, %v2942
    %v2944 = vpop.f32.mrb[0].mxu0
    %2945 = vmatprep.mubr.bf16.mxu0 0
    %2946 = vmatmul.mubr.bf16.gmra.mrb[0].mxu0 %v2865
    %v2947 = vpop.f32.mrb[0].mxu0
    %v2948 = vadd.f32 0.0, %v2947
    %v2949 = vpop.f32.mrb[0].mxu0
    %v2950 = vpop.f32.mrb[0].mxu0
    %v2951 = vadd.f32 0.0, %v2950
    %v2952 = vpop.f32.mrb[0].mxu0
    %2953 = vmatprep.mubr.bf16.mxu0 0
    %2954 = vmatmul.mubr.bf16.gmra.mrb[0].mxu0 %v2868
    %v2955 = vpop.f32.mrb[0].mxu0
    %v2956 = vadd.f32 0.0, %v2955
    %v2957 = vpop.f32.mrb[0].mxu0
    %v2958 = vpop.f32.mrb[0].mxu0
    %v2959 = vadd.f32 0.0, %v2958
    %v2960 = vpop.f32.mrb[0].mxu0
    %2961 = vmatprep.mubr.bf16.mxu0 0
    %2962 = vmatmul.mubr.bf16.gmra.mrb[0].mxu0 %v2871
    %v2963 = vpop.f32.mrb[0].mxu0
    %v2964 = vadd.f32 0.0, %v2963
    %v2965 = vpop.f32.mrb[0].mxu0
    %v2966 = vpop.f32.mrb[0].mxu0
    %v2967 = vadd.f32 0.0, %v2966
    %v2968 = vpop.f32.mrb[0].mxu0
    %2969 = vdwg.mxu0
    %v2970 = vadd.f32 %v2775, %v2908
    %v2971 = vadd.f32 %v2778, %v2911
    %v2972 = vadd.f32 %v2783, %v2916
    %v2973 = vadd.f32 %v2786, %v2919
    %v2974 = vadd.f32 %v2791, %v2924
    %v2975 = vadd.f32 %v2794, %v2927
    %v2976 = vadd.f32 %v2799, %v2932
    %v2977 = vadd.f32 %v2802, %v2935
    %v2978 = vadd.f32 %v2807, %v2940
    %v2979 = vadd.f32 %v2810, %v2943
    %v2980 = vadd.f32 %v2815, %v2948
    %v2981 = vadd.f32 %v2818, %v2951
    %v2982 = vadd.f32 %v2823, %v2956
    %v2983 = vadd.f32 %v2826, %v2959
    %v2984 = vadd.f32 %v2831, %v2964
    %v2985 = vadd.f32 %v2834, %v2967
    %v2987 = vlaneseq
    %v2988 = vshrl.u32 %v2987, 7
    %v2989 = vsub.s32 0, %v2988
    %v2990 = vrot.slane %v1963, %v2989
    %v2992 = vadd.f32 %v2970, %v2990
    %v2993 = vadd.f32 %v2971, %v2990
    %v2994 = vadd.f32 %v2972, %v2990
    %v2995 = vadd.f32 %v2973, %v2990
    %v2996 = vadd.f32 %v2974, %v2990
    %v2997 = vadd.f32 %v2975, %v2990
    %v2998 = vadd.f32 %v2976, %v2990
    %v2999 = vadd.f32 %v2977, %v2990
    %v3000 = vadd.f32 %v2978, %v2990
    %v3001 = vadd.f32 %v2979, %v2990
    %v3002 = vadd.f32 %v2980, %v2990
    %v3003 = vadd.f32 %v2981, %v2990
    %v3004 = vadd.f32 %v2982, %v2990
    %v3005 = vadd.f32 %v2983, %v2990
    %v3006 = vadd.f32 %v2984, %v2990
    %v3007 = vadd.f32 %v2985, %v2990
    %v3008 = vxor.u32 %v2992, 2147483648
    %v3009 = vxor.u32 %v2993, 2147483648
    %v3010 = vxor.u32 %v2994, 2147483648
    %v3011 = vxor.u32 %v2995, 2147483648
    %v3012 = vxor.u32 %v2996, 2147483648
    %v3013 = vxor.u32 %v2997, 2147483648
    %v3014 = vxor.u32 %v2998, 2147483648
    %v3015 = vxor.u32 %v2999, 2147483648
    %v3016 = vxor.u32 %v3000, 2147483648
    %v3017 = vxor.u32 %v3001, 2147483648
    %v3018 = vxor.u32 %v3002, 2147483648
    %v3019 = vxor.u32 %v3003, 2147483648
    %v3020 = vxor.u32 %v3004, 2147483648
    %v3021 = vxor.u32 %v3005, 2147483648
    %v3022 = vxor.u32 %v3006, 2147483648
    %v3023 = vxor.u32 %v3007, 2147483648
    %v3024 = vmul.f32 %v3008, 1.442695
    %v3025 = vpow.pop %v3024
    %v3026 = vmul.f32 %v3009, 1.442695
    %v3027 = vpow.pop %v3026
    %v3028 = vmul.f32 %v3010, 1.442695
    %v3029 = vpow.pop %v3028
    %v3030 = vmul.f32 %v3011, 1.442695
    %v3031 = vpow.pop %v3030
    %v3032 = vmul.f32 %v3012, 1.442695
    %v3033 = vpow.pop %v3032
    %v3034 = vmul.f32 %v3013, 1.442695
    %v3035 = vpow.pop %v3034
    %v3036 = vmul.f32 %v3014, 1.442695
    %v3037 = vpow.pop %v3036
    %v3038 = vmul.f32 %v3015, 1.442695
    %v3039 = vpow.pop %v3038
    %v3040 = vmul.f32 %v3016, 1.442695
    %v3041 = vpow.pop %v3040
    %v3042 = vmul.f32 %v3017, 1.442695
    %v3043 = vpow.pop %v3042
    %v3044 = vmul.f32 %v3018, 1.442695
    %v3045 = vpow.pop %v3044
    %v3046 = vmul.f32 %v3019, 1.442695
    %v3047 = vpow.pop %v3046
    %v3048 = vmul.f32 %v3020, 1.442695
    %v3049 = vpow.pop %v3048
    %v3050 = vmul.f32 %v3021, 1.442695
    %v3051 = vpow.pop %v3050
    %v3052 = vmul.f32 %v3022, 1.442695
    %v3053 = vpow.pop %v3052
    %v3054 = vmul.f32 %v3023, 1.442695
    %v3055 = vpow.pop %v3054
    %v3056 = vadd.f32 %v3025, 1.0
    %v3057 = vadd.f32 %v3027, 1.0
    %v3058 = vadd.f32 %v3029, 1.0
    %v3059 = vadd.f32 %v3031, 1.0
    %v3060 = vadd.f32 %v3033, 1.0
    %v3061 = vadd.f32 %v3035, 1.0
    %v3062 = vadd.f32 %v3037, 1.0
    %v3063 = vadd.f32 %v3039, 1.0
    %v3064 = vadd.f32 %v3041, 1.0
    %v3065 = vadd.f32 %v3043, 1.0
    %v3066 = vadd.f32 %v3045, 1.0
    %v3067 = vadd.f32 %v3047, 1.0
    %v3068 = vadd.f32 %v3049, 1.0
    %v3069 = vadd.f32 %v3051, 1.0
    %v3070 = vadd.f32 %v3053, 1.0
    %v3071 = vadd.f32 %v3055, 1.0
    %v3072 = vrcp.pop %v3056
    %v3073 = vmul.f32 1.0, %v3072
    %v3074 = vrcp.pop %v3057
    %v3075 = vmul.f32 1.0, %v3074
    %v3076 = vrcp.pop %v3058
    %v3077 = vmul.f32 1.0, %v3076
    %v3078 = vrcp.pop %v3059
    %v3079 = vmul.f32 1.0, %v3078
    %v3080 = vrcp.pop %v3060
    %v3081 = vmul.f32 1.0, %v3080
    %v3082 = vrcp.pop %v3061
    %v3083 = vmul.f32 1.0, %v3082
    %v3084 = vrcp.pop %v3062
    %v3085 = vmul.f32 1.0, %v3084
    %v3086 = vrcp.pop %v3063
    %v3087 = vmul.f32 1.0, %v3086
    %v3088 = vrcp.pop %v3064
    %v3089 = vmul.f32 1.0, %v3088
    %v3090 = vrcp.pop %v3065
    %v3091 = vmul.f32 1.0, %v3090
    %v3092 = vrcp.pop %v3066
    %v3093 = vmul.f32 1.0, %v3092
    %v3094 = vrcp.pop %v3067
    %v3095 = vmul.f32 1.0, %v3094
    %v3096 = vrcp.pop %v3068
    %v3097 = vmul.f32 1.0, %v3096
    %v3098 = vrcp.pop %v3069
    %v3099 = vmul.f32 1.0, %v3098
    %v3100 = vrcp.pop %v3070
    %v3101 = vmul.f32 1.0, %v3100
    %v3102 = vrcp.pop %v3071
    %v3103 = vmul.f32 1.0, %v3102
    %v3105 = vlaneseq
    %v3106 = vshrl.u32 %v3105, 7
    %v3107 = vsub.s32 0, %v3106
    %v3108 = vrot.slane %v1965, %v3107
    %3109 = vrot.lane.b32.xlu0 %v3108, 64
    %v3110 = vpop.permute.xlu0 %3109
    %v3112 = vadd.f32 %v2775, %v3110
    %v3113 = vadd.f32 %v2778, %v3110
    %v3114 = vadd.f32 %v2783, %v3110
    %v3115 = vadd.f32 %v2786, %v3110
    %v3116 = vadd.f32 %v2791, %v3110
    %v3117 = vadd.f32 %v2794, %v3110
    %v3118 = vadd.f32 %v2799, %v3110
    %v3119 = vadd.f32 %v2802, %v3110
    %v3120 = vadd.f32 %v2807, %v3110
    %v3121 = vadd.f32 %v2810, %v3110
    %v3122 = vadd.f32 %v2815, %v3110
    %v3123 = vadd.f32 %v2818, %v3110
    %v3124 = vadd.f32 %v2823, %v3110
    %v3125 = vadd.f32 %v2826, %v3110
    %v3126 = vadd.f32 %v2831, %v3110
    %v3127 = vadd.f32 %v2834, %v3110
    %v3129 = vlaneseq
    %v3130 = vshrl.u32 %v3129, 7
    %v3131 = vsub.s32 0, %v3130
    %v3132 = vrot.slane %v1967, %v3131
    %3133 = vrot.lane.b32.xlu0 %v3132, 64
    %v3134 = vpop.permute.xlu0 %3133
    %v3136 = vadd.f32 %v2908, %v3134
    %v3137 = vadd.f32 %v2911, %v3134
    %v3138 = vadd.f32 %v2916, %v3134
    %v3139 = vadd.f32 %v2919, %v3134
    %v3140 = vadd.f32 %v2924, %v3134
    %v3141 = vadd.f32 %v2927, %v3134
    %v3142 = vadd.f32 %v2932, %v3134
    %v3143 = vadd.f32 %v2935, %v3134
    %v3144 = vadd.f32 %v2940, %v3134
    %v3145 = vadd.f32 %v2943, %v3134
    %v3146 = vadd.f32 %v2948, %v3134
    %v3147 = vadd.f32 %v2951, %v3134
    %v3148 = vadd.f32 %v2956, %v3134
    %v3149 = vadd.f32 %v2959, %v3134
    %v3150 = vadd.f32 %v2964, %v3134
    %v3151 = vadd.f32 %v2967, %v3134
    %3168 = vrot.lane.b32.xlu0 %v3136, 64
    %v3169 = vpop.permute.xlu0 %3168
    %3170 = vrot.lane.b32.xlu0 %v3137, 64
    %v3171 = vpop.permute.xlu0 %3170
    %3172 = vrot.lane.b32.xlu0 %v3138, 64
    %v3173 = vpop.permute.xlu0 %3172
    %3174 = vrot.lane.b32.xlu0 %v3139, 64
    %v3175 = vpop.permute.xlu0 %3174
    %3176 = vrot.lane.b32.xlu0 %v3140, 64
    %v3177 = vpop.permute.xlu0 %3176
    %3178 = vrot.lane.b32.xlu0 %v3141, 64
    %v3179 = vpop.permute.xlu0 %3178
    %3180 = vrot.lane.b32.xlu0 %v3142, 64
    %v3181 = vpop.permute.xlu0 %3180
    %3182 = vrot.lane.b32.xlu0 %v3143, 64
    %v3183 = vpop.permute.xlu0 %3182
    %3184 = vrot.lane.b32.xlu0 %v3144, 64
    %v3185 = vpop.permute.xlu0 %3184
    %3186 = vrot.lane.b32.xlu0 %v3145, 64
    %v3187 = vpop.permute.xlu0 %3186
    %3188 = vrot.lane.b32.xlu0 %v3146, 64
    %v3189 = vpop.permute.xlu0 %3188
    %3190 = vrot.lane.b32.xlu0 %v3147, 64
    %v3191 = vpop.permute.xlu0 %3190
    %3192 = vrot.lane.b32.xlu0 %v3148, 64
    %v3193 = vpop.permute.xlu0 %3192
    %3194 = vrot.lane.b32.xlu0 %v3149, 64
    %v3195 = vpop.permute.xlu0 %3194
    %3196 = vrot.lane.b32.xlu0 %v3150, 64
    %v3197 = vpop.permute.xlu0 %3196
    %3198 = vrot.lane.b32.xlu0 %v3151, 64
    %v3199 = vpop.permute.xlu0 %3198
    %v3216 = vmul.f32 %v3073, %v3169
    %v3217 = vmul.f32 %v3075, %v3171
    %v3218 = vmul.f32 %v3077, %v3173
    %v3219 = vmul.f32 %v3079, %v3175
    %v3220 = vmul.f32 %v3081, %v3177
    %v3221 = vmul.f32 %v3083, %v3179
    %v3222 = vmul.f32 %v3085, %v3181
    %v3223 = vmul.f32 %v3087, %v3183
    %v3224 = vmul.f32 %v3089, %v3185
    %v3225 = vmul.f32 %v3091, %v3187
    %v3226 = vmul.f32 %v3093, %v3189
    %v3227 = vmul.f32 %v3095, %v3191
    %v3228 = vmul.f32 %v3097, %v3193
    %v3229 = vmul.f32 %v3099, %v3195
    %v3230 = vmul.f32 %v3101, %v3197
    %v3231 = vmul.f32 %v3103, %v3199
    %3248 = vrot.lane.b32.xlu0 %v3216, 64
    %v3249 = vpop.permute.xlu0 %3248
    %3250 = vrot.lane.b32.xlu0 %v3217, 64
    %v3251 = vpop.permute.xlu0 %3250
    %3252 = vrot.lane.b32.xlu0 %v3218, 64
    %v3253 = vpop.permute.xlu0 %3252
    %3254 = vrot.lane.b32.xlu0 %v3219, 64
    %v3255 = vpop.permute.xlu0 %3254
    %3256 = vrot.lane.b32.xlu0 %v3220, 64
    %v3257 = vpop.permute.xlu0 %3256
    %3258 = vrot.lane.b32.xlu0 %v3221, 64
    %v3259 = vpop.permute.xlu0 %3258
    %3260 = vrot.lane.b32.xlu0 %v3222, 64
    %v3261 = vpop.permute.xlu0 %3260
    %3262 = vrot.lane.b32.xlu0 %v3223, 64
    %v3263 = vpop.permute.xlu0 %3262
    %3264 = vrot.lane.b32.xlu0 %v3224, 64
    %v3265 = vpop.permute.xlu0 %3264
    %3266 = vrot.lane.b32.xlu0 %v3225, 64
    %v3267 = vpop.permute.xlu0 %3266
    %3268 = vrot.lane.b32.xlu0 %v3226, 64
    %v3269 = vpop.permute.xlu0 %3268
    %3270 = vrot.lane.b32.xlu0 %v3227, 64
    %v3271 = vpop.permute.xlu0 %3270
    %3272 = vrot.lane.b32.xlu0 %v3228, 64
    %v3273 = vpop.permute.xlu0 %3272
    %3274 = vrot.lane.b32.xlu0 %v3229, 64
    %v3275 = vpop.permute.xlu0 %3274
    %3276 = vrot.lane.b32.xlu0 %v3230, 64
    %v3277 = vpop.permute.xlu0 %3276
    %3278 = vrot.lane.b32.xlu0 %v3231, 64
    %v3279 = vpop.permute.xlu0 %3278
    %v3296 = vadd.f32 %v3112, %v3249
    %v3297 = vadd.f32 %v3113, %v3251
    %v3298 = vadd.f32 %v3114, %v3253
    %v3299 = vadd.f32 %v3115, %v3255
    %v3300 = vadd.f32 %v3116, %v3257
    %v3301 = vadd.f32 %v3117, %v3259
    %v3302 = vadd.f32 %v3118, %v3261
    %v3303 = vadd.f32 %v3119, %v3263
    %v3304 = vadd.f32 %v3120, %v3265
    %v3305 = vadd.f32 %v3121, %v3267
    %v3306 = vadd.f32 %v3122, %v3269
    %v3307 = vadd.f32 %v3123, %v3271
    %v3308 = vadd.f32 %v3124, %v3273
    %v3309 = vadd.f32 %v3125, %v3275
    %v3310 = vadd.f32 %v3126, %v3277
    %v3311 = vadd.f32 %v3127, %v3279
    %v3312 = vtanh.pop %v3296
    %v3313 = vtanh.pop %v3297
    %v3314 = vtanh.pop %v3298
    %v3315 = vtanh.pop %v3299
    %v3316 = vtanh.pop %v3300
    %v3317 = vtanh.pop %v3301
    %v3318 = vtanh.pop %v3302
    %v3319 = vtanh.pop %v3303
    %v3320 = vtanh.pop %v3304
    %v3321 = vtanh.pop %v3305
    %v3322 = vtanh.pop %v3306
    %v3323 = vtanh.pop %v3307
    %v3324 = vtanh.pop %v3308
    %v3325 = vtanh.pop %v3309
    %v3326 = vtanh.pop %v3310
    %v3327 = vtanh.pop %v3311
    %v3328 = vsub.f32 1.0, %v3073
    %v3329 = vsub.f32 1.0, %v3075
    %v3330 = vsub.f32 1.0, %v3077
    %v3331 = vsub.f32 1.0, %v3079
    %v3332 = vsub.f32 1.0, %v3081
    %v3333 = vsub.f32 1.0, %v3083
    %v3334 = vsub.f32 1.0, %v3085
    %v3335 = vsub.f32 1.0, %v3087
    %v3336 = vsub.f32 1.0, %v3089
    %v3337 = vsub.f32 1.0, %v3091
    %v3338 = vsub.f32 1.0, %v3093
    %v3339 = vsub.f32 1.0, %v3095
    %v3340 = vsub.f32 1.0, %v3097
    %v3341 = vsub.f32 1.0, %v3099
    %v3342 = vsub.f32 1.0, %v3101
    %v3343 = vsub.f32 1.0, %v3103
    %3360 = vrot.lane.b32.xlu0 %v3312, 96
    %v3361 = vpop.permute.xlu0 %3360
    %3362 = vrot.lane.b32.xlu0 %v3313, 96
    %v3363 = vpop.permute.xlu0 %3362
    %3364 = vrot.lane.b32.xlu0 %v3314, 96
    %v3365 = vpop.permute.xlu0 %3364
    %3366 = vrot.lane.b32.xlu0 %v3315, 96
    %v3367 = vpop.permute.xlu0 %3366
    %3368 = vrot.lane.b32.xlu0 %v3316, 96
    %v3369 = vpop.permute.xlu0 %3368
    %3370 = vrot.lane.b32.xlu0 %v3317, 96
    %v3371 = vpop.permute.xlu0 %3370
    %3372 = vrot.lane.b32.xlu0 %v3318, 96
    %v3373 = vpop.permute.xlu0 %3372
    %3374 = vrot.lane.b32.xlu0 %v3319, 96
    %v3375 = vpop.permute.xlu0 %3374
    %3376 = vrot.lane.b32.xlu0 %v3320, 96
    %v3377 = vpop.permute.xlu0 %3376
    %3378 = vrot.lane.b32.xlu0 %v3321, 96
    %v3379 = vpop.permute.xlu0 %3378
    %3380 = vrot.lane.b32.xlu0 %v3322, 96
    %v3381 = vpop.permute.xlu0 %3380
    %3382 = vrot.lane.b32.xlu0 %v3323, 96
    %v3383 = vpop.permute.xlu0 %3382
    %3384 = vrot.lane.b32.xlu0 %v3324, 96
    %v3385 = vpop.permute.xlu0 %3384
    %3386 = vrot.lane.b32.xlu0 %v3325, 96
    %v3387 = vpop.permute.xlu0 %3386
    %3388 = vrot.lane.b32.xlu0 %v3326, 96
    %v3389 = vpop.permute.xlu0 %3388
    %3390 = vrot.lane.b32.xlu0 %v3327, 96
    %v3391 = vpop.permute.xlu0 %3390
    %v3408 = vmul.f32 %v3328, %v3361
    %v3409 = vmul.f32 %v3329, %v3363
    %v3410 = vmul.f32 %v3330, %v3365
    %v3411 = vmul.f32 %v3331, %v3367
    %v3412 = vmul.f32 %v3332, %v3369
    %v3413 = vmul.f32 %v3333, %v3371
    %v3414 = vmul.f32 %v3334, %v3373
    %v3415 = vmul.f32 %v3335, %v3375
    %v3416 = vmul.f32 %v3336, %v3377
    %v3417 = vmul.f32 %v3337, %v3379
    %v3418 = vmul.f32 %v3338, %v3381
    %v3419 = vmul.f32 %v3339, %v3383
    %v3420 = vmul.f32 %v3340, %v3385
    %v3421 = vmul.f32 %v3341, %v3387
    %v3422 = vmul.f32 %v3342, %v3389
    %v3423 = vmul.f32 %v3343, %v3391
    %v3424 = vmul.f32 %v3073, %v1856
    %v3425 = vmul.f32 %v3075, %v1857
    %v3426 = vmul.f32 %v3077, %v1858
    %v3427 = vmul.f32 %v3079, %v1859
    %v3428 = vmul.f32 %v3081, %v1860
    %v3429 = vmul.f32 %v3083, %v1861
    %v3430 = vmul.f32 %v3085, %v1862
    %v3431 = vmul.f32 %v3087, %v1863
    %v3432 = vmul.f32 %v3089, %v1864
    %v3433 = vmul.f32 %v3091, %v1865
    %v3434 = vmul.f32 %v3093, %v1866
    %v3435 = vmul.f32 %v3095, %v1867
    %v3436 = vmul.f32 %v3097, %v1868
    %v3437 = vmul.f32 %v3099, %v1869
    %v3438 = vmul.f32 %v3101, %v1870
    %v3439 = vmul.f32 %v3103, %v1871
    %v3440 = vadd.f32 %v3408, %v3424
    %v3441 = vadd.f32 %v3409, %v3425
    %v3442 = vadd.f32 %v3410, %v3426
    %v3443 = vadd.f32 %v3411, %v3427
    %v3444 = vadd.f32 %v3412, %v3428
    %v3445 = vadd.f32 %v3413, %v3429
    %v3446 = vadd.f32 %v3414, %v3430
    %v3447 = vadd.f32 %v3415, %v3431
    %v3448 = vadd.f32 %v3416, %v3432
    %v3449 = vadd.f32 %v3417, %v3433
    %v3450 = vadd.f32 %v3418, %v3434
    %v3451 = vadd.f32 %v3419, %v3435
    %v3452 = vadd.f32 %v3420, %v3436
    %v3453 = vadd.f32 %v3421, %v3437
    %v3454 = vadd.f32 %v3422, %v3438
    %v3455 = vadd.f32 %v3423, %v3439
    %v3456 = vpack.c.bf16 %v3441, %v3440
    %v3457 = vpack.c.bf16 %v3443, %v3442
    %v3458 = vpack.c.bf16 %v3445, %v3444
    %v3459 = vpack.c.bf16 %v3447, %v3446
    %v3460 = vpack.c.bf16 %v3449, %v3448
    %v3461 = vpack.c.bf16 %v3451, %v3450
    %v3462 = vpack.c.bf16 %v3453, %v3452
    %v3463 = vpack.c.bf16 %v3455, %v3454
    %3472 = vrot.lane.b32.xlu0 %v3456, 96
    %v3473 = vpop.permute.xlu0 %3472
    %3474 = vrot.lane.b32.xlu0 %v3457, 96
    %v3475 = vpop.permute.xlu0 %3474
    %3476 = vrot.lane.b32.xlu0 %v3458, 96
    %v3477 = vpop.permute.xlu0 %3476
    %3478 = vrot.lane.b32.xlu0 %v3459, 96
    %v3479 = vpop.permute.xlu0 %3478
    %3480 = vrot.lane.b32.xlu0 %v3460, 96
    %v3481 = vpop.permute.xlu0 %3480
    %3482 = vrot.lane.b32.xlu0 %v3461, 96
    %v3483 = vpop.permute.xlu0 %3482
    %3484 = vrot.lane.b32.xlu0 %v3462, 96
    %v3485 = vpop.permute.xlu0 %3484
    %3486 = vrot.lane.b32.xlu0 %v3463, 96
    %v3487 = vpop.permute.xlu0 %3486
    %3496 = vmatprep.subr.bf16.mxu0 0
    %3497 = vmatpush1.bf16.msra.mxu0 %v3473
    %3498 = vmatprep.subr.bf16.mxu0 0
    %3499 = vmatpush1.bf16.msra.mxu0 %v3475
    %3500 = vmatprep.subr.bf16.mxu0 0
    %3501 = vmatpush1.bf16.msra.mxu0 %v3477
    %3502 = vmatprep.subr.bf16.mxu0 0
    %3503 = vmatpush1.bf16.msra.mxu0 %v3479
    %3504 = vmatprep.subr.bf16.mxu0 0
    %3505 = vmatpush1.bf16.msra.mxu0 %v3481
    %3506 = vmatprep.subr.bf16.mxu0 0
    %3507 = vmatpush1.bf16.msra.mxu0 %v3483
    %3508 = vmatprep.subr.bf16.mxu0 0
    %3509 = vmatpush1.bf16.msra.mxu0 %v3485
    %3510 = vmatprep.subr.bf16.mxu0 0
    %3511 = vmatpush1.bf16.msra.mxu0 %v3487
    %3512 = vmatprep.subr.bf16.mxu0 0
    %3513 = vmatpush1.bf16.msra.mxu0 0
    %3514 = vmatprep.subr.bf16.mxu0 0
    %3515 = vmatpush1.bf16.msra.mxu0 0
    %3516 = vmatprep.subr.bf16.mxu0 0
    %3517 = vmatpush1.bf16.msra.mxu0 0
    %3518 = vmatprep.subr.bf16.mxu0 0
    %3519 = vmatpush1.bf16.msra.mxu0 0
    %3520 = vmatprep.subr.bf16.mxu0 0
    %3521 = vmatpush1.bf16.msra.mxu0 0
    %3522 = vmatprep.subr.bf16.mxu0 0
    %3523 = vmatpush1.bf16.msra.mxu0 0
    %3524 = vmatprep.subr.bf16.mxu0 0
    %3525 = vmatpush1.bf16.msra.mxu0 0
    %3526 = vmatprep.subr.bf16.mxu0 0
    %3527 = vmatpush1.bf16.msra.mxu0 0
    %3528 = vmatprep.mubr.bf16.mxu0 0
    %3529 = vmatmul.mubr.bf16.gmra.mrb[0].mxu0 %v117
    %v3530 = vpop.f32.mrb[0].mxu0
    %v3531 = vadd.f32 0.0, %v3530
    %v3532 = vpop.f32.mrb[0].mxu0
    %v3533 = vpop.f32.mrb[0].mxu0
    %v3534 = vpop.f32.mrb[0].mxu0
    %3535 = vdwg.mxu0
    %v3536 = vld [vmem:[%s11] sm:$0x1]
    %v3537 = vpack.c.bf16 %v161, %v161
    %v3538 = vld [vmem:[%s10] sm:$0xf]
    %v3539 = vld [vmem:[%s10 + $0x4] sm:$0xf]
    %v3540 = vld [vmem:[%s10 + $0x8] sm:$0xf]
    %v3541 = vld [vmem:[%s10 + $0xc] sm:$0xf]
    %v3546 = vunpack.c.l.b16 %v3538
    %v3547 = vunpack.c.l.b16 %v3539
    %v3548 = vunpack.c.l.b16 %v3540
    %v3549 = vunpack.c.l.b16 %v3541
    %v3550 = vpack.c.b16 %v3547, %v3546
    %v3551 = vpack.c.b16 %v3549, %v3548
    %v3555 = vsel %vm586, %v3537, 0
    %3557 = vmatprep.subr.bf16.mxu0 0
    %3558 = vmatpush1.bf16.msra.mxu0 %v3550
    %3559 = vmatprep.subr.bf16.mxu0 0
    %3560 = vmatpush1.bf16.msra.mxu0 %v3551
    %3561 = vmatprep.subr.bf16.mxu0 0
    %3562 = vmatpush1.bf16.msra.mxu0 0
    %3563 = vmatprep.subr.bf16.mxu0 0
    %3564 = vmatpush1.bf16.msra.mxu0 0
    %3565 = vmatprep.subr.bf16.mxu0 0
    %3566 = vmatpush1.bf16.msra.mxu0 0
    %3567 = vmatprep.subr.bf16.mxu0 0
    %3568 = vmatpush1.bf16.msra.mxu0 0
    %3569 = vmatprep.subr.bf16.mxu0 0
    %3570 = vmatpush1.bf16.msra.mxu0 0
    %3571 = vmatprep.subr.bf16.mxu0 0
    %3572 = vmatpush1.bf16.msra.mxu0 0
    %3573 = vmatprep.subr.bf16.mxu0 0
    %3574 = vmatpush1.bf16.msra.mxu0 0
    %3575 = vmatprep.subr.bf16.mxu0 0
    %3576 = vmatpush1.bf16.msra.mxu0 0
    %3577 = vmatprep.subr.bf16.mxu0 0
    %3578 = vmatpush1.bf16.msra.mxu0 0
    %3579 = vmatprep.subr.bf16.mxu0 0
    %3580 = vmatpush1.bf16.msra.mxu0 0
    %3581 = vmatprep.subr.bf16.mxu0 0
    %3582 = vmatpush1.bf16.msra.mxu0 0
    %3583 = vmatprep.subr.bf16.mxu0 0
    %3584 = vmatpush1.bf16.msra.mxu0 0
    %3585 = vmatprep.subr.bf16.mxu0 0
    %3586 = vmatpush1.bf16.msra.mxu0 0
    %3587 = vmatprep.subr.bf16.mxu0 0
    %3588 = vmatpush1.bf16.msra.mxu0 0
    %3589 = vmatprep.mubr.bf16.mxu0 0
    %3590 = vmatmul.mubr.bf16.gmra.mrb[0].mxu0 %v3555
    %v3591 = vpop.f32.mrb[0].mxu0
    %v3592 = vadd.f32 0.0, %v3591
    %v3593 = vpop.f32.mrb[0].mxu0
    %v3594 = vpop.f32.mrb[0].mxu0
    %v3595 = vpop.f32.mrb[0].mxu0
    %3596 = vdwg.mxu0
    %v3598 = vlaneseq
    %v3599 = vshrl.u32 %v3598, 7
    %v3600 = vsub.s32 0, %v3599
    %v3601 = vrot.slane %v3536, %v3600
    %v3603 = vadd.f32 %v3601, %v3592
    %v3604 = vpack.c.bf16 %v1947, %v1947
    %s3605 = scalar_lea.vmem %s10, 16
    %v3606 = vld [vmem:[%s3605] sm:$0xf]
    %v3607 = vld [vmem:[%s3605 + $0x4] sm:$0xf]
    %v3608 = vld [vmem:[%s3605 + $0x8] sm:$0xf]
    %v3609 = vld [vmem:[%s3605 + $0xc] sm:$0xf]
    %v3614 = vunpack.c.l.b16 %v3606
    %v3615 = vunpack.c.l.b16 %v3607
    %v3616 = vunpack.c.l.b16 %v3608
    %v3617 = vunpack.c.l.b16 %v3609
    %v3618 = vpack.c.b16 %v3615, %v3614
    %v3619 = vpack.c.b16 %v3617, %v3616
    %v3623 = vsel %vm586, %v3604, 0
    %3625 = vmatprep.subr.bf16.mxu0 0
    %3626 = vmatpush1.bf16.msra.mxu0 %v3618
    %3627 = vmatprep.subr.bf16.mxu0 0
    %3628 = vmatpush1.bf16.msra.mxu0 %v3619
    %3629 = vmatprep.subr.bf16.mxu0 0
    %3630 = vmatpush1.bf16.msra.mxu0 0
    %3631 = vmatprep.subr.bf16.mxu0 0
    %3632 = vmatpush1.bf16.msra.mxu0 0
    %3633 = vmatprep.subr.bf16.mxu0 0
    %3634 = vmatpush1.bf16.msra.mxu0 0
    %3635 = vmatprep.subr.bf16.mxu0 0
    %3636 = vmatpush1.bf16.msra.mxu0 0
    %3637 = vmatprep.subr.bf16.mxu0 0
    %3638 = vmatpush1.bf16.msra.mxu0 0
    %3639 = vmatprep.subr.bf16.mxu0 0
    %3640 = vmatpush1.bf16.msra.mxu0 0
    %3641 = vmatprep.subr.bf16.mxu0 0
    %3642 = vmatpush1.bf16.msra.mxu0 0
    %3643 = vmatprep.subr.bf16.mxu0 0
    %3644 = vmatpush1.bf16.msra.mxu0 0
    %3645 = vmatprep.subr.bf16.mxu0 0
    %3646 = vmatpush1.bf16.msra.mxu0 0
    %3647 = vmatprep.subr.bf16.mxu0 0
    %3648 = vmatpush1.bf16.msra.mxu0 0
    %3649 = vmatprep.subr.bf16.mxu0 0
    %3650 = vmatpush1.bf16.msra.mxu0 0
    %3651 = vmatprep.subr.bf16.mxu0 0
    %3652 = vmatpush1.bf16.msra.mxu0 0
    %3653 = vmatprep.subr.bf16.mxu0 0
    %3654 = vmatpush1.bf16.msra.mxu0 0
    %3655 = vmatprep.subr.bf16.mxu0 0
    %3656 = vmatpush1.bf16.msra.mxu0 0
    %3657 = vmatprep.mubr.bf16.mxu0 0
    %3658 = vmatmul.mubr.bf16.gmra.mrb[0].mxu0 %v3623
    %v3659 = vpop.f32.mrb[0].mxu0
    %v3660 = vadd.f32 0.0, %v3659
    %v3661 = vpop.f32.mrb[0].mxu0
    %v3662 = vpop.f32.mrb[0].mxu0
    %v3663 = vpop.f32.mrb[0].mxu0
    %3664 = vdwg.mxu0
    %v3665 = vadd.f32 %v3603, %v3660
    %v3666 = vpack.c.bf16 %v3531, %v3531
    %s3667 = scalar_lea.vmem %s10, 32
    %v3668 = vld [vmem:[%s3667] sm:$0xf]
    %v3669 = vld [vmem:[%s3667 + $0x4] sm:$0xf]
    %v3670 = vld [vmem:[%s3667 + $0x8] sm:$0xf]
    %v3671 = vld [vmem:[%s3667 + $0xc] sm:$0xf]
    %v3676 = vunpack.c.l.b16 %v3668
    %v3677 = vunpack.c.l.b16 %v3669
    %v3678 = vunpack.c.l.b16 %v3670
    %v3679 = vunpack.c.l.b16 %v3671
    %v3680 = vpack.c.b16 %v3677, %v3676
    %v3681 = vpack.c.b16 %v3679, %v3678
    %v3685 = vsel %vm586, %v3666, 0
    %3687 = vmatprep.subr.bf16.mxu0 0
    %3688 = vmatpush1.bf16.msra.mxu0 %v3680
    %3689 = vmatprep.subr.bf16.mxu0 0
    %3690 = vmatpush1.bf16.msra.mxu0 %v3681
    %3691 = vmatprep.subr.bf16.mxu0 0
    %3692 = vmatpush1.bf16.msra.mxu0 0
    %3693 = vmatprep.subr.bf16.mxu0 0
    %3694 = vmatpush1.bf16.msra.mxu0 0
    %3695 = vmatprep.subr.bf16.mxu0 0
    %3696 = vmatpush1.bf16.msra.mxu0 0
    %3697 = vmatprep.subr.bf16.mxu0 0
    %3698 = vmatpush1.bf16.msra.mxu0 0
    %3699 = vmatprep.subr.bf16.mxu0 0
    %3700 = vmatpush1.bf16.msra.mxu0 0
    %3701 = vmatprep.subr.bf16.mxu0 0
    %3702 = vmatpush1.bf16.msra.mxu0 0
    %3703 = vmatprep.subr.bf16.mxu0 0
    %3704 = vmatpush1.bf16.msra.mxu0 0
    %3705 = vmatprep.subr.bf16.mxu0 0
    %3706 = vmatpush1.bf16.msra.mxu0 0
    %3707 = vmatprep.subr.bf16.mxu0 0
    %3708 = vmatpush1.bf16.msra.mxu0 0
    %3709 = vmatprep.subr.bf16.mxu0 0
    %3710 = vmatpush1.bf16.msra.mxu0 0
    %3711 = vmatprep.subr.bf16.mxu0 0
    %3712 = vmatpush1.bf16.msra.mxu0 0
    %3713 = vmatprep.subr.bf16.mxu0 0
    %3714 = vmatpush1.bf16.msra.mxu0 0
    %3715 = vmatprep.subr.bf16.mxu0 0
    %3716 = vmatpush1.bf16.msra.mxu0 0
    %3717 = vmatprep.subr.bf16.mxu0 0
    %3718 = vmatpush1.bf16.msra.mxu0 0
    %3719 = vmatprep.mubr.bf16.mxu0 0
    %3720 = vmatmul.mubr.bf16.gmra.mrb[0].mxu0 %v3685
    %v3721 = vpop.f32.mrb[0].mxu0
    %v3722 = vadd.f32 0.0, %v3721
    %v3723 = vpop.f32.mrb[0].mxu0
    %v3724 = vpop.f32.mrb[0].mxu0
    %v3725 = vpop.f32.mrb[0].mxu0
    %3726 = vdwg.mxu0
    %v3727 = vadd.f32 %v3665, %v3722
    %v3728 = vmax.f32 %v3727, 0.0
    %v3729 = vpack.c.bf16 %v3728, %v3728
    %v3730 = vld [vmem:[%s12] sm:$0xf]
    %v3731 = vld [vmem:[%s12 + $0x4] sm:$0xf]
    %v3732 = vld [vmem:[%s12 + $0x8] sm:$0xf]
    %v3733 = vld [vmem:[%s12 + $0xc] sm:$0xf]
    %v3734 = vld [vmem:[#allocation2] sm:$0x1]
    %v3736 = vlaneseq
    %v3737 = vshrl.u32 %v3736, 7
    %v3738 = vsub.s32 0, %v3737
    %v3739 = vrot.slane %v3734, %v3738
    %v3745 = vunpack.c.l.b16 %v3730
    %v3746 = vunpack.c.l.b16 %v3731
    %v3747 = vunpack.c.l.b16 %v3732
    %v3748 = vunpack.c.l.b16 %v3733
    %v3749 = vpack.c.b16 %v3746, %v3745
    %v3750 = vpack.c.b16 %v3748, %v3747
    %v3754 = vsel %vm586, %v3729, 0
    %3756 = vmatprep.subr.bf16.mxu0 0
    %3757 = vmatpush1.bf16.msra.mxu0 %v3749
    %3758 = vmatprep.subr.bf16.mxu0 0
    %3759 = vmatpush1.bf16.msra.mxu0 %v3750
    %3760 = vmatprep.subr.bf16.mxu0 0
    %3761 = vmatpush1.bf16.msra.mxu0 0
    %3762 = vmatprep.subr.bf16.mxu0 0
    %3763 = vmatpush1.bf16.msra.mxu0 0
    %3764 = vmatprep.subr.bf16.mxu0 0
    %3765 = vmatpush1.bf16.msra.mxu0 0
    %3766 = vmatprep.subr.bf16.mxu0 0
    %3767 = vmatpush1.bf16.msra.mxu0 0
    %3768 = vmatprep.subr.bf16.mxu0 0
    %3769 = vmatpush1.bf16.msra.mxu0 0
    %3770 = vmatprep.subr.bf16.mxu0 0
    %3771 = vmatpush1.bf16.msra.mxu0 0
    %3772 = vmatprep.subr.bf16.mxu0 0
    %3773 = vmatpush1.bf16.msra.mxu0 0
    %3774 = vmatprep.subr.bf16.mxu0 0
    %3775 = vmatpush1.bf16.msra.mxu0 0
    %3776 = vmatprep.subr.bf16.mxu0 0
    %3777 = vmatpush1.bf16.msra.mxu0 0
    %3778 = vmatprep.subr.bf16.mxu0 0
    %3779 = vmatpush1.bf16.msra.mxu0 0
    %3780 = vmatprep.subr.bf16.mxu0 0
    %3781 = vmatpush1.bf16.msra.mxu0 0
    %3782 = vmatprep.subr.bf16.mxu0 0
    %3783 = vmatpush1.bf16.msra.mxu0 0
    %3784 = vmatprep.subr.bf16.mxu0 0
    %3785 = vmatpush1.bf16.msra.mxu0 0
    %3786 = vmatprep.subr.bf16.mxu0 0
    %3787 = vmatpush1.bf16.msra.mxu0 0
    %3788 = vmatprep.mubr.bf16.mxu0 0
    %3789 = vmatmul.mubr.bf16.gmra.mrb[0].mxu0 %v3754
    %v3790 = vpop.f32.mrb[0].mxu0
    %v3791 = vadd.f32 %v3739, %v3790
    %v3792 = vpop.f32.mrb[0].mxu0
    %v3793 = vpop.f32.mrb[0].mxu0
    %v3794 = vpop.f32.mrb[0].mxu0
    %3795 = vdwg.mxu0
    %vm3796 = vcmask 3072
    %3797 = vst.msk [vmem:[%s14] sm:$0xf] %vm3796, %v3791
    %vm3798 = vcmask 257024
    %3799 = vst.msk [vmem:[#allocation3] sm:$0xf] %vm3798, %v161
    %3801 = vrot.lane.b32.xlu0 %v1947, 32
    %v3802 = vpop.permute.xlu0 %3801
    %vm3804 = vcmask 519424
    %3805 = vst.msk [vmem:[#allocation3] sm:$0xf] %vm3804, %v3802
    %3807 = vrot.lane.b32.xlu0 %v3531, 64
    %v3808 = vpop.permute.xlu0 %3807
    %vm3810 = vcmask 781824
    %3811 = vst.msk [vmem:[#allocation3] sm:$0xf] %vm3810, %v3808
    // Predicated region
    $region58: #{tpu_custom_call.1} parent=1 // pred_check
      _
    $region59: #{tpu_custom_call.1} parent=1 // pred_check_branch
      %3813 = sbr.rel (0) target = $region61
    $region60: #{tpu_custom_call.1} parent=1 // pred_region
      _
    $region61: #{tpu_custom_call.1} parent=1 // pred_fallthru
      _
    // Predicated region
    $region62: #{tpu_custom_call.1} parent=1 // pred_check
      _
    $region63: #{tpu_custom_call.1} parent=1 // pred_check_branch
      %3815 = sbr.rel (0) target = $region65
    $region64: #{tpu_custom_call.1} parent=1 // pred_region
      %s3817 = ssub.s32 64, 64
      %3818 = vsyncadd [#allocation4], %s3817
      %s3820 = sshll.u32 [#allocation3], 4
      %s3821 = int_to_ptr.vmem [resolvable:$true] %s3820
      %3823 = dma.vmem_to_hbm [thread:$0]  %s3821, 64, %s15, [#allocation4]
    $region65: #{tpu_custom_call.1} parent=1 // pred_fallthru
      _
    // Predicated region
    $region66: #{tpu_custom_call.1} parent=1 // pred_check
      _
    $region67: #{tpu_custom_call.1} parent=1 // pred_check_branch
      %3825 = sbr.rel (0) target = $region69
    $region68: #{tpu_custom_call.1} parent=1 // pred_region
      _
    $region69: #{tpu_custom_call.1} parent=1 // pred_fallthru
      _
    // Predicated region
    $region70: #{tpu_custom_call.1} parent=1 // pred_check
      _
    $region71: #{tpu_custom_call.1} parent=1 // pred_check_branch
      %3827 = sbr.rel (0) target = $region73
    $region72: #{tpu_custom_call.1} parent=1 // pred_region
      %3828 = dma.done [#allocation4], 64
    $region73: #{tpu_custom_call.1} parent=1 // pred_fallthru
      _
    %3829 = vsyncpa [#allocation4], 1

</llo_original>
